<compile_context>
chip_gen: v6e
topology: v6e:2x2x1
jax: 0.10.0
libtpu: 0.0.40
codegen_flags: <defaults>
</compile_context>

<pallas_src>
import jax
import jax.numpy as jnp
from jax.experimental import pallas as pl
from jax.experimental.pallas import tpu as pltpu

# ---- model hyper-parameters (small, consistent with the module) -------------
D_IN = 36            # initial_feature_dim
HID = 32             # hidden_dim
NF = 8               # num_features
NC = 4               # num_cols
GD = D_IN - NC       # per-feature categorical dim (= 32)
TAU = 0.5
EPS = 1e-20
DENOM_EPS = 1e-30    # guards an all-underflowed group (global-max softmax trick)


def _vae_kernel(
    x_ref, epsn_ref, u_ref,
    w1_ref, b1_ref, wh_ref, bh_ref, gsum_ref,
    wn1p_ref, wg1p_ref, b1p_ref, w2_ref, b2_ref,
    recon_ref, mulogvar_ref, logits_ref,
):
    x = x_ref[...]

    # ---------------- encoder ----------------
    h = jnp.maximum(
        jnp.dot(x, w1_ref[...], preferred_element_type=jnp.float32) + b1_ref[...],
        0.0)
    # fused encoder head: [encG2 | encN2] in a single (HID, 272) matmul
    head = jnp.dot(h, wh_ref[...], preferred_element_type=jnp.float32) + bh_ref[...]
    x_g = head[:, :NF * GD]              # (tb, 256)
    x_n = head[:, NF * GD:]              # (tb, 16) = [mu | logvar]
    mulogvar_ref[...] = x_n              # one 16-lane store; split host-side
    mu = x_n[:, :NF]
    logvar = x_n[:, NF:]

    # ---------------- reparameterize ----------------
    # gaussian part
    z_n = mu + epsn_ref[...] * jnp.exp(0.5 * logvar)          # (tb, NF)

    # gumbel-softmax part: one full-width pass over all NF groups.
    # Subtracting the single global row max is valid per group (softmax is
    # invariant to a per-row constant shift); group denominators are broadcast
    # back by one matmul against the block-diagonal indicator gsum (256,256).
    gsum = gsum_ref[...]

    def group_softmax(s):
        m = jnp.max(s, axis=-1, keepdims=True)                 # one XLU row-max
        e = jnp.exp(s - m)                                     # one EUP pass
        denom = jnp.dot(e, gsum, preferred_element_type=jnp.float32)
        return e * pl.reciprocal(denom + DENOM_EPS, approx=True)

    g_noise = -jnp.log(-jnp.log(u_ref[...] + EPS) + EPS)
    z_g = group_softmax((x_g + g_noise) * (1.0 / TAU))         # (tb, NF*GD)
    logits_ref[...] = group_softmax(x_g)

    # ---------------- decoder (fused block-diagonal, no concats) -------------
    # [hn | hg] = relu(z_n @ [wdn1|0] + z_g @ [0|wdg1] + [bdn1|bdg1])
    hd = jnp.maximum(
        jnp.dot(z_n, wn1p_ref[...], preferred_element_type=jnp.float32)
        + jnp.dot(z_g, wg1p_ref[...], preferred_element_type=jnp.float32)
        + b1p_ref[...],
        0.0)                                                   # (tb, 2*HID)
    # recon = sigmoid([hn|hg] @ blockdiag(wdn2, wdg2) + [bdn2|bdg2])
    #       = [x_N | x_G]  written directly, no concat
    recon_ref[...] = jax.nn.sigmoid(
        jnp.dot(hd, w2_ref[...], preferred_element_type=jnp.float32) + b2_ref[...])


def _pack_params(p):
    """Host-side weight fusion (concatenated head, zero-padded / block-diag decoder)."""
    f32 = jnp.float32
    w_head = jnp.concatenate([p["wg2"], p["wn2"]], axis=1)            # (HID, 272)
    b_head = jnp.concatenate([p["bg2"], p["bn2"]], axis=1)            # (1, 272)
    wn1p = jnp.concatenate([p["wdn1"], jnp.zeros((NF, HID), f32)], axis=1)        # (8, 64)
    wg1p = jnp.concatenate([jnp.zeros((NF * GD, HID), f32), p["wdg1"]], axis=1)   # (256, 64)
    b1p = jnp.concatenate([p["bdn1"], p["bdg1"]], axis=1)             # (1, 64)
    w2 = jnp.zeros((2 * HID, D_IN), f32)
    w2 = w2.at[:HID, :NC].set(p["wdn2"]).at[HID:, NC:].set(p["wdg2"])  # (64, 36)
    b2 = jnp.concatenate([p["bdn2"], p["bdg2"]], axis=1)              # (1, 36)
    gidx = jnp.arange(NF * GD) // GD
    gsum = (gidx[:, None] == gidx[None, :]).astype(f32)               # (256, 256)
    return dict(w1=p["w1"], b1=p["b1"], w_head=w_head, b_head=b_head, gsum=gsum,
                wn1p=wn1p, wg1p=wg1p, b1p=b1p, w2=w2, b2=b2)


def mixed_gumbel_vae_forward(x, eps_n, u, params, *, tb=128, vmem_limit_bytes=None):
    """Returns (recon, mu, logvar, softmax(logits)) like the PyTorch forward().

    tb: batch tile (tunable).  128-1024 is a good range; keep tb <= ~1024 on
    v7x (64 MiB physical VMEM) or pass vmem_limit_bytes explicitly on v5e
    (16 MiB scoped default) when pushing past ~1024.
    """
    B = x.shape[0]
    assert B % tb == 0 and tb % 8 == 0
    fp = _pack_params(params)
    grid = (B // tb,)

    def batch_spec(cols):
        return pl.BlockSpec((tb, cols), lambda i: (i, 0))

    def whole_spec(arr):
        return pl.BlockSpec(arr.shape, lambda i: (0, 0))

    param_order = ["w1", "b1", "w_head", "b_head", "gsum",
                   "wn1p", "wg1p", "b1p", "w2", "b2"]
    param_args = [fp[k] for k in param_order]

    in_specs = ([batch_spec(D_IN), batch_spec(NF), batch_spec(NF * GD)]
                + [whole_spec(p) for p in param_args])
    out_specs = [
        batch_spec(D_IN),        # recon
        batch_spec(2 * NF),      # [mu | logvar]  (lane-dense, split in wrapper)
        batch_spec(NF * GD),     # softmax(logits)
    ]
    out_shape = (
        jax.ShapeDtypeStruct((B, D_IN), jnp.float32),
        jax.ShapeDtypeStruct((B, 2 * NF), jnp.float32),
        jax.ShapeDtypeStruct((B, NF * GD), jnp.float32),
    )

    recon, mulogvar, logits_soft = pl.pallas_call(
        _vae_kernel,
        out_shape=out_shape,
        grid=grid,
        in_specs=in_specs,
        out_specs=out_specs,
        compiler_params=pltpu.CompilerParams(
            dimension_semantics=("parallel",),
            vmem_limit_bytes=vmem_limit_bytes),
    )(x, eps_n, u, *param_args)

    mu = mulogvar[:, :NF]
    logvar = mulogvar[:, NF:]
    return recon, mu, logvar, logits_soft


# ---------------- plain-JAX reference (for correctness check) ----------------
def reference_forward(x, eps_n, u, p):
    h = jax.nn.relu(x @ p["w1"] + p["b1"])
    x_g = h @ p["wg2"] + p["bg2"]
    x_n = h @ p["wn2"] + p["bn2"]
    mu, logvar = x_n[:, :NF], x_n[:, NF:2 * NF]
    z_n = mu + eps_n * jnp.exp(0.5 * logvar)
    logits = x_g.reshape(-1, NF, GD)
    g = -jnp.log(-jnp.log(u.reshape(-1, NF, GD) + EPS) + EPS)
    z_g = jax.nn.softmax((logits + g) / TAU, axis=-1).reshape(-1, NF * GD)
    logits_ = jax.nn.softmax(logits, axis=-1).reshape(-1, NF * GD)
    xn = jax.nn.relu(z_n @ p["wdn1"] + p["bdn1"])
    xn = jax.nn.sigmoid(xn @ p["wdn2"] + p["bdn2"])
    xg = jax.nn.relu(z_g @ p["wdg1"] + p["bdg1"])
    xg = jax.nn.sigmoid(xg @ p["wdg2"] + p["bdg2"])
    recon = jnp.concatenate([xn, xg], axis=1)
    return recon, mu, logvar, logits_


def init_params(key):
    ks = jax.random.split(key, 7)

    def lin(k, d_in, d_out, scale=0.1):
        kw, kb = jax.random.split(k)
        w = scale * jax.random.normal(kw, (d_in, d_out), jnp.float32)
        b = scale * jax.random.normal(kb, (1, d_out), jnp.float32)
        return w, b

    p = {}
    p["w1"], p["b1"] = lin(ks[0], D_IN, HID)                 # enc1
    p["wg2"], p["bg2"] = lin(ks[1], HID, NF * GD)            # encG2
    p["wn2"], p["bn2"] = lin(ks[2], HID, NF * 2)             # encN2
    p["wdg1"], p["bdg1"] = lin(ks[3], NF * GD, HID)          # decG1
    p["wdg2"], p["bdg2"] = lin(ks[4], HID, GD)               # decG2
    p["wdn1"], p["bdn1"] = lin(ks[5], NF, HID)               # decN1
    p["wdn2"], p["bdn2"] = lin(ks[6], HID, NC)               # decN2
    return p


if __name__ == "__main__":
    key = jax.random.PRNGKey(0)
    k_params, k_x, k_eps, k_u = jax.random.split(key, 4)

    B = 256       # small demo batch; grid = 2 steps at tb=128 (keeps 2 TCs busy on v7x)
    TB = 128
    params = init_params(k_params)
    x = jax.random.normal(k_x, (B, D_IN), jnp.float32)
    eps_n = jax.random.normal(k_eps, (B, NF), jnp.float32)       # randn_like(std_N)
    u = jax.random.uniform(k_u, (B, NF * GD), jnp.float32)       # torch.rand for gumbel

    outs = mixed_gumbel_vae_forward(x, eps_n, u, params, tb=TB)
    outs = jax.block_until_ready(outs)

    refs = reference_forward(x, eps_n, u, params)
    # tolerance slightly loosened vs v1 because the softmax divides use the
    # EUP approximate reciprocal (pl.reciprocal(..., approx=True)).
    for o, r in zip(outs, refs):
        assert o.shape == r.shape and o.dtype == r.dtype
        assert jnp.allclose(o, r, rtol=5e-3, atol=5e-3), "mismatch vs reference"

    print("KERNEL_OK")
</pallas_src>

<mosaic_0001>
module attributes {stable_mosaic.version = 11 : i64} {
  func.func @_vae_kernel(%arg0: i32, %arg1: memref<128x36xf32, #tpu.memory_space<vmem>>, %arg2: memref<128x8xf32, #tpu.memory_space<vmem>>, %arg3: memref<128x256xf32, #tpu.memory_space<vmem>>, %arg4: memref<36x32xf32, #tpu.memory_space<vmem>>, %arg5: memref<1x32xf32, #tpu.memory_space<vmem>>, %arg6: memref<32x272xf32, #tpu.memory_space<vmem>>, %arg7: memref<1x272xf32, #tpu.memory_space<vmem>>, %arg8: memref<256x256xf32, #tpu.memory_space<vmem>>, %arg9: memref<8x64xf32, #tpu.memory_space<vmem>>, %arg10: memref<256x64xf32, #tpu.memory_space<vmem>>, %arg11: memref<1x64xf32, #tpu.memory_space<vmem>>, %arg12: memref<64x36xf32, #tpu.memory_space<vmem>>, %arg13: memref<1x36xf32, #tpu.memory_space<vmem>>, %arg14: memref<128x36xf32, #tpu.memory_space<vmem>>, %arg15: memref<128x16xf32, #tpu.memory_space<vmem>>, %arg16: memref<128x256xf32, #tpu.memory_space<vmem>>) attributes {dimension_semantics = [#tpu.dimension_semantics<parallel>], iteration_bounds = array<i64: 2>, scalar_prefetch = 0 : i64, scratch_operands = 0 : i64, tpu.core_type = #tpu.core_type<tc>, window_params = [{transform_indices = @transform_0, window_bounds = array<i64: 128, 36>}, {transform_indices = @transform_1, window_bounds = array<i64: 128, 8>}, {transform_indices = @transform_2, window_bounds = array<i64: 128, 256>}, {pipeline_mode = #tpu.pipeline_mode<synchronous>, transform_indices = @transform_3, window_bounds = array<i64: 36, 32>}, {pipeline_mode = #tpu.pipeline_mode<synchronous>, transform_indices = @transform_4, window_bounds = array<i64: 1, 32>}, {pipeline_mode = #tpu.pipeline_mode<synchronous>, transform_indices = @transform_5, window_bounds = array<i64: 32, 272>}, {pipeline_mode = #tpu.pipeline_mode<synchronous>, transform_indices = @transform_6, window_bounds = array<i64: 1, 272>}, {pipeline_mode = #tpu.pipeline_mode<synchronous>, transform_indices = @transform_7, window_bounds = array<i64: 256, 256>}, {pipeline_mode = #tpu.pipeline_mode<synchronous>, transform_indices = @transform_8, window_bounds = array<i64: 8, 64>}, {pipeline_mode = #tpu.pipeline_mode<synchronous>, transform_indices = @transform_9, window_bounds = array<i64: 256, 64>}, {pipeline_mode = #tpu.pipeline_mode<synchronous>, transform_indices = @transform_10, window_bounds = array<i64: 1, 64>}, {pipeline_mode = #tpu.pipeline_mode<synchronous>, transform_indices = @transform_11, window_bounds = array<i64: 64, 36>}, {pipeline_mode = #tpu.pipeline_mode<synchronous>, transform_indices = @transform_12, window_bounds = array<i64: 1, 36>}, {transform_indices = @transform_13, window_bounds = array<i64: 128, 36>}, {transform_indices = @transform_14, window_bounds = array<i64: 128, 16>}, {transform_indices = @transform_15, window_bounds = array<i64: 128, 256>}]} {
    %c0 = arith.constant 0 : index
    %c0_0 = arith.constant 0 : index
    %0 = vector.load %arg1[%c0, %c0_0] : memref<128x36xf32, #tpu.memory_space<vmem>>, vector<128x36xf32>
    %c0_1 = arith.constant 0 : index
    %c0_2 = arith.constant 0 : index
    %1 = vector.load %arg4[%c0_1, %c0_2] : memref<36x32xf32, #tpu.memory_space<vmem>>, vector<36x32xf32>
    %cst = arith.constant dense<0.000000e+00> : vector<128x32xf32>
    %2 = tpu.matmul %0, %1, %cst {dimension_numbers = #tpu.dot_dimension_numbers<[1], [0], [0], [1], [0, 0, 1, 1], [], []>} : vector<128x36xf32>, vector<36x32xf32>, vector<128x32xf32> -> vector<128x32xf32>
    %c0_3 = arith.constant 0 : index
    %c0_4 = arith.constant 0 : index
    %3 = vector.load %arg5[%c0_3, %c0_4] : memref<1x32xf32, #tpu.memory_space<vmem>>, vector<1x32xf32>
    %4 = vector.broadcast %3 : vector<1x32xf32> to vector<128x32xf32>
    %5 = arith.addf %2, %4 : vector<128x32xf32>
    %cst_5 = arith.constant 0.000000e+00 : f32
    %6 = vector.broadcast %cst_5 : f32 to vector<128x32xf32>
    %7 = arith.maximumf %5, %6 : vector<128x32xf32>
    %c0_6 = arith.constant 0 : index
    %c0_7 = arith.constant 0 : index
    %8 = vector.load %arg6[%c0_6, %c0_7] : memref<32x272xf32, #tpu.memory_space<vmem>>, vector<32x272xf32>
    %cst_8 = arith.constant dense<0.000000e+00> : vector<128x272xf32>
    %9 = tpu.matmul %7, %8, %cst_8 {dimension_numbers = #tpu.dot_dimension_numbers<[1], [0], [0], [1], [0, 0, 1, 1], [], []>} : vector<128x32xf32>, vector<32x272xf32>, vector<128x272xf32> -> vector<128x272xf32>
    %c0_9 = arith.constant 0 : index
    %c0_10 = arith.constant 0 : index
    %10 = vector.load %arg7[%c0_9, %c0_10] : memref<1x272xf32, #tpu.memory_space<vmem>>, vector<1x272xf32>
    %11 = vector.broadcast %10 : vector<1x272xf32> to vector<128x272xf32>
    %12 = arith.addf %9, %11 : vector<128x272xf32>
    %13 = vector.extract_strided_slice %12 {offsets = [0, 0], sizes = [128, 256], strides = [1, 1]} : vector<128x272xf32> to vector<128x256xf32>
    %14 = vector.extract_strided_slice %12 {offsets = [0, 256], sizes = [128, 16], strides = [1, 1]} : vector<128x272xf32> to vector<128x16xf32>
    %c0_11 = arith.constant 0 : index
    %c0_12 = arith.constant 0 : index
    %15 = vector.load %arg15[%c0_11, %c0_12] : memref<128x16xf32, #tpu.memory_space<vmem>>, vector<128x16xf32>
    tpu.vector_store %arg15[%c0_11, %c0_12], %14 {strides = array<i32>} : memref<128x16xf32, #tpu.memory_space<vmem>>, vector<128x16xf32>,
    %16 = vector.extract_strided_slice %14 {offsets = [0, 0], sizes = [128, 8], strides = [1, 1]} : vector<128x16xf32> to vector<128x8xf32>
    %17 = vector.extract_strided_slice %14 {offsets = [0, 8], sizes = [128, 8], strides = [1, 1]} : vector<128x16xf32> to vector<128x8xf32>
    %c0_13 = arith.constant 0 : index
    %c0_14 = arith.constant 0 : index
    %18 = vector.load %arg2[%c0_13, %c0_14] : memref<128x8xf32, #tpu.memory_space<vmem>>, vector<128x8xf32>
    %cst_15 = arith.constant 5.000000e-01 : f32
    %19 = vector.broadcast %cst_15 : f32 to vector<128x8xf32>
    %20 = arith.mulf %19, %17 : vector<128x8xf32>
    %21 = math.exp %20 : vector<128x8xf32>
    %22 = arith.mulf %18, %21 : vector<128x8xf32>
    %23 = arith.addf %16, %22 : vector<128x8xf32>
    %c0_16 = arith.constant 0 : index
    %c0_17 = arith.constant 0 : index
    %24 = vector.load %arg8[%c0_16, %c0_17] : memref<256x256xf32, #tpu.memory_space<vmem>>, vector<256x256xf32>
    %c0_18 = arith.constant 0 : index
    %c0_19 = arith.constant 0 : index
    %25 = vector.load %arg3[%c0_18, %c0_19] : memref<128x256xf32, #tpu.memory_space<vmem>>, vector<128x256xf32>
    %cst_20 = arith.constant 9.99999968E-21 : f32
    %26 = vector.broadcast %cst_20 : f32 to vector<128x256xf32>
    %27 = arith.addf %25, %26 : vector<128x256xf32>
    %28 = math.log %27 : vector<128x256xf32>
    %cst_21 = arith.constant 0.000000e+00 : f32
    %29 = vector.broadcast %cst_21 : f32 to vector<128x256xf32>
    %30 = arith.subf %29, %28 : vector<128x256xf32>
    %cst_22 = arith.constant 9.99999968E-21 : f32
    %31 = vector.broadcast %cst_22 : f32 to vector<128x256xf32>
    %32 = arith.addf %30, %31 : vector<128x256xf32>
    %33 = math.log %32 : vector<128x256xf32>
    %cst_23 = arith.constant 0.000000e+00 : f32
    %34 = vector.broadcast %cst_23 : f32 to vector<128x256xf32>
    %35 = arith.subf %34, %33 : vector<128x256xf32>
    %36 = arith.addf %13, %35 : vector<128x256xf32>
    %cst_24 = arith.constant 2.000000e+00 : f32
    %37 = vector.broadcast %cst_24 : f32 to vector<128x256xf32>
    %38 = arith.mulf %36, %37 : vector<128x256xf32>
    %cst_25 = arith.constant dense<0xFF800000> : vector<128xf32>
    %39 = vector.multi_reduction <maximumf>, %38, %cst_25 [1] : vector<128x256xf32> to vector<128xf32>
    %40 = vector.shape_cast %39 : vector<128xf32> to vector<128x1xf32>
    %41 = vector.broadcast %40 : vector<128x1xf32> to vector<128x256xf32>
    %42 = arith.subf %38, %41 : vector<128x256xf32>
    %43 = math.exp %42 : vector<128x256xf32>
    %cst_26 = arith.constant dense<0.000000e+00> : vector<128x256xf32>
    %44 = tpu.matmul %43, %24, %cst_26 {dimension_numbers = #tpu.dot_dimension_numbers<[1], [0], [0], [1], [0, 0, 1, 1], [], []>} : vector<128x256xf32>, vector<256x256xf32>, vector<128x256xf32> -> vector<128x256xf32>
    %cst_27 = arith.constant 1.000000e-30 : f32
    %45 = vector.broadcast %cst_27 : f32 to vector<128x256xf32>
    %46 = arith.addf %44, %45 : vector<128x256xf32>
    %47 = tpu.reciprocal %46 {approx = true} : vector<128x256xf32> -> vector<128x256xf32>
    %48 = arith.mulf %43, %47 : vector<128x256xf32>
    %cst_28 = arith.constant dense<0xFF800000> : vector<128xf32>
    %49 = vector.multi_reduction <maximumf>, %13, %cst_28 [1] : vector<128x256xf32> to vector<128xf32>
    %50 = vector.shape_cast %49 : vector<128xf32> to vector<128x1xf32>
    %51 = vector.broadcast %50 : vector<128x1xf32> to vector<128x256xf32>
    %52 = arith.subf %13, %51 : vector<128x256xf32>
    %53 = math.exp %52 : vector<128x256xf32>
    %cst_29 = arith.constant dense<0.000000e+00> : vector<128x256xf32>
    %54 = tpu.matmul %53, %24, %cst_29 {dimension_numbers = #tpu.dot_dimension_numbers<[1], [0], [0], [1], [0, 0, 1, 1], [], []>} : vector<128x256xf32>, vector<256x256xf32>, vector<128x256xf32> -> vector<128x256xf32>
    %cst_30 = arith.constant 1.000000e-30 : f32
    %55 = vector.broadcast %cst_30 : f32 to vector<128x256xf32>
    %56 = arith.addf %54, %55 : vector<128x256xf32>
    %57 = tpu.reciprocal %56 {approx = true} : vector<128x256xf32> -> vector<128x256xf32>
    %58 = arith.mulf %53, %57 : vector<128x256xf32>
    %c0_31 = arith.constant 0 : index
    %c0_32 = arith.constant 0 : index
    %59 = vector.load %arg16[%c0_31, %c0_32] : memref<128x256xf32, #tpu.memory_space<vmem>>, vector<128x256xf32>
    tpu.vector_store %arg16[%c0_31, %c0_32], %58 {strides = array<i32>} : memref<128x256xf32, #tpu.memory_space<vmem>>, vector<128x256xf32>,
    %c0_33 = arith.constant 0 : index
    %c0_34 = arith.constant 0 : index
    %60 = vector.load %arg9[%c0_33, %c0_34] : memref<8x64xf32, #tpu.memory_space<vmem>>, vector<8x64xf32>
    %cst_35 = arith.constant dense<0.000000e+00> : vector<128x64xf32>
    %61 = tpu.matmul %23, %60, %cst_35 {dimension_numbers = #tpu.dot_dimension_numbers<[1], [0], [0], [1], [0, 0, 1, 1], [], []>} : vector<128x8xf32>, vector<8x64xf32>, vector<128x64xf32> -> vector<128x64xf32>
    %c0_36 = arith.constant 0 : index
    %c0_37 = arith.constant 0 : index
    %62 = vector.load %arg10[%c0_36, %c0_37] : memref<256x64xf32, #tpu.memory_space<vmem>>, vector<256x64xf32>
    %cst_38 = arith.constant dense<0.000000e+00> : vector<128x64xf32>
    %63 = tpu.matmul %48, %62, %cst_38 {dimension_numbers = #tpu.dot_dimension_numbers<[1], [0], [0], [1], [0, 0, 1, 1], [], []>} : vector<128x256xf32>, vector<256x64xf32>, vector<128x64xf32> -> vector<128x64xf32>
    %64 = arith.addf %61, %63 : vector<128x64xf32>
    %c0_39 = arith.constant 0 : index
    %c0_40 = arith.constant 0 : index
    %65 = vector.load %arg11[%c0_39, %c0_40] : memref<1x64xf32, #tpu.memory_space<vmem>>, vector<1x64xf32>
    %66 = vector.broadcast %65 : vector<1x64xf32> to vector<128x64xf32>
    %67 = arith.addf %64, %66 : vector<128x64xf32>
    %cst_41 = arith.constant 0.000000e+00 : f32
    %68 = vector.broadcast %cst_41 : f32 to vector<128x64xf32>
    %69 = arith.maximumf %67, %68 : vector<128x64xf32>
    %c0_42 = arith.constant 0 : index
    %c0_43 = arith.constant 0 : index
    %70 = vector.load %arg12[%c0_42, %c0_43] : memref<64x36xf32, #tpu.memory_space<vmem>>, vector<64x36xf32>
    %cst_44 = arith.constant dense<0.000000e+00> : vector<128x36xf32>
    %71 = tpu.matmul %69, %70, %cst_44 {dimension_numbers = #tpu.dot_dimension_numbers<[1], [0], [0], [1], [0, 0, 1, 1], [], []>} : vector<128x64xf32>, vector<64x36xf32>, vector<128x36xf32> -> vector<128x36xf32>
    %c0_45 = arith.constant 0 : index
    %c0_46 = arith.constant 0 : index
    %72 = vector.load %arg13[%c0_45, %c0_46] : memref<1x36xf32, #tpu.memory_space<vmem>>, vector<1x36xf32>
    %73 = vector.broadcast %72 : vector<1x36xf32> to vector<128x36xf32>
    %74 = arith.addf %71, %73 : vector<128x36xf32>
    %75 = arith.negf %74 : vector<128x36xf32>
    %76 = math.exp %75 : vector<128x36xf32>
    %cst_47 = arith.constant 1.000000e+00 : f32
    %77 = vector.broadcast %cst_47 : f32 to vector<128x36xf32>
    %78 = arith.addf %77, %76 : vector<128x36xf32>
    %79 = arith.divf %77, %78 : vector<128x36xf32>
    %c0_48 = arith.constant 0 : index
    %c0_49 = arith.constant 0 : index
    %80 = vector.load %arg14[%c0_48, %c0_49] : memref<128x36xf32, #tpu.memory_space<vmem>>, vector<128x36xf32>
    tpu.vector_store %arg14[%c0_48, %c0_49], %79 {strides = array<i32>} : memref<128x36xf32, #tpu.memory_space<vmem>>, vector<128x36xf32>,
    return
  }
  func.func @transform_0(%arg0: i32) -> (i32, i32) {
    %c0_i32 = arith.constant 0 : i32
    %c0_i32_0 = arith.constant 0 : i32
    return %arg0, %c0_i32 : i32, i32
  }
  func.func @transform_1(%arg0: i32) -> (i32, i32) {
    %c0_i32 = arith.constant 0 : i32
    %c0_i32_0 = arith.constant 0 : i32
    return %arg0, %c0_i32 : i32, i32
  }
  func.func @transform_2(%arg0: i32) -> (i32, i32) {
    %c0_i32 = arith.constant 0 : i32
    %c0_i32_0 = arith.constant 0 : i32
    return %arg0, %c0_i32 : i32, i32
  }
  func.func @transform_3(%arg0: i32) -> (i32, i32) {
    %c0_i32 = arith.constant 0 : i32
    %c0_i32_0 = arith.constant 0 : i32
    %c0_i32_1 = arith.constant 0 : i32
    return %c0_i32, %c0_i32_0 : i32, i32
  }
  func.func @transform_4(%arg0: i32) -> (i32, i32) {
    %c0_i32 = arith.constant 0 : i32
    %c0_i32_0 = arith.constant 0 : i32
    %c0_i32_1 = arith.constant 0 : i32
    return %c0_i32, %c0_i32_0 : i32, i32
  }
  func.func @transform_5(%arg0: i32) -> (i32, i32) {
    %c0_i32 = arith.constant 0 : i32
    %c0_i32_0 = arith.constant 0 : i32
    %c0_i32_1 = arith.constant 0 : i32
    return %c0_i32, %c0_i32_0 : i32, i32
  }
  func.func @transform_6(%arg0: i32) -> (i32, i32) {
    %c0_i32 = arith.constant 0 : i32
    %c0_i32_0 = arith.constant 0 : i32
    %c0_i32_1 = arith.constant 0 : i32
    return %c0_i32, %c0_i32_0 : i32, i32
  }
  func.func @transform_7(%arg0: i32) -> (i32, i32) {
    %c0_i32 = arith.constant 0 : i32
    %c0_i32_0 = arith.constant 0 : i32
    %c0_i32_1 = arith.constant 0 : i32
    return %c0_i32, %c0_i32_0 : i32, i32
  }
  func.func @transform_8(%arg0: i32) -> (i32, i32) {
    %c0_i32 = arith.constant 0 : i32
    %c0_i32_0 = arith.constant 0 : i32
    %c0_i32_1 = arith.constant 0 : i32
    return %c0_i32, %c0_i32_0 : i32, i32
  }
  func.func @transform_9(%arg0: i32) -> (i32, i32) {
    %c0_i32 = arith.constant 0 : i32
    %c0_i32_0 = arith.constant 0 : i32
    %c0_i32_1 = arith.constant 0 : i32
    return %c0_i32, %c0_i32_0 : i32, i32
  }
  func.func @transform_10(%arg0: i32) -> (i32, i32) {
    %c0_i32 = arith.constant 0 : i32
    %c0_i32_0 = arith.constant 0 : i32
    %c0_i32_1 = arith.constant 0 : i32
    return %c0_i32, %c0_i32_0 : i32, i32
  }
  func.func @transform_11(%arg0: i32) -> (i32, i32) {
    %c0_i32 = arith.constant 0 : i32
    %c0_i32_0 = arith.constant 0 : i32
    %c0_i32_1 = arith.constant 0 : i32
    return %c0_i32, %c0_i32_0 : i32, i32
  }
  func.func @transform_12(%arg0: i32) -> (i32, i32) {
    %c0_i32 = arith.constant 0 : i32
    %c0_i32_0 = arith.constant 0 : i32
    %c0_i32_1 = arith.constant 0 : i32
    return %c0_i32, %c0_i32_0 : i32, i32
  }
  func.func @transform_13(%arg0: i32) -> (i32, i32) {
    %c0_i32 = arith.constant 0 : i32
    %c0_i32_0 = arith.constant 0 : i32
    return %arg0, %c0_i32 : i32, i32
  }
  func.func @transform_14(%arg0: i32) -> (i32, i32) {
    %c0_i32 = arith.constant 0 : i32
    %c0_i32_0 = arith.constant 0 : i32
    return %arg0, %c0_i32 : i32, i32
  }
  func.func @transform_15(%arg0: i32) -> (i32, i32) {
    %c0_i32 = arith.constant 0 : i32
    %c0_i32_0 = arith.constant 0 : i32
    return %arg0, %c0_i32 : i32, i32
  }
}

</mosaic_0001>

<llo_original>
// kernel: tpu_custom_call.1
$region0: #{tpu_custom_call.1}
  #allocation0 [shape = 'u32[]', space=smem, size = 0x4, offset = 0x4, fixed_abs, tag = 'smem constant byte address 0x4 - core index']
  #allocation1 [shape = 'u32[144,128]{1,0:T(1,128)}', space=vmem, size = 0x12000, scoped, tag = 'internal scratch']
  %s0 = inlined_call_operand.vmem [shape: f32[256,36], index: 0, kind: input, shape index: {}]
  %s1 = inlined_call_operand.vmem [shape: f32[256,8], index: 1, kind: input, shape index: {}]
  %s2 = inlined_call_operand.vmem [shape: f32[256,256], index: 2, kind: input, shape index: {}]
  %s3 = inlined_call_operand.vmem [shape: f32[36,32], index: 3, kind: input, shape index: {}]
  %s4 = inlined_call_operand.hbm [shape: f32[1,32], index: 4, kind: input, shape index: {}]
  %s5 = inlined_call_operand.hbm [shape: f32[32,272], index: 5, kind: input, shape index: {}]
  %s6 = inlined_call_operand.hbm [shape: f32[1,272], index: 6, kind: input, shape index: {}]
  %s7 = inlined_call_operand.vmem [shape: f32[256,256], index: 7, kind: input, shape index: {}]
  %s8 = inlined_call_operand.vmem [shape: f32[8,64], index: 8, kind: input, shape index: {}]
  %s9 = inlined_call_operand.vmem [shape: f32[256,64], index: 9, kind: input, shape index: {}]
  %s10 = inlined_call_operand.vmem [shape: f32[1,64], index: 10, kind: input, shape index: {}]
  %s11 = inlined_call_operand.vmem [shape: f32[64,36], index: 11, kind: input, shape index: {}]
  %s12 = inlined_call_operand.vmem [shape: f32[1,36], index: 12, kind: input, shape index: {}]
  %s13 = inlined_call_operand.vmem [shape: f32[256,36], index: 13, kind: output, shape index: {0}]
  %s14 = inlined_call_operand.vmem [shape: f32[256,16], index: 14, kind: output, shape index: {1}]
  %s15 = inlined_call_operand.hbm [shape: f32[256,256], index: 15, kind: output, shape index: {2}]
  %16 = xla_tuple %s13, %s14, %s15
  %s17 = sld [smem:[#allocation0]]
  $region113: #{tpu_custom_call.1} parent=0
    _
  %s19 = ssub.s32 1, %s17
  %s20 = scalar_select 0, %s19, %s17
  $region1: #{tpu_custom_call.1} parent=0
    #allocation2 [shape = 'u8[512]{0}', space=vmem, size = 0x400, scoped, tag = 'input window, operand 4, single buffered']
    #allocation3 [shape = 's32[2]{0}', space=sflag, size = 0x8, scoped, tag = 'scoped memory for tpu_custom_call.1']
    #allocation4 [shape = 's32[2]{0}', space=sflag, size = 0x8, scoped, tag = 'scoped memory for tpu_custom_call.1']
    #allocation5 [shape = 'u8[49152]{0}', space=vmem, size = 0xc000, scoped, tag = 'input window, operand 5, single buffered']
    #allocation6 [shape = 's32[1]{0}', space=sflag, size = 0x4, scoped, tag = 'scoped memory for tpu_custom_call.1']
    #allocation7 [shape = 'u8[1536]{0}', space=vmem, size = 0x800, scoped, tag = 'input window, operand 6, single buffered']
    #allocation8 [shape = 'u8[262144]{0}', space=vmem, size = 0x40000, scoped, tag = 'output window, operand 2']
    %21 = vsyncpa [#allocation3], 0
    %22 = vsyncpa [#allocation6], 0
    %23 = vsyncpa [#allocation4], 0
    %s24 = scalar_lea.sflag [#allocation4], 1
    %25 = vsyncpa %s24, 0
    loop: start=0, step=1, limit=4
    $region2: #{tpu_custom_call.1} parent=1 // loop_pre_header
      _
    $region3: #{tpu_custom_call.1} parent=1 // loop_header
      %s27 = sphi 0, %s31
      %p28 = scmp.ge.s32.totalorder %s27, 4
      %s37 = sphi 0, %s39
      %s40 = sphi 0, %s37
      %s41 = sphi 0, %s40
      %s57 = sphi 0, %s41
      %s63 = sphi 0, %s65
      %s66 = sphi 0, %s63
      %s67 = sphi 0, %s66
      %s83 = sphi 0, %s67
      %s89 = sphi 0, %s91
      %s92 = sphi 0, %s89
      %s93 = sphi 0, %s92
      %s109 = sphi 0, %s93
      %s113 = sphi 0, %s113
      %s115 = sphi 0, %s113
      %s116 = sphi 0, %s115
      %s130 = sphi 0, %s116
      %s134 = sphi 0, %s134
      %s136 = sphi 0, %s134
      %s137 = sphi 0, %s136
      %s151 = sphi 0, %s137
      %s155 = sphi 0, %s155
      %s157 = sphi 0, %s155
      %s158 = sphi 0, %s157
      %s172 = sphi 0, %s158
      %s176 = sphi 0, %s176
      %s178 = sphi 0, %s176
      %s179 = sphi 0, %s178
      %s193 = sphi 0, %s179
      %s197 = sphi 0, %s197
      %s199 = sphi 0, %s197
      %s200 = sphi 0, %s199
      %s214 = sphi 0, %s200
      %s218 = sphi 0, %s218
      %s220 = sphi 0, %s218
      %s221 = sphi 0, %s220
      %s235 = sphi 0, %s221
      %s239 = sphi 0, %s239
      %s241 = sphi 0, %s239
      %s242 = sphi 0, %s241
      %s256 = sphi 0, %s242
      %s260 = sphi 0, %s260
      %s262 = sphi 0, %s260
      %s263 = sphi 0, %s262
      %s277 = sphi 0, %s263
      %s281 = sphi 0, %s281
      %s283 = sphi 0, %s281
      %s284 = sphi 0, %s283
      %s298 = sphi 0, %s284
      %s302 = sphi 0, %s302
      %s304 = sphi 0, %s302
      %s305 = sphi 0, %s304
      %s319 = sphi 0, %s305
      %s325 = sphi 0, %s327
      %s328 = sphi 0, %s325
      %s329 = sphi 0, %s328
      %s345 = sphi 0, %s329
      %s351 = sphi 0, %s353
      %s354 = sphi 0, %s351
      %s355 = sphi 0, %s354
      %s371 = sphi 0, %s355
      %s377 = sphi 0, %s379
      %s380 = sphi 0, %s377
      %s381 = sphi 0, %s380
      %s397 = sphi 0, %s381
    $region4: #{tpu_custom_call.1} parent=1 // loop_header_branch
      %30 = sbr.rel (%p28) target = $region8
    $region5: #{tpu_custom_call.1} parent=1 // loop_body
      %s32 = ssub.s32 %s27, 1
      %s33 = ssub.s32 %s27, 2
      %s34 = sadd.s32 %s27, 1
      %s35 = ssub.s32 %s27, %s34
      %p36 = scmp.eq.s32.totalorder %s35, 0
      %s38 = sadd.s32 %s37, 1
      %s39 = scalar_select %p36, %s37, %s38
      %p42 = pneg %p36
      %p43 = scmp.eq.s32.totalorder %s27, 1
      %p44 = por %p42, %p43
      %p45 = scmp.ne.s32.totalorder %s37, %s40
      %p46 = scmp.eq.s32.totalorder %s27, 0
      %p47 = por %p45, %p46
      %p48 = scmp.ne.s32.totalorder %s37, %s40
      %p49 = scmp.eq.s32.totalorder %s32, 1
      %p50 = por %p48, %p49
      %p51 = scmp.ne.s32.totalorder %s40, %s41
      %p52 = scmp.eq.s32.totalorder %s32, 0
      %p53 = por %p51, %p52
      %p54 = scmp.ne.s32.totalorder %s40, %s41
      %p55 = scmp.eq.s32.totalorder %s33, 1
      %p56 = por %p54, %p55
      %p58 = scmp.ne.s32.totalorder %s41, %s57
      %p59 = scmp.eq.s32.totalorder %s33, 0
      %p60 = por %p58, %p59
      %s61 = ssub.s32 %s27, %s34
      %p62 = scmp.eq.s32.totalorder %s61, 0
      %s64 = sadd.s32 %s63, 1
      %s65 = scalar_select %p62, %s63, %s64
      %p68 = pneg %p62
      %p69 = scmp.eq.s32.totalorder %s27, 1
      %p70 = por %p68, %p69
      %p71 = scmp.ne.s32.totalorder %s63, %s66
      %p72 = scmp.eq.s32.totalorder %s27, 0
      %p73 = por %p71, %p72
      %p74 = scmp.ne.s32.totalorder %s63, %s66
      %p75 = scmp.eq.s32.totalorder %s32, 1
      %p76 = por %p74, %p75
      %p77 = scmp.ne.s32.totalorder %s66, %s67
      %p78 = scmp.eq.s32.totalorder %s32, 0
      %p79 = por %p77, %p78
      %p80 = scmp.ne.s32.totalorder %s66, %s67
      %p81 = scmp.eq.s32.totalorder %s33, 1
      %p82 = por %p80, %p81
      %p84 = scmp.ne.s32.totalorder %s67, %s83
      %p85 = scmp.eq.s32.totalorder %s33, 0
      %p86 = por %p84, %p85
      %s87 = ssub.s32 %s27, %s34
      %p88 = scmp.eq.s32.totalorder %s87, 0
      %s90 = sadd.s32 %s89, 1
      %s91 = scalar_select %p88, %s89, %s90
      %p94 = pneg %p88
      %p95 = scmp.eq.s32.totalorder %s27, 1
      %p96 = por %p94, %p95
      %p97 = scmp.ne.s32.totalorder %s89, %s92
      %p98 = scmp.eq.s32.totalorder %s27, 0
      %p99 = por %p97, %p98
      %p100 = scmp.ne.s32.totalorder %s89, %s92
      %p101 = scmp.eq.s32.totalorder %s32, 1
      %p102 = por %p100, %p101
      %p103 = scmp.ne.s32.totalorder %s92, %s93
      %p104 = scmp.eq.s32.totalorder %s32, 0
      %p105 = por %p103, %p104
      %p106 = scmp.ne.s32.totalorder %s92, %s93
      %p107 = scmp.eq.s32.totalorder %s33, 1
      %p108 = por %p106, %p107
      %p110 = scmp.ne.s32.totalorder %s93, %s109
      %p111 = scmp.eq.s32.totalorder %s33, 0
      %p112 = por %p110, %p111
      %s114 = sadd.s32 %s113, 1
      %p117 = scmp.eq.s32.totalorder %s27, 1
      %p118 = scmp.ne.s32.totalorder %s113, %s115
      %p119 = scmp.eq.s32.totalorder %s27, 0
      %p120 = por %p118, %p119
      %p121 = scmp.ne.s32.totalorder %s113, %s115
      %p122 = scmp.eq.s32.totalorder %s32, 1
      %p123 = por %p121, %p122
      %p124 = scmp.ne.s32.totalorder %s115, %s116
      %p125 = scmp.eq.s32.totalorder %s32, 0
      %p126 = por %p124, %p125
      %p127 = scmp.ne.s32.totalorder %s115, %s116
      %p128 = scmp.eq.s32.totalorder %s33, 1
      %p129 = por %p127, %p128
      %p131 = scmp.ne.s32.totalorder %s116, %s130
      %p132 = scmp.eq.s32.totalorder %s33, 0
      %p133 = por %p131, %p132
      %s135 = sadd.s32 %s134, 1
      %p138 = scmp.eq.s32.totalorder %s27, 1
      %p139 = scmp.ne.s32.totalorder %s134, %s136
      %p140 = scmp.eq.s32.totalorder %s27, 0
      %p141 = por %p139, %p140
      %p142 = scmp.ne.s32.totalorder %s134, %s136
      %p143 = scmp.eq.s32.totalorder %s32, 1
      %p144 = por %p142, %p143
      %p145 = scmp.ne.s32.totalorder %s136, %s137
      %p146 = scmp.eq.s32.totalorder %s32, 0
      %p147 = por %p145, %p146
      %p148 = scmp.ne.s32.totalorder %s136, %s137
      %p149 = scmp.eq.s32.totalorder %s33, 1
      %p150 = por %p148, %p149
      %p152 = scmp.ne.s32.totalorder %s137, %s151
      %p153 = scmp.eq.s32.totalorder %s33, 0
      %p154 = por %p152, %p153
      %s156 = sadd.s32 %s155, 1
      %p159 = scmp.eq.s32.totalorder %s27, 1
      %p160 = scmp.ne.s32.totalorder %s155, %s157
      %p161 = scmp.eq.s32.totalorder %s27, 0
      %p162 = por %p160, %p161
      %p163 = scmp.ne.s32.totalorder %s155, %s157
      %p164 = scmp.eq.s32.totalorder %s32, 1
      %p165 = por %p163, %p164
      %p166 = scmp.ne.s32.totalorder %s157, %s158
      %p167 = scmp.eq.s32.totalorder %s32, 0
      %p168 = por %p166, %p167
      %p169 = scmp.ne.s32.totalorder %s157, %s158
      %p170 = scmp.eq.s32.totalorder %s33, 1
      %p171 = por %p169, %p170
      %p173 = scmp.ne.s32.totalorder %s158, %s172
      %p174 = scmp.eq.s32.totalorder %s33, 0
      %p175 = por %p173, %p174
      %s177 = sadd.s32 %s176, 1
      %p180 = scmp.eq.s32.totalorder %s27, 1
      %p181 = scmp.ne.s32.totalorder %s176, %s178
      %p182 = scmp.eq.s32.totalorder %s27, 0
      %p183 = por %p181, %p182
      %p184 = scmp.ne.s32.totalorder %s176, %s178
      %p185 = scmp.eq.s32.totalorder %s32, 1
      %p186 = por %p184, %p185
      %p187 = scmp.ne.s32.totalorder %s178, %s179
      %p188 = scmp.eq.s32.totalorder %s32, 0
      %p189 = por %p187, %p188
      %p190 = scmp.ne.s32.totalorder %s178, %s179
      %p191 = scmp.eq.s32.totalorder %s33, 1
      %p192 = por %p190, %p191
      %p194 = scmp.ne.s32.totalorder %s179, %s193
      %p195 = scmp.eq.s32.totalorder %s33, 0
      %p196 = por %p194, %p195
      %s198 = sadd.s32 %s197, 1
      %p201 = scmp.eq.s32.totalorder %s27, 1
      %p202 = scmp.ne.s32.totalorder %s197, %s199
      %p203 = scmp.eq.s32.totalorder %s27, 0
      %p204 = por %p202, %p203
      %p205 = scmp.ne.s32.totalorder %s197, %s199
      %p206 = scmp.eq.s32.totalorder %s32, 1
      %p207 = por %p205, %p206
      %p208 = scmp.ne.s32.totalorder %s199, %s200
      %p209 = scmp.eq.s32.totalorder %s32, 0
      %p210 = por %p208, %p209
      %p211 = scmp.ne.s32.totalorder %s199, %s200
      %p212 = scmp.eq.s32.totalorder %s33, 1
      %p213 = por %p211, %p212
      %p215 = scmp.ne.s32.totalorder %s200, %s214
      %p216 = scmp.eq.s32.totalorder %s33, 0
      %p217 = por %p215, %p216
      %s219 = sadd.s32 %s218, 1
      %p222 = scmp.eq.s32.totalorder %s27, 1
      %p223 = scmp.ne.s32.totalorder %s218, %s220
      %p224 = scmp.eq.s32.totalorder %s27, 0
      %p225 = por %p223, %p224
      %p226 = scmp.ne.s32.totalorder %s218, %s220
      %p227 = scmp.eq.s32.totalorder %s32, 1
      %p228 = por %p226, %p227
      %p229 = scmp.ne.s32.totalorder %s220, %s221
      %p230 = scmp.eq.s32.totalorder %s32, 0
      %p231 = por %p229, %p230
      %p232 = scmp.ne.s32.totalorder %s220, %s221
      %p233 = scmp.eq.s32.totalorder %s33, 1
      %p234 = por %p232, %p233
      %p236 = scmp.ne.s32.totalorder %s221, %s235
      %p237 = scmp.eq.s32.totalorder %s33, 0
      %p238 = por %p236, %p237
      %s240 = sadd.s32 %s239, 1
      %p243 = scmp.eq.s32.totalorder %s27, 1
      %p244 = scmp.ne.s32.totalorder %s239, %s241
      %p245 = scmp.eq.s32.totalorder %s27, 0
      %p246 = por %p244, %p245
      %p247 = scmp.ne.s32.totalorder %s239, %s241
      %p248 = scmp.eq.s32.totalorder %s32, 1
      %p249 = por %p247, %p248
      %p250 = scmp.ne.s32.totalorder %s241, %s242
      %p251 = scmp.eq.s32.totalorder %s32, 0
      %p252 = por %p250, %p251
      %p253 = scmp.ne.s32.totalorder %s241, %s242
      %p254 = scmp.eq.s32.totalorder %s33, 1
      %p255 = por %p253, %p254
      %p257 = scmp.ne.s32.totalorder %s242, %s256
      %p258 = scmp.eq.s32.totalorder %s33, 0
      %p259 = por %p257, %p258
      %s261 = sadd.s32 %s260, 1
      %p264 = scmp.eq.s32.totalorder %s27, 1
      %p265 = scmp.ne.s32.totalorder %s260, %s262
      %p266 = scmp.eq.s32.totalorder %s27, 0
      %p267 = por %p265, %p266
      %p268 = scmp.ne.s32.totalorder %s260, %s262
      %p269 = scmp.eq.s32.totalorder %s32, 1
      %p270 = por %p268, %p269
      %p271 = scmp.ne.s32.totalorder %s262, %s263
      %p272 = scmp.eq.s32.totalorder %s32, 0
      %p273 = por %p271, %p272
      %p274 = scmp.ne.s32.totalorder %s262, %s263
      %p275 = scmp.eq.s32.totalorder %s33, 1
      %p276 = por %p274, %p275
      %p278 = scmp.ne.s32.totalorder %s263, %s277
      %p279 = scmp.eq.s32.totalorder %s33, 0
      %p280 = por %p278, %p279
      %s282 = sadd.s32 %s281, 1
      %p285 = scmp.eq.s32.totalorder %s27, 1
      %p286 = scmp.ne.s32.totalorder %s281, %s283
      %p287 = scmp.eq.s32.totalorder %s27, 0
      %p288 = por %p286, %p287
      %p289 = scmp.ne.s32.totalorder %s281, %s283
      %p290 = scmp.eq.s32.totalorder %s32, 1
      %p291 = por %p289, %p290
      %p292 = scmp.ne.s32.totalorder %s283, %s284
      %p293 = scmp.eq.s32.totalorder %s32, 0
      %p294 = por %p292, %p293
      %p295 = scmp.ne.s32.totalorder %s283, %s284
      %p296 = scmp.eq.s32.totalorder %s33, 1
      %p297 = por %p295, %p296
      %p299 = scmp.ne.s32.totalorder %s284, %s298
      %p300 = scmp.eq.s32.totalorder %s33, 0
      %p301 = por %p299, %p300
      %s303 = sadd.s32 %s302, 1
      %p306 = scmp.eq.s32.totalorder %s27, 1
      %p307 = scmp.ne.s32.totalorder %s302, %s304
      %p308 = scmp.eq.s32.totalorder %s27, 0
      %p309 = por %p307, %p308
      %p310 = scmp.ne.s32.totalorder %s302, %s304
      %p311 = scmp.eq.s32.totalorder %s32, 1
      %p312 = por %p310, %p311
      %p313 = scmp.ne.s32.totalorder %s304, %s305
      %p314 = scmp.eq.s32.totalorder %s32, 0
      %p315 = por %p313, %p314
      %p316 = scmp.ne.s32.totalorder %s304, %s305
      %p317 = scmp.eq.s32.totalorder %s33, 1
      %p318 = por %p316, %p317
      %p320 = scmp.ne.s32.totalorder %s305, %s319
      %p321 = scmp.eq.s32.totalorder %s33, 0
      %p322 = por %p320, %p321
      %s323 = ssub.s32 %s27, %s34
      %p324 = scmp.eq.s32.totalorder %s323, 0
      %s326 = sadd.s32 %s325, 1
      %s327 = scalar_select %p324, %s325, %s326
      %p330 = pneg %p324
      %p331 = scmp.eq.s32.totalorder %s27, 1
      %p332 = por %p330, %p331
      %p333 = scmp.ne.s32.totalorder %s325, %s328
      %p334 = scmp.eq.s32.totalorder %s27, 0
      %p335 = por %p333, %p334
      %p336 = scmp.ne.s32.totalorder %s325, %s328
      %p337 = scmp.eq.s32.totalorder %s32, 1
      %p338 = por %p336, %p337
      %p339 = scmp.ne.s32.totalorder %s328, %s329
      %p340 = scmp.eq.s32.totalorder %s32, 0
      %p341 = por %p339, %p340
      %p342 = scmp.ne.s32.totalorder %s328, %s329
      %p343 = scmp.eq.s32.totalorder %s33, 1
      %p344 = por %p342, %p343
      %p346 = scmp.ne.s32.totalorder %s329, %s345
      %p347 = scmp.eq.s32.totalorder %s33, 0
      %p348 = por %p346, %p347
      %s349 = ssub.s32 %s27, %s34
      %p350 = scmp.eq.s32.totalorder %s349, 0
      %s352 = sadd.s32 %s351, 1
      %s353 = scalar_select %p350, %s351, %s352
      %p356 = pneg %p350
      %p357 = scmp.eq.s32.totalorder %s27, 1
      %p358 = por %p356, %p357
      %p359 = scmp.ne.s32.totalorder %s351, %s354
      %p360 = scmp.eq.s32.totalorder %s27, 0
      %p361 = por %p359, %p360
      %p362 = scmp.ne.s32.totalorder %s351, %s354
      %p363 = scmp.eq.s32.totalorder %s32, 1
      %p364 = por %p362, %p363
      %p365 = scmp.ne.s32.totalorder %s354, %s355
      %p366 = scmp.eq.s32.totalorder %s32, 0
      %p367 = por %p365, %p366
      %p368 = scmp.ne.s32.totalorder %s354, %s355
      %p369 = scmp.eq.s32.totalorder %s33, 1
      %p370 = por %p368, %p369
      %p372 = scmp.ne.s32.totalorder %s355, %s371
      %p373 = scmp.eq.s32.totalorder %s33, 0
      %p374 = por %p372, %p373
      %s375 = ssub.s32 %s27, %s34
      %p376 = scmp.eq.s32.totalorder %s375, 0
      %s378 = sadd.s32 %s377, 1
      %s379 = scalar_select %p376, %s377, %s378
      %p382 = pneg %p376
      %p383 = scmp.eq.s32.totalorder %s27, 1
      %p384 = por %p382, %p383
      %p385 = scmp.ne.s32.totalorder %s377, %s380
      %p386 = scmp.eq.s32.totalorder %s27, 0
      %p387 = por %p385, %p386
      %p388 = scmp.ne.s32.totalorder %s377, %s380
      %p389 = scmp.eq.s32.totalorder %s32, 1
      %p390 = por %p388, %p389
      %p391 = scmp.ne.s32.totalorder %s380, %s381
      %p392 = scmp.eq.s32.totalorder %s32, 0
      %p393 = por %p391, %p392
      %p394 = scmp.ne.s32.totalorder %s380, %s381
      %p395 = scmp.eq.s32.totalorder %s33, 1
      %p396 = por %p394, %p395
      %p398 = scmp.ne.s32.totalorder %s381, %s397
      %p399 = scmp.eq.s32.totalorder %s33, 0
      %p400 = por %p398, %p399
      %p401 = scmp.le.s32.totalorder 1, %s27
      %p402 = scmp.lt.s32.totalorder %s27, 3
      %p403 = pnand %p401, %p402
      %p404 = pneg %p403
      // Predicated region
      $region9: #{tpu_custom_call.1} parent=5 // pred_check
        _
      $region10: #{tpu_custom_call.1} parent=5 // pred_check_branch
        %406 = sbr.rel (%p403) target = $region12
      $region11: #{tpu_custom_call.1} parent=5 // pred_region
        %s407 = ssub.s32 %s27, 1
        // Predicated region
        $region13: #{tpu_custom_call.1} parent=11 // pred_check
          %p408 = pneg %p126
        $region14: #{tpu_custom_call.1} parent=11 // pred_check_branch
          %410 = sbr.rel (%p408) target = $region16
        $region15: #{tpu_custom_call.1} parent=11 // pred_region
          _
        $region16: #{tpu_custom_call.1} parent=11 // pred_fallthru
          _
        // Predicated region
        $region17: #{tpu_custom_call.1} parent=11 // pred_check
          %p411 = pneg %p147
        $region18: #{tpu_custom_call.1} parent=11 // pred_check_branch
          %413 = sbr.rel (%p411) target = $region20
        $region19: #{tpu_custom_call.1} parent=11 // pred_region
          %s415 = ssub.s32 16, 16
          %416 = vsyncadd [#allocation3], %s415
          %s418 = sshll.u32 [#allocation2], 4
          %s419 = int_to_ptr.vmem [resolvable:$true] %s418
          %421 = dma.hbm_to_vmem [thread:$0]  %s4, 16, %s419, [#allocation3]
        $region20: #{tpu_custom_call.1} parent=11 // pred_fallthru
          _
        // Predicated region
        $region21: #{tpu_custom_call.1} parent=11 // pred_check
          %p422 = pneg %p168
        $region22: #{tpu_custom_call.1} parent=11 // pred_check_branch
          %424 = sbr.rel (%p422) target = $region24
        $region23: #{tpu_custom_call.1} parent=11 // pred_region
          %s426 = ssub.s32 1536, 1536
          %427 = vsyncadd [#allocation6], %s426
          %s428 = sshll.u32 [#allocation5], 4
          %s429 = int_to_ptr.vmem [resolvable:$true] %s428
          %434 = dma.hbm_to_vmem [thread:$0]  %s5, 1536, %s429, [#allocation6], 384, 384, 24
        $region24: #{tpu_custom_call.1} parent=11 // pred_fallthru
          _
        // Predicated region
        $region25: #{tpu_custom_call.1} parent=11 // pred_check
          %p435 = pneg %p189
        $region26: #{tpu_custom_call.1} parent=11 // pred_check_branch
          %437 = sbr.rel (%p435) target = $region28
        $region27: #{tpu_custom_call.1} parent=11 // pred_region
          %s439 = ssub.s32 48, 48
          %440 = vsyncadd [#allocation6], %s439
          %s442 = sshll.u32 [#allocation7], 4
          %s443 = int_to_ptr.vmem [resolvable:$true] %s442
          %445 = dma.hbm_to_vmem [thread:$0]  %s6, 48, %s443, [#allocation6]
        $region28: #{tpu_custom_call.1} parent=11 // pred_fallthru
          _
        // Predicated region
        $region29: #{tpu_custom_call.1} parent=11 // pred_check
          %p446 = pneg %p210
        $region30: #{tpu_custom_call.1} parent=11 // pred_check_branch
          %448 = sbr.rel (%p446) target = $region32
        $region31: #{tpu_custom_call.1} parent=11 // pred_region
          _
        $region32: #{tpu_custom_call.1} parent=11 // pred_fallthru
          _
        // Predicated region
        $region33: #{tpu_custom_call.1} parent=11 // pred_check
          %p449 = pneg %p231
        $region34: #{tpu_custom_call.1} parent=11 // pred_check_branch
          %451 = sbr.rel (%p449) target = $region36
        $region35: #{tpu_custom_call.1} parent=11 // pred_region
          _
        $region36: #{tpu_custom_call.1} parent=11 // pred_fallthru
          _
        // Predicated region
        $region37: #{tpu_custom_call.1} parent=11 // pred_check
          %p452 = pneg %p252
        $region38: #{tpu_custom_call.1} parent=11 // pred_check_branch
          %454 = sbr.rel (%p452) target = $region40
        $region39: #{tpu_custom_call.1} parent=11 // pred_region
          _
        $region40: #{tpu_custom_call.1} parent=11 // pred_fallthru
          _
        // Predicated region
        $region41: #{tpu_custom_call.1} parent=11 // pred_check
          %p455 = pneg %p273
        $region42: #{tpu_custom_call.1} parent=11 // pred_check_branch
          %457 = sbr.rel (%p455) target = $region44
        $region43: #{tpu_custom_call.1} parent=11 // pred_region
          _
        $region44: #{tpu_custom_call.1} parent=11 // pred_fallthru
          _
        // Predicated region
        $region45: #{tpu_custom_call.1} parent=11 // pred_check
          %p458 = pneg %p294
        $region46: #{tpu_custom_call.1} parent=11 // pred_check_branch
          %460 = sbr.rel (%p458) target = $region48
        $region47: #{tpu_custom_call.1} parent=11 // pred_region
          _
        $region48: #{tpu_custom_call.1} parent=11 // pred_fallthru
          _
        // Predicated region
        $region49: #{tpu_custom_call.1} parent=11 // pred_check
          %p461 = pneg %p315
        $region50: #{tpu_custom_call.1} parent=11 // pred_check_branch
          %463 = sbr.rel (%p461) target = $region52
        $region51: #{tpu_custom_call.1} parent=11 // pred_region
          _
        $region52: #{tpu_custom_call.1} parent=11 // pred_fallthru
          _
      $region12: #{tpu_custom_call.1} parent=5 // pred_fallthru
        _
      %p464 = scmp.lt.s32.totalorder %s27, 2
      // Predicated region
      $region53: #{tpu_custom_call.1} parent=5 // pred_check
        %p465 = pneg %p464
      $region54: #{tpu_custom_call.1} parent=5 // pred_check_branch
        %467 = sbr.rel (%p465) target = $region56
      $region55: #{tpu_custom_call.1} parent=5 // pred_region
        // Predicated region
        $region57: #{tpu_custom_call.1} parent=55 // pred_check
          %p468 = pneg %p47
        $region58: #{tpu_custom_call.1} parent=55 // pred_check_branch
          %470 = sbr.rel (%p468) target = $region60
        $region59: #{tpu_custom_call.1} parent=55 // pred_region
          %s471 = smul.u32 16, %s27
          %p472 = scmp.lt.s32.totalorder %s471, 31
          %s473 = scalar_select %p472, %s471, 31
          %s474 = smul.addr %s473, 8
          %s475 = scalar_lea.vmem %s0, %s474
          %s476 = smul.u32 16, %s27
        $region60: #{tpu_custom_call.1} parent=55 // pred_fallthru
          _
        // Predicated region
        $region61: #{tpu_custom_call.1} parent=55 // pred_check
          %p477 = pneg %p73
        $region62: #{tpu_custom_call.1} parent=55 // pred_check_branch
          %479 = sbr.rel (%p477) target = $region64
        $region63: #{tpu_custom_call.1} parent=55 // pred_region
          %s480 = smul.u32 16, %s27
          %p481 = scmp.lt.s32.totalorder %s480, 31
          %s482 = scalar_select %p481, %s480, 31
          %s483 = smul.addr %s482, 8
          %s484 = scalar_lea.vmem %s1, %s483
          %s485 = smul.u32 16, %s27
        $region64: #{tpu_custom_call.1} parent=55 // pred_fallthru
          _
        // Predicated region
        $region65: #{tpu_custom_call.1} parent=55 // pred_check
          %p486 = pneg %p99
        $region66: #{tpu_custom_call.1} parent=55 // pred_check_branch
          %488 = sbr.rel (%p486) target = $region68
        $region67: #{tpu_custom_call.1} parent=55 // pred_region
          %s489 = smul.u32 16, %s27
          %p490 = scmp.lt.s32.totalorder %s489, 31
          %s491 = scalar_select %p490, %s489, 31
          %s492 = smul.addr %s491, 2
          %s493 = smul.addr %s492, 8
          %s494 = scalar_lea.vmem %s2, %s493
          %s495 = smul.u32 16, %s27
        $region68: #{tpu_custom_call.1} parent=55 // pred_fallthru
          _
      $region56: #{tpu_custom_call.1} parent=5 // pred_fallthru
        _
      %p496 = scmp.le.s32.totalorder 1, %s27
      %p497 = scmp.lt.s32.totalorder %s27, 3
      %p498 = pnand %p496, %p497
      %p499 = pneg %p498
      // Predicated region
      $region69: #{tpu_custom_call.1} parent=5 // pred_check
        _
      $region70: #{tpu_custom_call.1} parent=5 // pred_check_branch
        %501 = sbr.rel (%p498) target = $region72
      $region71: #{tpu_custom_call.1} parent=5 // pred_region
        %s502 = ssub.s32 %s27, 1
        // Predicated region
        $region73: #{tpu_custom_call.1} parent=71 // pred_check
          %p503 = pneg %p147
        $region74: #{tpu_custom_call.1} parent=71 // pred_check_branch
          %505 = sbr.rel (%p503) target = $region76
        $region75: #{tpu_custom_call.1} parent=71 // pred_region
          %506 = dma.done [#allocation3], 16
        $region76: #{tpu_custom_call.1} parent=71 // pred_fallthru
          _
        // Predicated region
        $region77: #{tpu_custom_call.1} parent=71 // pred_check
          %p507 = pneg %p168
        $region78: #{tpu_custom_call.1} parent=71 // pred_check_branch
          %509 = sbr.rel (%p507) target = $region80
        $region79: #{tpu_custom_call.1} parent=71 // pred_region
          %510 = dma.done [#allocation6], 1536
        $region80: #{tpu_custom_call.1} parent=71 // pred_fallthru
          _
        // Predicated region
        $region81: #{tpu_custom_call.1} parent=71 // pred_check
          %p511 = pneg %p189
        $region82: #{tpu_custom_call.1} parent=71 // pred_check_branch
          %513 = sbr.rel (%p511) target = $region84
        $region83: #{tpu_custom_call.1} parent=71 // pred_region
          %514 = dma.done [#allocation6], 48
        $region84: #{tpu_custom_call.1} parent=71 // pred_fallthru
          _
        %s515 = smul.u32 16, %s32
        %p516 = scmp.lt.s32.totalorder %s515, 31
        %s517 = scalar_select %p516, %s515, 31
        %s518 = smul.addr %s517, 8
        %s519 = scalar_lea.vmem %s0, %s518
        %p520 = pneg %p53
        %p521 = pneg %p50
        %s522 = smul.u32 16, %s32
        %p523 = scmp.lt.s32.totalorder %s522, 31
        %s524 = scalar_select %p523, %s522, 31
        %s525 = smul.addr %s524, 8
        %s526 = scalar_lea.vmem %s1, %s525
        %p527 = pneg %p79
        %p528 = pneg %p76
        %s529 = smul.u32 16, %s32
        %p530 = scmp.lt.s32.totalorder %s529, 31
        %s531 = scalar_select %p530, %s529, 31
        %s532 = smul.addr %s531, 2
        %s533 = smul.addr %s532, 8
        %s534 = scalar_lea.vmem %s2, %s533
        %p535 = pneg %p105
        %p536 = pneg %p102
        %p537 = pneg %p126
        %p538 = pneg %p123
        %p539 = pneg %p147
        %p540 = pneg %p144
        %p541 = pneg %p168
        %p542 = pneg %p165
        %p543 = pneg %p189
        %p544 = pneg %p186
        %p545 = pneg %p210
        %p546 = pneg %p207
        %p547 = pneg %p231
        %p548 = pneg %p228
        %p549 = pneg %p252
        %p550 = pneg %p249
        %p551 = pneg %p273
        %p552 = pneg %p270
        %p553 = pneg %p294
        %p554 = pneg %p291
        %p555 = pneg %p315
        %p556 = pneg %p312
        %p557 = pneg %p341
        %p558 = pneg %p338
        %s559 = smul.u32 16, %s32
        %p560 = scmp.lt.s32.totalorder %s559, 31
        %s561 = scalar_select %p560, %s559, 31
        %s562 = smul.addr %s561, 8
        %s563 = scalar_lea.vmem %s13, %s562
        %p564 = pneg %p367
        %p565 = pneg %p364
        %s566 = smul.u32 16, %s32
        %p567 = scmp.lt.s32.totalorder %s566, 31
        %s568 = scalar_select %p567, %s566, 31
        %s569 = smul.addr %s568, 8
        %s570 = scalar_lea.vmem %s14, %s569
        %p571 = pneg %p393
        %p572 = pneg %p390
        %s573 = sand.u32 %s380, 1
        %s574 = scalar_lea.sflag [#allocation4], %s573
        %s575 = sand.u32 %s380, 1
        %s576 = smul.addr %s575, 256
        %s577 = scalar_lea.vmem [#allocation8], %s576
        %s578 = smul.u32 16, %s32
        %p579 = scmp.lt.s32.totalorder %s578, 31
        %s580 = scalar_select %p579, %s578, 31
        %s581 = smul.addr %s580, 8
        %s582 = scalar_lea.vmem %s0, %s581
        %s583 = smul.u32 16, %s32
        %s584 = smul.u32 16, %s32
        %p585 = scmp.lt.s32.totalorder %s584, 31
        %s586 = scalar_select %p585, %s584, 31
        %s587 = smul.addr %s586, 8
        %s588 = scalar_lea.vmem %s1, %s587
        %s589 = smul.u32 16, %s32
        %s590 = smul.u32 16, %s32
        %p591 = scmp.lt.s32.totalorder %s590, 31
        %s592 = scalar_select %p591, %s590, 31
        %s593 = smul.addr %s592, 2
        %s594 = smul.addr %s593, 8
        %s595 = scalar_lea.vmem %s2, %s594
        %s596 = smul.u32 16, %s32
        %s597 = smul.u32 16, %s32
        %p598 = scmp.lt.s32.totalorder %s597, 31
        %s599 = scalar_select %p598, %s597, 31
        %s600 = smul.addr %s599, 8
        %s601 = scalar_lea.vmem %s13, %s600
        %s602 = smul.u32 16, %s32
        %s603 = smul.u32 16, %s32
        %p604 = scmp.lt.s32.totalorder %s603, 31
        %s605 = scalar_select %p604, %s603, 31
        %s606 = smul.addr %s605, 8
        %s607 = scalar_lea.vmem %s14, %s606
        %s608 = smul.u32 16, %s32
        %s609 = smul.u32 16, %s32
        %v610 = vld [vmem:[%s582] sm:$0xff]
        %v611 = vld [vmem:[%s582 + $0x8] sm:$0xff]
        %v612 = vld [vmem:[%s582 + $0x10] sm:$0xff]
        %v613 = vld [vmem:[%s582 + $0x18] sm:$0xff]
        %v614 = vld [vmem:[%s582 + $0x20] sm:$0xff]
        %v615 = vld [vmem:[%s582 + $0x28] sm:$0xff]
        %v616 = vld [vmem:[%s582 + $0x30] sm:$0xff]
        %v617 = vld [vmem:[%s582 + $0x38] sm:$0xff]
        %v618 = vld [vmem:[%s582 + $0x40] sm:$0xff]
        %v619 = vld [vmem:[%s582 + $0x48] sm:$0xff]
        %v620 = vld [vmem:[%s582 + $0x50] sm:$0xff]
        %v621 = vld [vmem:[%s582 + $0x58] sm:$0xff]
        %v622 = vld [vmem:[%s582 + $0x60] sm:$0xff]
        %v623 = vld [vmem:[%s582 + $0x68] sm:$0xff]
        %v624 = vld [vmem:[%s582 + $0x70] sm:$0xff]
        %v625 = vld [vmem:[%s582 + $0x78] sm:$0xff]
        %v626 = vld [vmem:[%s3] sm:$0xff]
        %v627 = vld [vmem:[%s3 + $0x8] sm:$0xff]
        %v628 = vld [vmem:[%s3 + $0x10] sm:$0xff]
        %v629 = vld [vmem:[%s3 + $0x18] sm:$0xff]
        %v630 = vld [vmem:[%s3 + $0x20] sm:$0xf]
        %v631 = vld [vmem:[#allocation2] sm:$0x1]
        %v633 = vlaneseq
        %v634 = vshrl.u32 %v633, 7
        %v635 = vsub.s32 0, %v634
        %v636 = vrot.slane %v631, %v635
        %vm638 = vcmask 293888
        %v640 = vsel %vm638, %v610, 0
        %v643 = vsel %vm638, %v611, 0
        %v646 = vsel %vm638, %v612, 0
        %v649 = vsel %vm638, %v613, 0
        %v652 = vsel %vm638, %v614, 0
        %v655 = vsel %vm638, %v615, 0
        %v658 = vsel %vm638, %v616, 0
        %v661 = vsel %vm638, %v617, 0
        %v664 = vsel %vm638, %v618, 0
        %v667 = vsel %vm638, %v619, 0
        %v670 = vsel %vm638, %v620, 0
        %v673 = vsel %vm638, %v621, 0
        %v676 = vsel %vm638, %v622, 0
        %v679 = vsel %vm638, %v623, 0
        %v682 = vsel %vm638, %v624, 0
        %v685 = vsel %vm638, %v625, 0
        %vm687 = vcmask 1043456
        %v689 = vsel %vm687, %v630, 0
        %691 = vmatprep.subr.mxu0 0.0
        %692 = vmatpush1.msra.mxu0 0.0
        %693 = vmatprep.subr.mxu0 0.0
        %694 = vmatpush1.msra.mxu0 0.0
        %695 = vmatprep.subr.mxu0 0.0
        %696 = vmatpush1.msra.mxu0 0.0
        %697 = vmatprep.subr.mxu0 0.0
        %698 = vmatpush1.msra.mxu0 0.0
        %699 = vmatprep.subr.mxu0 0.0
        %700 = vmatpush1.msra.mxu0 0.0
        %701 = vmatprep.subr.mxu0 0.0
        %702 = vmatpush1.msra.mxu0 0.0
        %703 = vmatprep.subr.mxu0 0.0
        %704 = vmatpush1.msra.mxu0 0.0
        %705 = vmatprep.subr.mxu0 0.0
        %706 = vmatpush1.msra.mxu0 0.0
        %707 = vmatprep.subr.mxu0 0.0
        %708 = vmatpush1.msra.mxu0 0.0
        %709 = vmatprep.subr.mxu0 0.0
        %710 = vmatpush1.msra.mxu0 0.0
        %711 = vmatprep.subr.mxu0 0.0
        %712 = vmatpush1.msra.mxu0 0.0
        %713 = vmatprep.subr.mxu0 0.0
        %714 = vmatpush1.msra.mxu0 %v689
        %715 = vmatprep.subr.mxu0 0.0
        %716 = vmatpush1.msra.mxu0 %v629
        %717 = vmatprep.subr.mxu0 0.0
        %718 = vmatpush1.msra.mxu0 %v628
        %719 = vmatprep.subr.mxu0 0.0
        %720 = vmatpush1.msra.mxu0 %v627
        %721 = vmatprep.subr.mxu0 0.0
        %722 = vmatpush1.msra.mxu0 %v626
        %723 = vmatprep.subr.mxu0 0.0
        %724 = vmatpush2.msra.mxu0 0.0
        %725 = vmatprep.subr.mxu0 0.0
        %726 = vmatpush2.msra.mxu0 0.0
        %727 = vmatprep.subr.mxu0 0.0
        %728 = vmatpush2.msra.mxu0 0.0
        %729 = vmatprep.subr.mxu0 0.0
        %730 = vmatpush2.msra.mxu0 0.0
        %731 = vmatprep.subr.mxu0 0.0
        %732 = vmatpush2.msra.mxu0 0.0
        %733 = vmatprep.subr.mxu0 0.0
        %734 = vmatpush2.msra.mxu0 0.0
        %735 = vmatprep.subr.mxu0 0.0
        %736 = vmatpush2.msra.mxu0 0.0
        %737 = vmatprep.subr.mxu0 0.0
        %738 = vmatpush2.msra.mxu0 0.0
        %739 = vmatprep.subr.mxu0 0.0
        %740 = vmatpush2.msra.mxu0 0.0
        %741 = vmatprep.subr.mxu0 0.0
        %742 = vmatpush2.msra.mxu0 0.0
        %743 = vmatprep.subr.mxu0 0.0
        %744 = vmatpush2.msra.mxu0 0.0
        %745 = vmatprep.subr.mxu0 0.0
        %746 = vmatpush2.msra.mxu0 0.0
        %747 = vmatprep.subr.mxu0 0.0
        %748 = vmatpush2.msra.mxu0 0.0
        %749 = vmatprep.subr.mxu0 0.0
        %750 = vmatpush2.msra.mxu0 0.0
        %751 = vmatprep.subr.mxu0 0.0
        %752 = vmatpush2.msra.mxu0 0.0
        %753 = vmatprep.subr.mxu0 0.0
        %754 = vmatpush2.msra.mxu0 0.0
        %755 = vmatprep.mubr.f32.mxu0 0.0
        %756 = vmatmul.mubr.f32.gmra.mxu0 %v640
        %v757 = vpop.f32.mrf.mxu0
        %v758 = vadd.f32 %v636, %v757
        %v759 = vpop.f32.mrf.mxu0
        %760 = vmatprep.mubr.f32.mxu0 0.0
        %761 = vmatmul.mubr.f32.gmra.mxu0 %v643
        %v762 = vpop.f32.mrf.mxu0
        %v763 = vadd.f32 %v636, %v762
        %v764 = vpop.f32.mrf.mxu0
        %765 = vmatprep.mubr.f32.mxu0 0.0
        %766 = vmatmul.mubr.f32.gmra.mxu0 %v646
        %v767 = vpop.f32.mrf.mxu0
        %v768 = vadd.f32 %v636, %v767
        %v769 = vpop.f32.mrf.mxu0
        %770 = vmatprep.mubr.f32.mxu0 0.0
        %771 = vmatmul.mubr.f32.gmra.mxu0 %v649
        %v772 = vpop.f32.mrf.mxu0
        %v773 = vadd.f32 %v636, %v772
        %v774 = vpop.f32.mrf.mxu0
        %775 = vmatprep.mubr.f32.mxu0 0.0
        %776 = vmatmul.mubr.f32.gmra.mxu0 %v652
        %v777 = vpop.f32.mrf.mxu0
        %v778 = vadd.f32 %v636, %v777
        %v779 = vpop.f32.mrf.mxu0
        %780 = vmatprep.mubr.f32.mxu0 0.0
        %781 = vmatmul.mubr.f32.gmra.mxu0 %v655
        %v782 = vpop.f32.mrf.mxu0
        %v783 = vadd.f32 %v636, %v782
        %v784 = vpop.f32.mrf.mxu0
        %785 = vmatprep.mubr.f32.mxu0 0.0
        %786 = vmatmul.mubr.f32.gmra.mxu0 %v658
        %v787 = vpop.f32.mrf.mxu0
        %v788 = vadd.f32 %v636, %v787
        %v789 = vpop.f32.mrf.mxu0
        %790 = vmatprep.mubr.f32.mxu0 0.0
        %791 = vmatmul.mubr.f32.gmra.mxu0 %v661
        %v792 = vpop.f32.mrf.mxu0
        %v793 = vadd.f32 %v636, %v792
        %v794 = vpop.f32.mrf.mxu0
        %795 = vmatprep.mubr.f32.mxu0 0.0
        %796 = vmatmul.mubr.f32.gmra.mxu0 %v664
        %v797 = vpop.f32.mrf.mxu0
        %v798 = vadd.f32 %v636, %v797
        %v799 = vpop.f32.mrf.mxu0
        %800 = vmatprep.mubr.f32.mxu0 0.0
        %801 = vmatmul.mubr.f32.gmra.mxu0 %v667
        %v802 = vpop.f32.mrf.mxu0
        %v803 = vadd.f32 %v636, %v802
        %v804 = vpop.f32.mrf.mxu0
        %805 = vmatprep.mubr.f32.mxu0 0.0
        %806 = vmatmul.mubr.f32.gmra.mxu0 %v670
        %v807 = vpop.f32.mrf.mxu0
        %v808 = vadd.f32 %v636, %v807
        %v809 = vpop.f32.mrf.mxu0
        %810 = vmatprep.mubr.f32.mxu0 0.0
        %811 = vmatmul.mubr.f32.gmra.mxu0 %v673
        %v812 = vpop.f32.mrf.mxu0
        %v813 = vadd.f32 %v636, %v812
        %v814 = vpop.f32.mrf.mxu0
        %815 = vmatprep.mubr.f32.mxu0 0.0
        %816 = vmatmul.mubr.f32.gmra.mxu0 %v676
        %v817 = vpop.f32.mrf.mxu0
        %v818 = vadd.f32 %v636, %v817
        %v819 = vpop.f32.mrf.mxu0
        %820 = vmatprep.mubr.f32.mxu0 0.0
        %821 = vmatmul.mubr.f32.gmra.mxu0 %v679
        %v822 = vpop.f32.mrf.mxu0
        %v823 = vadd.f32 %v636, %v822
        %v824 = vpop.f32.mrf.mxu0
        %825 = vmatprep.mubr.f32.mxu0 0.0
        %826 = vmatmul.mubr.f32.gmra.mxu0 %v682
        %v827 = vpop.f32.mrf.mxu0
        %v828 = vadd.f32 %v636, %v827
        %v829 = vpop.f32.mrf.mxu0
        %830 = vmatprep.mubr.f32.mxu0 0.0
        %831 = vmatmul.mubr.f32.gmra.mxu0 %v685
        %v832 = vpop.f32.mrf.mxu0
        %v833 = vadd.f32 %v636, %v832
        %v834 = vpop.f32.mrf.mxu0
        %835 = vdwg.mxu0
        %v836 = vmax.f32 %v758, 0.0
        %v837 = vmax.f32 %v763, 0.0
        %v838 = vmax.f32 %v768, 0.0
        %v839 = vmax.f32 %v773, 0.0
        %v840 = vmax.f32 %v778, 0.0
        %v841 = vmax.f32 %v783, 0.0
        %v842 = vmax.f32 %v788, 0.0
        %v843 = vmax.f32 %v793, 0.0
        %v844 = vmax.f32 %v798, 0.0
        %v845 = vmax.f32 %v803, 0.0
        %v846 = vmax.f32 %v808, 0.0
        %v847 = vmax.f32 %v813, 0.0
        %v848 = vmax.f32 %v818, 0.0
        %v849 = vmax.f32 %v823, 0.0
        %v850 = vmax.f32 %v828, 0.0
        %v851 = vmax.f32 %v833, 0.0
        %v852 = vld [vmem:[#allocation5] sm:$0xff]
        %v853 = vld [vmem:[#allocation5 + $0x8] sm:$0xff]
        %v854 = vld [vmem:[#allocation5 + $0x10] sm:$0xff]
        %v855 = vld [vmem:[#allocation5 + $0x18] sm:$0xff]
        %v856 = vld [vmem:[#allocation5 + $0x20] sm:$0xff]
        %v857 = vld [vmem:[#allocation5 + $0x28] sm:$0xff]
        %v858 = vld [vmem:[#allocation5 + $0x30] sm:$0xff]
        %v859 = vld [vmem:[#allocation5 + $0x38] sm:$0xff]
        %v860 = vld [vmem:[#allocation5 + $0x40] sm:$0xff]
        %v861 = vld [vmem:[#allocation5 + $0x48] sm:$0xff]
        %v862 = vld [vmem:[#allocation5 + $0x50] sm:$0xff]
        %v863 = vld [vmem:[#allocation5 + $0x58] sm:$0xff]
        %v864 = vld [vmem:[#allocation7] sm:$0x7]
        %v866 = vlaneseq
        %v867 = vshrl.u32 %v866, 7
        %v868 = vsub.s32 0, %v867
        %v869 = vrot.slane %v864, %v868
        %v870 = vlaneseq
        %v871 = vshrl.u32 %v870, 7
        %v872 = vsub.s32 1, %v871
        %v873 = vrot.slane %v864, %v872
        %v874 = vlaneseq
        %v875 = vshrl.u32 %v874, 7
        %v876 = vsub.s32 2, %v875
        %v877 = vrot.slane %v864, %v876
        %vm881 = vcmask 261120
        %v883 = vsel %vm881, %v836, 0
        %v886 = vsel %vm881, %v837, 0
        %v889 = vsel %vm881, %v838, 0
        %v892 = vsel %vm881, %v839, 0
        %v895 = vsel %vm881, %v840, 0
        %v898 = vsel %vm881, %v841, 0
        %v901 = vsel %vm881, %v842, 0
        %v904 = vsel %vm881, %v843, 0
        %v907 = vsel %vm881, %v844, 0
        %v910 = vsel %vm881, %v845, 0
        %v913 = vsel %vm881, %v846, 0
        %v916 = vsel %vm881, %v847, 0
        %v919 = vsel %vm881, %v848, 0
        %v922 = vsel %vm881, %v849, 0
        %v925 = vsel %vm881, %v850, 0
        %v928 = vsel %vm881, %v851, 0
        %930 = vmatprep.subr.mxu0 0.0
        %931 = vmatpush1.msra.mxu0 0.0
        %932 = vmatprep.subr.mxu0 0.0
        %933 = vmatpush1.msra.mxu0 0.0
        %934 = vmatprep.subr.mxu0 0.0
        %935 = vmatpush1.msra.mxu0 0.0
        %936 = vmatprep.subr.mxu0 0.0
        %937 = vmatpush1.msra.mxu0 0.0
        %938 = vmatprep.subr.mxu0 0.0
        %939 = vmatpush1.msra.mxu0 0.0
        %940 = vmatprep.subr.mxu0 0.0
        %941 = vmatpush1.msra.mxu0 0.0
        %942 = vmatprep.subr.mxu0 0.0
        %943 = vmatpush1.msra.mxu0 0.0
        %944 = vmatprep.subr.mxu0 0.0
        %945 = vmatpush1.msra.mxu0 0.0
        %946 = vmatprep.subr.mxu0 0.0
        %947 = vmatpush1.msra.mxu0 0.0
        %948 = vmatprep.subr.mxu0 0.0
        %949 = vmatpush1.msra.mxu0 0.0
        %950 = vmatprep.subr.mxu0 0.0
        %951 = vmatpush1.msra.mxu0 0.0
        %952 = vmatprep.subr.mxu0 0.0
        %953 = vmatpush1.msra.mxu0 0.0
        %954 = vmatprep.subr.mxu0 %v862
        %955 = vmatpush1.msra.mxu0 %v861
        %956 = vmatprep.subr.mxu0 %v859
        %957 = vmatpush1.msra.mxu0 %v858
        %958 = vmatprep.subr.mxu0 %v856
        %959 = vmatpush1.msra.mxu0 %v855
        %960 = vmatprep.subr.mxu0 %v853
        %961 = vmatpush1.msra.mxu0 %v852
        %962 = vmatprep.subr.mxu0 0.0
        %963 = vmatpush2.msra.mxu0 0.0
        %964 = vmatprep.subr.mxu0 0.0
        %965 = vmatpush2.msra.mxu0 0.0
        %966 = vmatprep.subr.mxu0 0.0
        %967 = vmatpush2.msra.mxu0 0.0
        %968 = vmatprep.subr.mxu0 0.0
        %969 = vmatpush2.msra.mxu0 0.0
        %970 = vmatprep.subr.mxu0 0.0
        %971 = vmatpush2.msra.mxu0 0.0
        %972 = vmatprep.subr.mxu0 0.0
        %973 = vmatpush2.msra.mxu0 0.0
        %974 = vmatprep.subr.mxu0 0.0
        %975 = vmatpush2.msra.mxu0 0.0
        %976 = vmatprep.subr.mxu0 0.0
        %977 = vmatpush2.msra.mxu0 0.0
        %978 = vmatprep.subr.mxu0 0.0
        %979 = vmatpush2.msra.mxu0 0.0
        %980 = vmatprep.subr.mxu0 0.0
        %981 = vmatpush2.msra.mxu0 0.0
        %982 = vmatprep.subr.mxu0 0.0
        %983 = vmatpush2.msra.mxu0 0.0
        %984 = vmatprep.subr.mxu0 0.0
        %985 = vmatpush2.msra.mxu0 0.0
        %986 = vmatprep.subr.mxu0 0.0
        %987 = vmatpush2.msra.mxu0 0.0
        %988 = vmatprep.subr.mxu0 0.0
        %989 = vmatpush2.msra.mxu0 0.0
        %990 = vmatprep.subr.mxu0 0.0
        %991 = vmatpush2.msra.mxu0 0.0
        %992 = vmatprep.subr.mxu0 0.0
        %993 = vmatpush2.msra.mxu0 0.0
        %994 = vmatprep.mubr.f32.mxu0 0.0
        %995 = vmatmul.mubr.f32.gmra.mxu0 %v883
        %v996 = vpop.f32.mrf.mxu0
        %v997 = vadd.f32 %v869, %v996
        %v998 = vpop.f32.mrf.mxu0
        %v999 = vadd.f32 %v873, %v998
        %1000 = vmatprep.mubr.f32.mxu0 0.0
        %1001 = vmatmul.mubr.f32.gmra.mxu0 %v886
        %v1002 = vpop.f32.mrf.mxu0
        %v1003 = vadd.f32 %v869, %v1002
        %v1004 = vpop.f32.mrf.mxu0
        %v1005 = vadd.f32 %v873, %v1004
        %1006 = vmatprep.mubr.f32.mxu0 0.0
        %1007 = vmatmul.mubr.f32.gmra.mxu0 %v889
        %v1008 = vpop.f32.mrf.mxu0
        %v1009 = vadd.f32 %v869, %v1008
        %v1010 = vpop.f32.mrf.mxu0
        %v1011 = vadd.f32 %v873, %v1010
        %1012 = vmatprep.mubr.f32.mxu0 0.0
        %1013 = vmatmul.mubr.f32.gmra.mxu0 %v892
        %v1014 = vpop.f32.mrf.mxu0
        %v1015 = vadd.f32 %v869, %v1014
        %v1016 = vpop.f32.mrf.mxu0
        %v1017 = vadd.f32 %v873, %v1016
        %1018 = vmatprep.mubr.f32.mxu0 0.0
        %1019 = vmatmul.mubr.f32.gmra.mxu0 %v895
        %v1020 = vpop.f32.mrf.mxu0
        %v1021 = vadd.f32 %v869, %v1020
        %v1022 = vpop.f32.mrf.mxu0
        %v1023 = vadd.f32 %v873, %v1022
        %1024 = vmatprep.mubr.f32.mxu0 0.0
        %1025 = vmatmul.mubr.f32.gmra.mxu0 %v898
        %v1026 = vpop.f32.mrf.mxu0
        %v1027 = vadd.f32 %v869, %v1026
        %v1028 = vpop.f32.mrf.mxu0
        %v1029 = vadd.f32 %v873, %v1028
        %1030 = vmatprep.mubr.f32.mxu0 0.0
        %1031 = vmatmul.mubr.f32.gmra.mxu0 %v901
        %v1032 = vpop.f32.mrf.mxu0
        %v1033 = vadd.f32 %v869, %v1032
        %v1034 = vpop.f32.mrf.mxu0
        %v1035 = vadd.f32 %v873, %v1034
        %1036 = vmatprep.mubr.f32.mxu0 0.0
        %1037 = vmatmul.mubr.f32.gmra.mxu0 %v904
        %v1038 = vpop.f32.mrf.mxu0
        %v1039 = vadd.f32 %v869, %v1038
        %v1040 = vpop.f32.mrf.mxu0
        %v1041 = vadd.f32 %v873, %v1040
        %1042 = vmatprep.mubr.f32.mxu0 0.0
        %1043 = vmatmul.mubr.f32.gmra.mxu0 %v907
        %v1044 = vpop.f32.mrf.mxu0
        %v1045 = vadd.f32 %v869, %v1044
        %v1046 = vpop.f32.mrf.mxu0
        %v1047 = vadd.f32 %v873, %v1046
        %1048 = vmatprep.mubr.f32.mxu0 0.0
        %1049 = vmatmul.mubr.f32.gmra.mxu0 %v910
        %v1050 = vpop.f32.mrf.mxu0
        %v1051 = vadd.f32 %v869, %v1050
        %v1052 = vpop.f32.mrf.mxu0
        %v1053 = vadd.f32 %v873, %v1052
        %1054 = vmatprep.mubr.f32.mxu0 0.0
        %1055 = vmatmul.mubr.f32.gmra.mxu0 %v913
        %v1056 = vpop.f32.mrf.mxu0
        %v1057 = vadd.f32 %v869, %v1056
        %v1058 = vpop.f32.mrf.mxu0
        %v1059 = vadd.f32 %v873, %v1058
        %1060 = vmatprep.mubr.f32.mxu0 0.0
        %1061 = vmatmul.mubr.f32.gmra.mxu0 %v916
        %v1062 = vpop.f32.mrf.mxu0
        %v1063 = vadd.f32 %v869, %v1062
        %v1064 = vpop.f32.mrf.mxu0
        %v1065 = vadd.f32 %v873, %v1064
        %1066 = vmatprep.mubr.f32.mxu0 0.0
        %1067 = vmatmul.mubr.f32.gmra.mxu0 %v919
        %v1068 = vpop.f32.mrf.mxu0
        %v1069 = vadd.f32 %v869, %v1068
        %v1070 = vpop.f32.mrf.mxu0
        %v1071 = vadd.f32 %v873, %v1070
        %1072 = vmatprep.mubr.f32.mxu0 0.0
        %1073 = vmatmul.mubr.f32.gmra.mxu0 %v922
        %v1074 = vpop.f32.mrf.mxu0
        %v1075 = vadd.f32 %v869, %v1074
        %v1076 = vpop.f32.mrf.mxu0
        %v1077 = vadd.f32 %v873, %v1076
        %1078 = vmatprep.mubr.f32.mxu0 0.0
        %1079 = vmatmul.mubr.f32.gmra.mxu0 %v925
        %v1080 = vpop.f32.mrf.mxu0
        %v1081 = vadd.f32 %v869, %v1080
        %v1082 = vpop.f32.mrf.mxu0
        %v1083 = vadd.f32 %v873, %v1082
        %1084 = vmatprep.mubr.f32.mxu0 0.0
        %1085 = vmatmul.mubr.f32.gmra.mxu0 %v928
        %v1086 = vpop.f32.mrf.mxu0
        %v1087 = vadd.f32 %v869, %v1086
        %v1088 = vpop.f32.mrf.mxu0
        %v1089 = vadd.f32 %v873, %v1088
        %1090 = vdwg.mxu0
        %1091 = vmatprep.subr.mxu0 0.0
        %1092 = vmatpush1.msra.mxu0 0.0
        %1093 = vmatprep.subr.mxu0 0.0
        %1094 = vmatpush1.msra.mxu0 0.0
        %1095 = vmatprep.subr.mxu0 0.0
        %1096 = vmatpush1.msra.mxu0 0.0
        %1097 = vmatprep.subr.mxu0 0.0
        %1098 = vmatpush1.msra.mxu0 0.0
        %1099 = vmatprep.subr.mxu0 0.0
        %1100 = vmatpush1.msra.mxu0 0.0
        %1101 = vmatprep.subr.mxu0 0.0
        %1102 = vmatpush1.msra.mxu0 0.0
        %1103 = vmatprep.subr.mxu0 0.0
        %1104 = vmatpush1.msra.mxu0 0.0
        %1105 = vmatprep.subr.mxu0 0.0
        %1106 = vmatpush1.msra.mxu0 0.0
        %1107 = vmatprep.subr.mxu0 0.0
        %1108 = vmatpush1.msra.mxu0 0.0
        %1109 = vmatprep.subr.mxu0 0.0
        %1110 = vmatpush1.msra.mxu0 0.0
        %1111 = vmatprep.subr.mxu0 0.0
        %1112 = vmatpush1.msra.mxu0 0.0
        %1113 = vmatprep.subr.mxu0 0.0
        %1114 = vmatpush1.msra.mxu0 0.0
        %1115 = vmatprep.subr.mxu0 0.0
        %1116 = vmatpush1.msra.mxu0 %v863
        %1117 = vmatprep.subr.mxu0 0.0
        %1118 = vmatpush1.msra.mxu0 %v860
        %1119 = vmatprep.subr.mxu0 0.0
        %1120 = vmatpush1.msra.mxu0 %v857
        %1121 = vmatprep.subr.mxu0 0.0
        %1122 = vmatpush1.msra.mxu0 %v854
        %1123 = vmatprep.subr.mxu0 0.0
        %1124 = vmatpush2.msra.mxu0 0.0
        %1125 = vmatprep.subr.mxu0 0.0
        %1126 = vmatpush2.msra.mxu0 0.0
        %1127 = vmatprep.subr.mxu0 0.0
        %1128 = vmatpush2.msra.mxu0 0.0
        %1129 = vmatprep.subr.mxu0 0.0
        %1130 = vmatpush2.msra.mxu0 0.0
        %1131 = vmatprep.subr.mxu0 0.0
        %1132 = vmatpush2.msra.mxu0 0.0
        %1133 = vmatprep.subr.mxu0 0.0
        %1134 = vmatpush2.msra.mxu0 0.0
        %1135 = vmatprep.subr.mxu0 0.0
        %1136 = vmatpush2.msra.mxu0 0.0
        %1137 = vmatprep.subr.mxu0 0.0
        %1138 = vmatpush2.msra.mxu0 0.0
        %1139 = vmatprep.subr.mxu0 0.0
        %1140 = vmatpush2.msra.mxu0 0.0
        %1141 = vmatprep.subr.mxu0 0.0
        %1142 = vmatpush2.msra.mxu0 0.0
        %1143 = vmatprep.subr.mxu0 0.0
        %1144 = vmatpush2.msra.mxu0 0.0
        %1145 = vmatprep.subr.mxu0 0.0
        %1146 = vmatpush2.msra.mxu0 0.0
        %1147 = vmatprep.subr.mxu0 0.0
        %1148 = vmatpush2.msra.mxu0 0.0
        %1149 = vmatprep.subr.mxu0 0.0
        %1150 = vmatpush2.msra.mxu0 0.0
        %1151 = vmatprep.subr.mxu0 0.0
        %1152 = vmatpush2.msra.mxu0 0.0
        %1153 = vmatprep.subr.mxu0 0.0
        %1154 = vmatpush2.msra.mxu0 0.0
        %1155 = vmatprep.mubr.f32.mxu0 0.0
        %1156 = vmatmul.mubr.f32.gmra.mxu0 %v883
        %v1157 = vpop.f32.mrf.mxu0
        %v1158 = vadd.f32 %v877, %v1157
        %v1159 = vpop.f32.mrf.mxu0
        %1160 = vmatprep.mubr.f32.mxu0 0.0
        %1161 = vmatmul.mubr.f32.gmra.mxu0 %v886
        %v1162 = vpop.f32.mrf.mxu0
        %v1163 = vadd.f32 %v877, %v1162
        %v1164 = vpop.f32.mrf.mxu0
        %1165 = vmatprep.mubr.f32.mxu0 0.0
        %1166 = vmatmul.mubr.f32.gmra.mxu0 %v889
        %v1167 = vpop.f32.mrf.mxu0
        %v1168 = vadd.f32 %v877, %v1167
        %v1169 = vpop.f32.mrf.mxu0
        %1170 = vmatprep.mubr.f32.mxu0 0.0
        %1171 = vmatmul.mubr.f32.gmra.mxu0 %v892
        %v1172 = vpop.f32.mrf.mxu0
        %v1173 = vadd.f32 %v877, %v1172
        %v1174 = vpop.f32.mrf.mxu0
        %1175 = vmatprep.mubr.f32.mxu0 0.0
        %1176 = vmatmul.mubr.f32.gmra.mxu0 %v895
        %v1177 = vpop.f32.mrf.mxu0
        %v1178 = vadd.f32 %v877, %v1177
        %v1179 = vpop.f32.mrf.mxu0
        %1180 = vmatprep.mubr.f32.mxu0 0.0
        %1181 = vmatmul.mubr.f32.gmra.mxu0 %v898
        %v1182 = vpop.f32.mrf.mxu0
        %v1183 = vadd.f32 %v877, %v1182
        %v1184 = vpop.f32.mrf.mxu0
        %1185 = vmatprep.mubr.f32.mxu0 0.0
        %1186 = vmatmul.mubr.f32.gmra.mxu0 %v901
        %v1187 = vpop.f32.mrf.mxu0
        %v1188 = vadd.f32 %v877, %v1187
        %v1189 = vpop.f32.mrf.mxu0
        %1190 = vmatprep.mubr.f32.mxu0 0.0
        %1191 = vmatmul.mubr.f32.gmra.mxu0 %v904
        %v1192 = vpop.f32.mrf.mxu0
        %v1193 = vadd.f32 %v877, %v1192
        %v1194 = vpop.f32.mrf.mxu0
        %1195 = vmatprep.mubr.f32.mxu0 0.0
        %1196 = vmatmul.mubr.f32.gmra.mxu0 %v907
        %v1197 = vpop.f32.mrf.mxu0
        %v1198 = vadd.f32 %v877, %v1197
        %v1199 = vpop.f32.mrf.mxu0
        %1200 = vmatprep.mubr.f32.mxu0 0.0
        %1201 = vmatmul.mubr.f32.gmra.mxu0 %v910
        %v1202 = vpop.f32.mrf.mxu0
        %v1203 = vadd.f32 %v877, %v1202
        %v1204 = vpop.f32.mrf.mxu0
        %1205 = vmatprep.mubr.f32.mxu0 0.0
        %1206 = vmatmul.mubr.f32.gmra.mxu0 %v913
        %v1207 = vpop.f32.mrf.mxu0
        %v1208 = vadd.f32 %v877, %v1207
        %v1209 = vpop.f32.mrf.mxu0
        %1210 = vmatprep.mubr.f32.mxu0 0.0
        %1211 = vmatmul.mubr.f32.gmra.mxu0 %v916
        %v1212 = vpop.f32.mrf.mxu0
        %v1213 = vadd.f32 %v877, %v1212
        %v1214 = vpop.f32.mrf.mxu0
        %1215 = vmatprep.mubr.f32.mxu0 0.0
        %1216 = vmatmul.mubr.f32.gmra.mxu0 %v919
        %v1217 = vpop.f32.mrf.mxu0
        %v1218 = vadd.f32 %v877, %v1217
        %v1219 = vpop.f32.mrf.mxu0
        %1220 = vmatprep.mubr.f32.mxu0 0.0
        %1221 = vmatmul.mubr.f32.gmra.mxu0 %v922
        %v1222 = vpop.f32.mrf.mxu0
        %v1223 = vadd.f32 %v877, %v1222
        %v1224 = vpop.f32.mrf.mxu0
        %1225 = vmatprep.mubr.f32.mxu0 0.0
        %1226 = vmatmul.mubr.f32.gmra.mxu0 %v925
        %v1227 = vpop.f32.mrf.mxu0
        %v1228 = vadd.f32 %v877, %v1227
        %v1229 = vpop.f32.mrf.mxu0
        %1230 = vmatprep.mubr.f32.mxu0 0.0
        %1231 = vmatmul.mubr.f32.gmra.mxu0 %v928
        %v1232 = vpop.f32.mrf.mxu0
        %v1233 = vadd.f32 %v877, %v1232
        %v1234 = vpop.f32.mrf.mxu0
        %1235 = vdwg.mxu0
        %vm1236 = vcmask 130048
        %1237 = vst.msk [vmem:[%s607] sm:$0xff] %vm1236, %v1158
        %1238 = vst.msk [vmem:[%s607 + $0x8] sm:$0xff] %vm1236, %v1163
        %1239 = vst.msk [vmem:[%s607 + $0x10] sm:$0xff] %vm1236, %v1168
        %1240 = vst.msk [vmem:[%s607 + $0x18] sm:$0xff] %vm1236, %v1173
        %1241 = vst.msk [vmem:[%s607 + $0x20] sm:$0xff] %vm1236, %v1178
        %1242 = vst.msk [vmem:[%s607 + $0x28] sm:$0xff] %vm1236, %v1183
        %1243 = vst.msk [vmem:[%s607 + $0x30] sm:$0xff] %vm1236, %v1188
        %1244 = vst.msk [vmem:[%s607 + $0x38] sm:$0xff] %vm1236, %v1193
        %1245 = vst.msk [vmem:[%s607 + $0x40] sm:$0xff] %vm1236, %v1198
        %1246 = vst.msk [vmem:[%s607 + $0x48] sm:$0xff] %vm1236, %v1203
        %1247 = vst.msk [vmem:[%s607 + $0x50] sm:$0xff] %vm1236, %v1208
        %1248 = vst.msk [vmem:[%s607 + $0x58] sm:$0xff] %vm1236, %v1213
        %1249 = vst.msk [vmem:[%s607 + $0x60] sm:$0xff] %vm1236, %v1218
        %1250 = vst.msk [vmem:[%s607 + $0x68] sm:$0xff] %vm1236, %v1223
        %1251 = vst.msk [vmem:[%s607 + $0x70] sm:$0xff] %vm1236, %v1228
        %1252 = vst.msk [vmem:[%s607 + $0x78] sm:$0xff] %vm1236, %v1233
        %v1253 = vld [vmem:[%s588] sm:$0xff]
        %v1254 = vld [vmem:[%s588 + $0x8] sm:$0xff]
        %v1255 = vld [vmem:[%s588 + $0x10] sm:$0xff]
        %v1256 = vld [vmem:[%s588 + $0x18] sm:$0xff]
        %v1257 = vld [vmem:[%s588 + $0x20] sm:$0xff]
        %v1258 = vld [vmem:[%s588 + $0x28] sm:$0xff]
        %v1259 = vld [vmem:[%s588 + $0x30] sm:$0xff]
        %v1260 = vld [vmem:[%s588 + $0x38] sm:$0xff]
        %v1261 = vld [vmem:[%s588 + $0x40] sm:$0xff]
        %v1262 = vld [vmem:[%s588 + $0x48] sm:$0xff]
        %v1263 = vld [vmem:[%s588 + $0x50] sm:$0xff]
        %v1264 = vld [vmem:[%s588 + $0x58] sm:$0xff]
        %v1265 = vld [vmem:[%s588 + $0x60] sm:$0xff]
        %v1266 = vld [vmem:[%s588 + $0x68] sm:$0xff]
        %v1267 = vld [vmem:[%s588 + $0x70] sm:$0xff]
        %v1268 = vld [vmem:[%s588 + $0x78] sm:$0xff]
        %v1269 = vmul.f32 %v1158, 0.5
        %v1270 = vmul.f32 %v1163, 0.5
        %v1271 = vmul.f32 %v1168, 0.5
        %v1272 = vmul.f32 %v1173, 0.5
        %v1273 = vmul.f32 %v1178, 0.5
        %v1274 = vmul.f32 %v1183, 0.5
        %v1275 = vmul.f32 %v1188, 0.5
        %v1276 = vmul.f32 %v1193, 0.5
        %v1277 = vmul.f32 %v1198, 0.5
        %v1278 = vmul.f32 %v1203, 0.5
        %v1279 = vmul.f32 %v1208, 0.5
        %v1280 = vmul.f32 %v1213, 0.5
        %v1281 = vmul.f32 %v1218, 0.5
        %v1282 = vmul.f32 %v1223, 0.5
        %v1283 = vmul.f32 %v1228, 0.5
        %v1284 = vmul.f32 %v1233, 0.5
        %v1285 = vmul.f32 %v1269, 1.442695
        %v1286 = vpow.pop %v1285
        %v1287 = vmul.f32 %v1270, 1.442695
        %v1288 = vpow.pop %v1287
        %v1289 = vmul.f32 %v1271, 1.442695
        %v1290 = vpow.pop %v1289
        %v1291 = vmul.f32 %v1272, 1.442695
        %v1292 = vpow.pop %v1291
        %v1293 = vmul.f32 %v1273, 1.442695
        %v1294 = vpow.pop %v1293
        %v1295 = vmul.f32 %v1274, 1.442695
        %v1296 = vpow.pop %v1295
        %v1297 = vmul.f32 %v1275, 1.442695
        %v1298 = vpow.pop %v1297
        %v1299 = vmul.f32 %v1276, 1.442695
        %v1300 = vpow.pop %v1299
        %v1301 = vmul.f32 %v1277, 1.442695
        %v1302 = vpow.pop %v1301
        %v1303 = vmul.f32 %v1278, 1.442695
        %v1304 = vpow.pop %v1303
        %v1305 = vmul.f32 %v1279, 1.442695
        %v1306 = vpow.pop %v1305
        %v1307 = vmul.f32 %v1280, 1.442695
        %v1308 = vpow.pop %v1307
        %v1309 = vmul.f32 %v1281, 1.442695
        %v1310 = vpow.pop %v1309
        %v1311 = vmul.f32 %v1282, 1.442695
        %v1312 = vpow.pop %v1311
        %v1313 = vmul.f32 %v1283, 1.442695
        %v1314 = vpow.pop %v1313
        %v1315 = vmul.f32 %v1284, 1.442695
        %v1316 = vpow.pop %v1315
        %1333 = vrot.lane.b32.xlu0 %v1286, 120
        %v1334 = vpop.permute.xlu0 %1333
        %1335 = vrot.lane.b32.xlu0 %v1288, 120
        %v1336 = vpop.permute.xlu0 %1335
        %1337 = vrot.lane.b32.xlu0 %v1290, 120
        %v1338 = vpop.permute.xlu0 %1337
        %1339 = vrot.lane.b32.xlu0 %v1292, 120
        %v1340 = vpop.permute.xlu0 %1339
        %1341 = vrot.lane.b32.xlu0 %v1294, 120
        %v1342 = vpop.permute.xlu0 %1341
        %1343 = vrot.lane.b32.xlu0 %v1296, 120
        %v1344 = vpop.permute.xlu0 %1343
        %1345 = vrot.lane.b32.xlu0 %v1298, 120
        %v1346 = vpop.permute.xlu0 %1345
        %1347 = vrot.lane.b32.xlu0 %v1300, 120
        %v1348 = vpop.permute.xlu0 %1347
        %1349 = vrot.lane.b32.xlu0 %v1302, 120
        %v1350 = vpop.permute.xlu0 %1349
        %1351 = vrot.lane.b32.xlu0 %v1304, 120
        %v1352 = vpop.permute.xlu0 %1351
        %1353 = vrot.lane.b32.xlu0 %v1306, 120
        %v1354 = vpop.permute.xlu0 %1353
        %1355 = vrot.lane.b32.xlu0 %v1308, 120
        %v1356 = vpop.permute.xlu0 %1355
        %1357 = vrot.lane.b32.xlu0 %v1310, 120
        %v1358 = vpop.permute.xlu0 %1357
        %1359 = vrot.lane.b32.xlu0 %v1312, 120
        %v1360 = vpop.permute.xlu0 %1359
        %1361 = vrot.lane.b32.xlu0 %v1314, 120
        %v1362 = vpop.permute.xlu0 %1361
        %1363 = vrot.lane.b32.xlu0 %v1316, 120
        %v1364 = vpop.permute.xlu0 %1363
        %v1381 = vmul.f32 %v1253, %v1334
        %v1382 = vmul.f32 %v1254, %v1336
        %v1383 = vmul.f32 %v1255, %v1338
        %v1384 = vmul.f32 %v1256, %v1340
        %v1385 = vmul.f32 %v1257, %v1342
        %v1386 = vmul.f32 %v1258, %v1344
        %v1387 = vmul.f32 %v1259, %v1346
        %v1388 = vmul.f32 %v1260, %v1348
        %v1389 = vmul.f32 %v1261, %v1350
        %v1390 = vmul.f32 %v1262, %v1352
        %v1391 = vmul.f32 %v1263, %v1354
        %v1392 = vmul.f32 %v1264, %v1356
        %v1393 = vmul.f32 %v1265, %v1358
        %v1394 = vmul.f32 %v1266, %v1360
        %v1395 = vmul.f32 %v1267, %v1362
        %v1396 = vmul.f32 %v1268, %v1364
        %v1397 = vadd.f32 %v1158, %v1381
        %v1398 = vadd.f32 %v1163, %v1382
        %v1399 = vadd.f32 %v1168, %v1383
        %v1400 = vadd.f32 %v1173, %v1384
        %v1401 = vadd.f32 %v1178, %v1385
        %v1402 = vadd.f32 %v1183, %v1386
        %v1403 = vadd.f32 %v1188, %v1387
        %v1404 = vadd.f32 %v1193, %v1388
        %v1405 = vadd.f32 %v1198, %v1389
        %v1406 = vadd.f32 %v1203, %v1390
        %v1407 = vadd.f32 %v1208, %v1391
        %v1408 = vadd.f32 %v1213, %v1392
        %v1409 = vadd.f32 %v1218, %v1393
        %v1410 = vadd.f32 %v1223, %v1394
        %v1411 = vadd.f32 %v1228, %v1395
        %v1412 = vadd.f32 %v1233, %v1396
        %v1413 = vld [vmem:[%s7] sm:$0xff]
        %v1414 = vld [vmem:[%s7 + $0x8] sm:$0xff]
        %v1415 = vld [vmem:[%s7 + $0x10] sm:$0xff]
        %v1416 = vld [vmem:[%s7 + $0x18] sm:$0xff]
        %v1417 = vld [vmem:[%s7 + $0x20] sm:$0xff]
        %v1418 = vld [vmem:[%s7 + $0x28] sm:$0xff]
        %v1419 = vld [vmem:[%s7 + $0x30] sm:$0xff]
        %v1420 = vld [vmem:[%s7 + $0x38] sm:$0xff]
        %v1421 = vld [vmem:[%s7 + $0x40] sm:$0xff]
        %v1422 = vld [vmem:[%s7 + $0x48] sm:$0xff]
        %v1423 = vld [vmem:[%s7 + $0x50] sm:$0xff]
        %v1424 = vld [vmem:[%s7 + $0x58] sm:$0xff]
        %v1425 = vld [vmem:[%s7 + $0x60] sm:$0xff]
        %v1426 = vld [vmem:[%s7 + $0x68] sm:$0xff]
        %v1427 = vld [vmem:[%s7 + $0x70] sm:$0xff]
        %v1428 = vld [vmem:[%s7 + $0x78] sm:$0xff]
        %v1429 = vld [vmem:[%s7 + $0x80] sm:$0xff]
        %v1430 = vld [vmem:[%s7 + $0x88] sm:$0xff]
        %v1431 = vld [vmem:[%s7 + $0x90] sm:$0xff]
        %v1432 = vld [vmem:[%s7 + $0x98] sm:$0xff]
        %v1433 = vld [vmem:[%s7 + $0xa0] sm:$0xff]
        %v1434 = vld [vmem:[%s7 + $0xa8] sm:$0xff]
        %v1435 = vld [vmem:[%s7 + $0xb0] sm:$0xff]
        %v1436 = vld [vmem:[%s7 + $0xb8] sm:$0xff]
        %v1437 = vld [vmem:[%s7 + $0xc0] sm:$0xff]
        %v1438 = vld [vmem:[%s7 + $0xc8] sm:$0xff]
        %v1439 = vld [vmem:[%s7 + $0xd0] sm:$0xff]
        %v1440 = vld [vmem:[%s7 + $0xd8] sm:$0xff]
        %v1441 = vld [vmem:[%s7 + $0xe0] sm:$0xff]
        %v1442 = vld [vmem:[%s7 + $0xe8] sm:$0xff]
        %v1443 = vld [vmem:[%s7 + $0xf0] sm:$0xff]
        %v1444 = vld [vmem:[%s7 + $0xf8] sm:$0xff]
        %v1445 = vld [vmem:[%s7 + $0x100] sm:$0xff]
        %v1446 = vld [vmem:[%s7 + $0x108] sm:$0xff]
        %v1447 = vld [vmem:[%s7 + $0x110] sm:$0xff]
        %v1448 = vld [vmem:[%s7 + $0x118] sm:$0xff]
        %v1449 = vld [vmem:[%s7 + $0x120] sm:$0xff]
        %v1450 = vld [vmem:[%s7 + $0x128] sm:$0xff]
        %v1451 = vld [vmem:[%s7 + $0x130] sm:$0xff]
        %v1452 = vld [vmem:[%s7 + $0x138] sm:$0xff]
        %v1453 = vld [vmem:[%s7 + $0x140] sm:$0xff]
        %v1454 = vld [vmem:[%s7 + $0x148] sm:$0xff]
        %v1455 = vld [vmem:[%s7 + $0x150] sm:$0xff]
        %v1456 = vld [vmem:[%s7 + $0x158] sm:$0xff]
        %v1457 = vld [vmem:[%s7 + $0x160] sm:$0xff]
        %v1458 = vld [vmem:[%s7 + $0x168] sm:$0xff]
        %v1459 = vld [vmem:[%s7 + $0x170] sm:$0xff]
        %v1460 = vld [vmem:[%s7 + $0x178] sm:$0xff]
        %v1461 = vld [vmem:[%s7 + $0x180] sm:$0xff]
        %v1462 = vld [vmem:[%s7 + $0x188] sm:$0xff]
        %v1463 = vld [vmem:[%s7 + $0x190] sm:$0xff]
        %v1464 = vld [vmem:[%s7 + $0x198] sm:$0xff]
        %v1465 = vld [vmem:[%s7 + $0x1a0] sm:$0xff]
        %v1466 = vld [vmem:[%s7 + $0x1a8] sm:$0xff]
        %v1467 = vld [vmem:[%s7 + $0x1b0] sm:$0xff]
        %v1468 = vld [vmem:[%s7 + $0x1b8] sm:$0xff]
        %v1469 = vld [vmem:[%s7 + $0x1c0] sm:$0xff]
        %v1470 = vld [vmem:[%s7 + $0x1c8] sm:$0xff]
        %v1471 = vld [vmem:[%s7 + $0x1d0] sm:$0xff]
        %v1472 = vld [vmem:[%s7 + $0x1d8] sm:$0xff]
        %v1473 = vld [vmem:[%s7 + $0x1e0] sm:$0xff]
        %v1474 = vld [vmem:[%s7 + $0x1e8] sm:$0xff]
        %v1475 = vld [vmem:[%s7 + $0x1f0] sm:$0xff]
        %v1476 = vld [vmem:[%s7 + $0x1f8] sm:$0xff]
        %v1477 = vld [vmem:[%s595] sm:$0xff]
        %v1478 = vld [vmem:[%s595 + $0x8] sm:$0xff]
        %v1479 = vld [vmem:[%s595 + $0x10] sm:$0xff]
        %v1480 = vld [vmem:[%s595 + $0x18] sm:$0xff]
        %v1481 = vld [vmem:[%s595 + $0x20] sm:$0xff]
        %v1482 = vld [vmem:[%s595 + $0x28] sm:$0xff]
        %v1483 = vld [vmem:[%s595 + $0x30] sm:$0xff]
        %v1484 = vld [vmem:[%s595 + $0x38] sm:$0xff]
        %v1485 = vld [vmem:[%s595 + $0x40] sm:$0xff]
        %v1486 = vld [vmem:[%s595 + $0x48] sm:$0xff]
        %v1487 = vld [vmem:[%s595 + $0x50] sm:$0xff]
        %v1488 = vld [vmem:[%s595 + $0x58] sm:$0xff]
        %v1489 = vld [vmem:[%s595 + $0x60] sm:$0xff]
        %v1490 = vld [vmem:[%s595 + $0x68] sm:$0xff]
        %v1491 = vld [vmem:[%s595 + $0x70] sm:$0xff]
        %v1492 = vld [vmem:[%s595 + $0x78] sm:$0xff]
        %v1493 = vld [vmem:[%s595 + $0x80] sm:$0xff]
        %v1494 = vld [vmem:[%s595 + $0x88] sm:$0xff]
        %v1495 = vld [vmem:[%s595 + $0x90] sm:$0xff]
        %v1496 = vld [vmem:[%s595 + $0x98] sm:$0xff]
        %v1497 = vld [vmem:[%s595 + $0xa0] sm:$0xff]
        %v1498 = vld [vmem:[%s595 + $0xa8] sm:$0xff]
        %v1499 = vld [vmem:[%s595 + $0xb0] sm:$0xff]
        %v1500 = vld [vmem:[%s595 + $0xb8] sm:$0xff]
        %v1501 = vld [vmem:[%s595 + $0xc0] sm:$0xff]
        %v1502 = vld [vmem:[%s595 + $0xc8] sm:$0xff]
        %v1503 = vld [vmem:[%s595 + $0xd0] sm:$0xff]
        %v1504 = vld [vmem:[%s595 + $0xd8] sm:$0xff]
        %v1505 = vld [vmem:[%s595 + $0xe0] sm:$0xff]
        %v1506 = vld [vmem:[%s595 + $0xe8] sm:$0xff]
        %v1507 = vld [vmem:[%s595 + $0xf0] sm:$0xff]
        %v1508 = vld [vmem:[%s595 + $0xf8] sm:$0xff]
        %v1509 = vadd.f32 %v1477, 1e-20
        %v1510 = vadd.f32 %v1478, 1e-20
        %v1511 = vadd.f32 %v1479, 1e-20
        %v1512 = vadd.f32 %v1480, 1e-20
        %v1513 = vadd.f32 %v1481, 1e-20
        %v1514 = vadd.f32 %v1482, 1e-20
        %v1515 = vadd.f32 %v1483, 1e-20
        %v1516 = vadd.f32 %v1484, 1e-20
        %v1517 = vadd.f32 %v1485, 1e-20
        %v1518 = vadd.f32 %v1486, 1e-20
        %v1519 = vadd.f32 %v1487, 1e-20
        %v1520 = vadd.f32 %v1488, 1e-20
        %v1521 = vadd.f32 %v1489, 1e-20
        %v1522 = vadd.f32 %v1490, 1e-20
        %v1523 = vadd.f32 %v1491, 1e-20
        %v1524 = vadd.f32 %v1492, 1e-20
        %v1525 = vadd.f32 %v1493, 1e-20
        %v1526 = vadd.f32 %v1494, 1e-20
        %v1527 = vadd.f32 %v1495, 1e-20
        %v1528 = vadd.f32 %v1496, 1e-20
        %v1529 = vadd.f32 %v1497, 1e-20
        %v1530 = vadd.f32 %v1498, 1e-20
        %v1531 = vadd.f32 %v1499, 1e-20
        %v1532 = vadd.f32 %v1500, 1e-20
        %v1533 = vadd.f32 %v1501, 1e-20
        %v1534 = vadd.f32 %v1502, 1e-20
        %v1535 = vadd.f32 %v1503, 1e-20
        %v1536 = vadd.f32 %v1504, 1e-20
        %v1537 = vadd.f32 %v1505, 1e-20
        %v1538 = vadd.f32 %v1506, 1e-20
        %v1539 = vadd.f32 %v1507, 1e-20
        %v1540 = vadd.f32 %v1508, 1e-20
        %v1541 = vlog2.pop %v1509
        %v1542 = vmul.f32 %v1541, 0.6931472
        %v1543 = vlog2.pop %v1510
        %v1544 = vmul.f32 %v1543, 0.6931472
        %v1545 = vlog2.pop %v1511
        %v1546 = vmul.f32 %v1545, 0.6931472
        %v1547 = vlog2.pop %v1512
        %v1548 = vmul.f32 %v1547, 0.6931472
        %v1549 = vlog2.pop %v1513
        %v1550 = vmul.f32 %v1549, 0.6931472
        %v1551 = vlog2.pop %v1514
        %v1552 = vmul.f32 %v1551, 0.6931472
        %v1553 = vlog2.pop %v1515
        %v1554 = vmul.f32 %v1553, 0.6931472
        %v1555 = vlog2.pop %v1516
        %v1556 = vmul.f32 %v1555, 0.6931472
        %v1557 = vlog2.pop %v1517
        %v1558 = vmul.f32 %v1557, 0.6931472
        %v1559 = vlog2.pop %v1518
        %v1560 = vmul.f32 %v1559, 0.6931472
        %v1561 = vlog2.pop %v1519
        %v1562 = vmul.f32 %v1561, 0.6931472
        %v1563 = vlog2.pop %v1520
        %v1564 = vmul.f32 %v1563, 0.6931472
        %v1565 = vlog2.pop %v1521
        %v1566 = vmul.f32 %v1565, 0.6931472
        %v1567 = vlog2.pop %v1522
        %v1568 = vmul.f32 %v1567, 0.6931472
        %v1569 = vlog2.pop %v1523
        %v1570 = vmul.f32 %v1569, 0.6931472
        %v1571 = vlog2.pop %v1524
        %v1572 = vmul.f32 %v1571, 0.6931472
        %v1573 = vlog2.pop %v1525
        %v1574 = vmul.f32 %v1573, 0.6931472
        %v1575 = vlog2.pop %v1526
        %v1576 = vmul.f32 %v1575, 0.6931472
        %v1577 = vlog2.pop %v1527
        %v1578 = vmul.f32 %v1577, 0.6931472
        %v1579 = vlog2.pop %v1528
        %v1580 = vmul.f32 %v1579, 0.6931472
        %v1581 = vlog2.pop %v1529
        %v1582 = vmul.f32 %v1581, 0.6931472
        %v1583 = vlog2.pop %v1530
        %v1584 = vmul.f32 %v1583, 0.6931472
        %v1585 = vlog2.pop %v1531
        %v1586 = vmul.f32 %v1585, 0.6931472
        %v1587 = vlog2.pop %v1532
        %v1588 = vmul.f32 %v1587, 0.6931472
        %v1589 = vlog2.pop %v1533
        %v1590 = vmul.f32 %v1589, 0.6931472
        %v1591 = vlog2.pop %v1534
        %v1592 = vmul.f32 %v1591, 0.6931472
        %v1593 = vlog2.pop %v1535
        %v1594 = vmul.f32 %v1593, 0.6931472
        %v1595 = vlog2.pop %v1536
        %v1596 = vmul.f32 %v1595, 0.6931472
        %v1597 = vlog2.pop %v1537
        %v1598 = vmul.f32 %v1597, 0.6931472
        %v1599 = vlog2.pop %v1538
        %v1600 = vmul.f32 %v1599, 0.6931472
        %v1601 = vlog2.pop %v1539
        %v1602 = vmul.f32 %v1601, 0.6931472
        %v1603 = vlog2.pop %v1540
        %v1604 = vmul.f32 %v1603, 0.6931472
        %v1605 = vsub.f32 0.0, %v1542
        %v1606 = vsub.f32 0.0, %v1544
        %v1607 = vsub.f32 0.0, %v1546
        %v1608 = vsub.f32 0.0, %v1548
        %v1609 = vsub.f32 0.0, %v1550
        %v1610 = vsub.f32 0.0, %v1552
        %v1611 = vsub.f32 0.0, %v1554
        %v1612 = vsub.f32 0.0, %v1556
        %v1613 = vsub.f32 0.0, %v1558
        %v1614 = vsub.f32 0.0, %v1560
        %v1615 = vsub.f32 0.0, %v1562
        %v1616 = vsub.f32 0.0, %v1564
        %v1617 = vsub.f32 0.0, %v1566
        %v1618 = vsub.f32 0.0, %v1568
        %v1619 = vsub.f32 0.0, %v1570
        %v1620 = vsub.f32 0.0, %v1572
        %v1621 = vsub.f32 0.0, %v1574
        %v1622 = vsub.f32 0.0, %v1576
        %v1623 = vsub.f32 0.0, %v1578
        %v1624 = vsub.f32 0.0, %v1580
        %v1625 = vsub.f32 0.0, %v1582
        %v1626 = vsub.f32 0.0, %v1584
        %v1627 = vsub.f32 0.0, %v1586
        %v1628 = vsub.f32 0.0, %v1588
        %v1629 = vsub.f32 0.0, %v1590
        %v1630 = vsub.f32 0.0, %v1592
        %v1631 = vsub.f32 0.0, %v1594
        %v1632 = vsub.f32 0.0, %v1596
        %v1633 = vsub.f32 0.0, %v1598
        %v1634 = vsub.f32 0.0, %v1600
        %v1635 = vsub.f32 0.0, %v1602
        %v1636 = vsub.f32 0.0, %v1604
        %v1637 = vadd.f32 %v1605, 1e-20
        %v1638 = vadd.f32 %v1606, 1e-20
        %v1639 = vadd.f32 %v1607, 1e-20
        %v1640 = vadd.f32 %v1608, 1e-20
        %v1641 = vadd.f32 %v1609, 1e-20
        %v1642 = vadd.f32 %v1610, 1e-20
        %v1643 = vadd.f32 %v1611, 1e-20
        %v1644 = vadd.f32 %v1612, 1e-20
        %v1645 = vadd.f32 %v1613, 1e-20
        %v1646 = vadd.f32 %v1614, 1e-20
        %v1647 = vadd.f32 %v1615, 1e-20
        %v1648 = vadd.f32 %v1616, 1e-20
        %v1649 = vadd.f32 %v1617, 1e-20
        %v1650 = vadd.f32 %v1618, 1e-20
        %v1651 = vadd.f32 %v1619, 1e-20
        %v1652 = vadd.f32 %v1620, 1e-20
        %v1653 = vadd.f32 %v1621, 1e-20
        %v1654 = vadd.f32 %v1622, 1e-20
        %v1655 = vadd.f32 %v1623, 1e-20
        %v1656 = vadd.f32 %v1624, 1e-20
        %v1657 = vadd.f32 %v1625, 1e-20
        %v1658 = vadd.f32 %v1626, 1e-20
        %v1659 = vadd.f32 %v1627, 1e-20
        %v1660 = vadd.f32 %v1628, 1e-20
        %v1661 = vadd.f32 %v1629, 1e-20
        %v1662 = vadd.f32 %v1630, 1e-20
        %v1663 = vadd.f32 %v1631, 1e-20
        %v1664 = vadd.f32 %v1632, 1e-20
        %v1665 = vadd.f32 %v1633, 1e-20
        %v1666 = vadd.f32 %v1634, 1e-20
        %v1667 = vadd.f32 %v1635, 1e-20
        %v1668 = vadd.f32 %v1636, 1e-20
        %v1669 = vlog2.pop %v1637
        %v1670 = vmul.f32 %v1669, 0.6931472
        %v1671 = vlog2.pop %v1638
        %v1672 = vmul.f32 %v1671, 0.6931472
        %v1673 = vlog2.pop %v1639
        %v1674 = vmul.f32 %v1673, 0.6931472
        %v1675 = vlog2.pop %v1640
        %v1676 = vmul.f32 %v1675, 0.6931472
        %v1677 = vlog2.pop %v1641
        %v1678 = vmul.f32 %v1677, 0.6931472
        %v1679 = vlog2.pop %v1642
        %v1680 = vmul.f32 %v1679, 0.6931472
        %v1681 = vlog2.pop %v1643
        %v1682 = vmul.f32 %v1681, 0.6931472
        %v1683 = vlog2.pop %v1644
        %v1684 = vmul.f32 %v1683, 0.6931472
        %v1685 = vlog2.pop %v1645
        %v1686 = vmul.f32 %v1685, 0.6931472
        %v1687 = vlog2.pop %v1646
        %v1688 = vmul.f32 %v1687, 0.6931472
        %v1689 = vlog2.pop %v1647
        %v1690 = vmul.f32 %v1689, 0.6931472
        %v1691 = vlog2.pop %v1648
        %v1692 = vmul.f32 %v1691, 0.6931472
        %v1693 = vlog2.pop %v1649
        %v1694 = vmul.f32 %v1693, 0.6931472
        %v1695 = vlog2.pop %v1650
        %v1696 = vmul.f32 %v1695, 0.6931472
        %v1697 = vlog2.pop %v1651
        %v1698 = vmul.f32 %v1697, 0.6931472
        %v1699 = vlog2.pop %v1652
        %v1700 = vmul.f32 %v1699, 0.6931472
        %v1701 = vlog2.pop %v1653
        %v1702 = vmul.f32 %v1701, 0.6931472
        %v1703 = vlog2.pop %v1654
        %v1704 = vmul.f32 %v1703, 0.6931472
        %v1705 = vlog2.pop %v1655
        %v1706 = vmul.f32 %v1705, 0.6931472
        %v1707 = vlog2.pop %v1656
        %v1708 = vmul.f32 %v1707, 0.6931472
        %v1709 = vlog2.pop %v1657
        %v1710 = vmul.f32 %v1709, 0.6931472
        %v1711 = vlog2.pop %v1658
        %v1712 = vmul.f32 %v1711, 0.6931472
        %v1713 = vlog2.pop %v1659
        %v1714 = vmul.f32 %v1713, 0.6931472
        %v1715 = vlog2.pop %v1660
        %v1716 = vmul.f32 %v1715, 0.6931472
        %v1717 = vlog2.pop %v1661
        %v1718 = vmul.f32 %v1717, 0.6931472
        %v1719 = vlog2.pop %v1662
        %v1720 = vmul.f32 %v1719, 0.6931472
        %v1721 = vlog2.pop %v1663
        %v1722 = vmul.f32 %v1721, 0.6931472
        %v1723 = vlog2.pop %v1664
        %v1724 = vmul.f32 %v1723, 0.6931472
        %v1725 = vlog2.pop %v1665
        %v1726 = vmul.f32 %v1725, 0.6931472
        %v1727 = vlog2.pop %v1666
        %v1728 = vmul.f32 %v1727, 0.6931472
        %v1729 = vlog2.pop %v1667
        %v1730 = vmul.f32 %v1729, 0.6931472
        %v1731 = vlog2.pop %v1668
        %v1732 = vmul.f32 %v1731, 0.6931472
        %v1733 = vsub.f32 0.0, %v1670
        %v1734 = vsub.f32 0.0, %v1672
        %v1735 = vsub.f32 0.0, %v1674
        %v1736 = vsub.f32 0.0, %v1676
        %v1737 = vsub.f32 0.0, %v1678
        %v1738 = vsub.f32 0.0, %v1680
        %v1739 = vsub.f32 0.0, %v1682
        %v1740 = vsub.f32 0.0, %v1684
        %v1741 = vsub.f32 0.0, %v1686
        %v1742 = vsub.f32 0.0, %v1688
        %v1743 = vsub.f32 0.0, %v1690
        %v1744 = vsub.f32 0.0, %v1692
        %v1745 = vsub.f32 0.0, %v1694
        %v1746 = vsub.f32 0.0, %v1696
        %v1747 = vsub.f32 0.0, %v1698
        %v1748 = vsub.f32 0.0, %v1700
        %v1749 = vsub.f32 0.0, %v1702
        %v1750 = vsub.f32 0.0, %v1704
        %v1751 = vsub.f32 0.0, %v1706
        %v1752 = vsub.f32 0.0, %v1708
        %v1753 = vsub.f32 0.0, %v1710
        %v1754 = vsub.f32 0.0, %v1712
        %v1755 = vsub.f32 0.0, %v1714
        %v1756 = vsub.f32 0.0, %v1716
        %v1757 = vsub.f32 0.0, %v1718
        %v1758 = vsub.f32 0.0, %v1720
        %v1759 = vsub.f32 0.0, %v1722
        %v1760 = vsub.f32 0.0, %v1724
        %v1761 = vsub.f32 0.0, %v1726
        %v1762 = vsub.f32 0.0, %v1728
        %v1763 = vsub.f32 0.0, %v1730
        %v1764 = vsub.f32 0.0, %v1732
        %v1765 = vadd.f32 %v997, %v1733
        %v1766 = vadd.f32 %v999, %v1734
        %v1767 = vadd.f32 %v1003, %v1735
        %v1768 = vadd.f32 %v1005, %v1736
        %v1769 = vadd.f32 %v1009, %v1737
        %v1770 = vadd.f32 %v1011, %v1738
        %v1771 = vadd.f32 %v1015, %v1739
        %v1772 = vadd.f32 %v1017, %v1740
        %v1773 = vadd.f32 %v1021, %v1741
        %v1774 = vadd.f32 %v1023, %v1742
        %v1775 = vadd.f32 %v1027, %v1743
        %v1776 = vadd.f32 %v1029, %v1744
        %v1777 = vadd.f32 %v1033, %v1745
        %v1778 = vadd.f32 %v1035, %v1746
        %v1779 = vadd.f32 %v1039, %v1747
        %v1780 = vadd.f32 %v1041, %v1748
        %v1781 = vadd.f32 %v1045, %v1749
        %v1782 = vadd.f32 %v1047, %v1750
        %v1783 = vadd.f32 %v1051, %v1751
        %v1784 = vadd.f32 %v1053, %v1752
        %v1785 = vadd.f32 %v1057, %v1753
        %v1786 = vadd.f32 %v1059, %v1754
        %v1787 = vadd.f32 %v1063, %v1755
        %v1788 = vadd.f32 %v1065, %v1756
        %v1789 = vadd.f32 %v1069, %v1757
        %v1790 = vadd.f32 %v1071, %v1758
        %v1791 = vadd.f32 %v1075, %v1759
        %v1792 = vadd.f32 %v1077, %v1760
        %v1793 = vadd.f32 %v1081, %v1761
        %v1794 = vadd.f32 %v1083, %v1762
        %v1795 = vadd.f32 %v1087, %v1763
        %v1796 = vadd.f32 %v1089, %v1764
        %v1797 = vmul.f32 %v1765, 2.0
        %v1798 = vmul.f32 %v1766, 2.0
        %v1799 = vmul.f32 %v1767, 2.0
        %v1800 = vmul.f32 %v1768, 2.0
        %v1801 = vmul.f32 %v1769, 2.0
        %v1802 = vmul.f32 %v1770, 2.0
        %v1803 = vmul.f32 %v1771, 2.0
        %v1804 = vmul.f32 %v1772, 2.0
        %v1805 = vmul.f32 %v1773, 2.0
        %v1806 = vmul.f32 %v1774, 2.0
        %v1807 = vmul.f32 %v1775, 2.0
        %v1808 = vmul.f32 %v1776, 2.0
        %v1809 = vmul.f32 %v1777, 2.0
        %v1810 = vmul.f32 %v1778, 2.0
        %v1811 = vmul.f32 %v1779, 2.0
        %v1812 = vmul.f32 %v1780, 2.0
        %v1813 = vmul.f32 %v1781, 2.0
        %v1814 = vmul.f32 %v1782, 2.0
        %v1815 = vmul.f32 %v1783, 2.0
        %v1816 = vmul.f32 %v1784, 2.0
        %v1817 = vmul.f32 %v1785, 2.0
        %v1818 = vmul.f32 %v1786, 2.0
        %v1819 = vmul.f32 %v1787, 2.0
        %v1820 = vmul.f32 %v1788, 2.0
        %v1821 = vmul.f32 %v1789, 2.0
        %v1822 = vmul.f32 %v1790, 2.0
        %v1823 = vmul.f32 %v1791, 2.0
        %v1824 = vmul.f32 %v1792, 2.0
        %v1825 = vmul.f32 %v1793, 2.0
        %v1826 = vmul.f32 %v1794, 2.0
        %v1827 = vmul.f32 %v1795, 2.0
        %v1828 = vmul.f32 %v1796, 2.0
        %v1829 = vmax.f32 %v1797, %v1798
        %1830 = vmax.xlane.f32.xlu0 %v1829
        %v1831 = vpop.xlane.xlu0 %1830
        %v1832 = vmax.f32 %v1799, %v1800
        %1833 = vmax.xlane.f32.xlu0 %v1832
        %v1834 = vpop.xlane.xlu0 %1833
        %v1835 = vmax.f32 %v1801, %v1802
        %1836 = vmax.xlane.f32.xlu0 %v1835
        %v1837 = vpop.xlane.xlu0 %1836
        %v1838 = vmax.f32 %v1803, %v1804
        %1839 = vmax.xlane.f32.xlu0 %v1838
        %v1840 = vpop.xlane.xlu0 %1839
        %v1841 = vmax.f32 %v1805, %v1806
        %1842 = vmax.xlane.f32.xlu0 %v1841
        %v1843 = vpop.xlane.xlu0 %1842
        %v1844 = vmax.f32 %v1807, %v1808
        %1845 = vmax.xlane.f32.xlu0 %v1844
        %v1846 = vpop.xlane.xlu0 %1845
        %v1847 = vmax.f32 %v1809, %v1810
        %1848 = vmax.xlane.f32.xlu0 %v1847
        %v1849 = vpop.xlane.xlu0 %1848
        %v1850 = vmax.f32 %v1811, %v1812
        %1851 = vmax.xlane.f32.xlu0 %v1850
        %v1852 = vpop.xlane.xlu0 %1851
        %v1853 = vmax.f32 %v1813, %v1814
        %1854 = vmax.xlane.f32.xlu0 %v1853
        %v1855 = vpop.xlane.xlu0 %1854
        %v1856 = vmax.f32 %v1815, %v1816
        %1857 = vmax.xlane.f32.xlu0 %v1856
        %v1858 = vpop.xlane.xlu0 %1857
        %v1859 = vmax.f32 %v1817, %v1818
        %1860 = vmax.xlane.f32.xlu0 %v1859
        %v1861 = vpop.xlane.xlu0 %1860
        %v1862 = vmax.f32 %v1819, %v1820
        %1863 = vmax.xlane.f32.xlu0 %v1862
        %v1864 = vpop.xlane.xlu0 %1863
        %v1865 = vmax.f32 %v1821, %v1822
        %1866 = vmax.xlane.f32.xlu0 %v1865
        %v1867 = vpop.xlane.xlu0 %1866
        %v1868 = vmax.f32 %v1823, %v1824
        %1869 = vmax.xlane.f32.xlu0 %v1868
        %v1870 = vpop.xlane.xlu0 %1869
        %v1871 = vmax.f32 %v1825, %v1826
        %1872 = vmax.xlane.f32.xlu0 %v1871
        %v1873 = vpop.xlane.xlu0 %1872
        %v1874 = vmax.f32 %v1827, %v1828
        %1875 = vmax.xlane.f32.xlu0 %v1874
        %v1876 = vpop.xlane.xlu0 %1875
        %v1877 = vsub.f32 %v1797, %v1831
        %v1878 = vsub.f32 %v1798, %v1831
        %v1879 = vsub.f32 %v1799, %v1834
        %v1880 = vsub.f32 %v1800, %v1834
        %v1881 = vsub.f32 %v1801, %v1837
        %v1882 = vsub.f32 %v1802, %v1837
        %v1883 = vsub.f32 %v1803, %v1840
        %v1884 = vsub.f32 %v1804, %v1840
        %v1885 = vsub.f32 %v1805, %v1843
        %v1886 = vsub.f32 %v1806, %v1843
        %v1887 = vsub.f32 %v1807, %v1846
        %v1888 = vsub.f32 %v1808, %v1846
        %v1889 = vsub.f32 %v1809, %v1849
        %v1890 = vsub.f32 %v1810, %v1849
        %v1891 = vsub.f32 %v1811, %v1852
        %v1892 = vsub.f32 %v1812, %v1852
        %v1893 = vsub.f32 %v1813, %v1855
        %v1894 = vsub.f32 %v1814, %v1855
        %v1895 = vsub.f32 %v1815, %v1858
        %v1896 = vsub.f32 %v1816, %v1858
        %v1897 = vsub.f32 %v1817, %v1861
        %v1898 = vsub.f32 %v1818, %v1861
        %v1899 = vsub.f32 %v1819, %v1864
        %v1900 = vsub.f32 %v1820, %v1864
        %v1901 = vsub.f32 %v1821, %v1867
        %v1902 = vsub.f32 %v1822, %v1867
        %v1903 = vsub.f32 %v1823, %v1870
        %v1904 = vsub.f32 %v1824, %v1870
        %v1905 = vsub.f32 %v1825, %v1873
        %v1906 = vsub.f32 %v1826, %v1873
        %v1907 = vsub.f32 %v1827, %v1876
        %v1908 = vsub.f32 %v1828, %v1876
        %v1909 = vmul.f32 %v1877, 1.442695
        %v1910 = vpow.pop %v1909
        %v1911 = vmul.f32 %v1878, 1.442695
        %v1912 = vpow.pop %v1911
        %v1913 = vmul.f32 %v1879, 1.442695
        %v1914 = vpow.pop %v1913
        %v1915 = vmul.f32 %v1880, 1.442695
        %v1916 = vpow.pop %v1915
        %v1917 = vmul.f32 %v1881, 1.442695
        %v1918 = vpow.pop %v1917
        %v1919 = vmul.f32 %v1882, 1.442695
        %v1920 = vpow.pop %v1919
        %v1921 = vmul.f32 %v1883, 1.442695
        %v1922 = vpow.pop %v1921
        %v1923 = vmul.f32 %v1884, 1.442695
        %v1924 = vpow.pop %v1923
        %v1925 = vmul.f32 %v1885, 1.442695
        %v1926 = vpow.pop %v1925
        %v1927 = vmul.f32 %v1886, 1.442695
        %v1928 = vpow.pop %v1927
        %v1929 = vmul.f32 %v1887, 1.442695
        %v1930 = vpow.pop %v1929
        %v1931 = vmul.f32 %v1888, 1.442695
        %v1932 = vpow.pop %v1931
        %v1933 = vmul.f32 %v1889, 1.442695
        %v1934 = vpow.pop %v1933
        %v1935 = vmul.f32 %v1890, 1.442695
        %v1936 = vpow.pop %v1935
        %v1937 = vmul.f32 %v1891, 1.442695
        %v1938 = vpow.pop %v1937
        %v1939 = vmul.f32 %v1892, 1.442695
        %v1940 = vpow.pop %v1939
        %v1941 = vmul.f32 %v1893, 1.442695
        %v1942 = vpow.pop %v1941
        %v1943 = vmul.f32 %v1894, 1.442695
        %v1944 = vpow.pop %v1943
        %v1945 = vmul.f32 %v1895, 1.442695
        %v1946 = vpow.pop %v1945
        %v1947 = vmul.f32 %v1896, 1.442695
        %v1948 = vpow.pop %v1947
        %v1949 = vmul.f32 %v1897, 1.442695
        %v1950 = vpow.pop %v1949
        %v1951 = vmul.f32 %v1898, 1.442695
        %v1952 = vpow.pop %v1951
        %v1953 = vmul.f32 %v1899, 1.442695
        %v1954 = vpow.pop %v1953
        %v1955 = vmul.f32 %v1900, 1.442695
        %v1956 = vpow.pop %v1955
        %v1957 = vmul.f32 %v1901, 1.442695
        %v1958 = vpow.pop %v1957
        %v1959 = vmul.f32 %v1902, 1.442695
        %v1960 = vpow.pop %v1959
        %v1961 = vmul.f32 %v1903, 1.442695
        %v1962 = vpow.pop %v1961
        %v1963 = vmul.f32 %v1904, 1.442695
        %v1964 = vpow.pop %v1963
        %v1965 = vmul.f32 %v1905, 1.442695
        %v1966 = vpow.pop %v1965
        %v1967 = vmul.f32 %v1906, 1.442695
        %v1968 = vpow.pop %v1967
        %v1969 = vmul.f32 %v1907, 1.442695
        %v1970 = vpow.pop %v1969
        %v1971 = vmul.f32 %v1908, 1.442695
        %v1972 = vpow.pop %v1971
        %1973 = vmatprep.subr.mxu0 %v1444
        %1974 = vmatpush1.msra.mxu0 %v1443
        %1975 = vmatprep.subr.mxu0 %v1442
        %1976 = vmatpush1.msra.mxu0 %v1441
        %1977 = vmatprep.subr.mxu0 %v1440
        %1978 = vmatpush1.msra.mxu0 %v1439
        %1979 = vmatprep.subr.mxu0 %v1438
        %1980 = vmatpush1.msra.mxu0 %v1437
        %1981 = vmatprep.subr.mxu0 %v1436
        %1982 = vmatpush1.msra.mxu0 %v1435
        %1983 = vmatprep.subr.mxu0 %v1434
        %1984 = vmatpush1.msra.mxu0 %v1433
        %1985 = vmatprep.subr.mxu0 %v1432
        %1986 = vmatpush1.msra.mxu0 %v1431
        %1987 = vmatprep.subr.mxu0 %v1430
        %1988 = vmatpush1.msra.mxu0 %v1429
        %1989 = vmatprep.subr.mxu0 %v1428
        %1990 = vmatpush1.msra.mxu0 %v1427
        %1991 = vmatprep.subr.mxu0 %v1426
        %1992 = vmatpush1.msra.mxu0 %v1425
        %1993 = vmatprep.subr.mxu0 %v1424
        %1994 = vmatpush1.msra.mxu0 %v1423
        %1995 = vmatprep.subr.mxu0 %v1422
        %1996 = vmatpush1.msra.mxu0 %v1421
        %1997 = vmatprep.subr.mxu0 %v1420
        %1998 = vmatpush1.msra.mxu0 %v1419
        %1999 = vmatprep.subr.mxu0 %v1418
        %2000 = vmatpush1.msra.mxu0 %v1417
        %2001 = vmatprep.subr.mxu0 %v1416
        %2002 = vmatpush1.msra.mxu0 %v1415
        %2003 = vmatprep.subr.mxu0 %v1414
        %2004 = vmatpush1.msra.mxu0 %v1413
        %2005 = vmatprep.subr.mxu0 %v1476
        %2006 = vmatpush2.msra.mxu0 %v1475
        %2007 = vmatprep.subr.mxu0 %v1474
        %2008 = vmatpush2.msra.mxu0 %v1473
        %2009 = vmatprep.subr.mxu0 %v1472
        %2010 = vmatpush2.msra.mxu0 %v1471
        %2011 = vmatprep.subr.mxu0 %v1470
        %2012 = vmatpush2.msra.mxu0 %v1469
        %2013 = vmatprep.subr.mxu0 %v1468
        %2014 = vmatpush2.msra.mxu0 %v1467
        %2015 = vmatprep.subr.mxu0 %v1466
        %2016 = vmatpush2.msra.mxu0 %v1465
        %2017 = vmatprep.subr.mxu0 %v1464
        %2018 = vmatpush2.msra.mxu0 %v1463
        %2019 = vmatprep.subr.mxu0 %v1462
        %2020 = vmatpush2.msra.mxu0 %v1461
        %2021 = vmatprep.subr.mxu0 %v1460
        %2022 = vmatpush2.msra.mxu0 %v1459
        %2023 = vmatprep.subr.mxu0 %v1458
        %2024 = vmatpush2.msra.mxu0 %v1457
        %2025 = vmatprep.subr.mxu0 %v1456
        %2026 = vmatpush2.msra.mxu0 %v1455
        %2027 = vmatprep.subr.mxu0 %v1454
        %2028 = vmatpush2.msra.mxu0 %v1453
        %2029 = vmatprep.subr.mxu0 %v1452
        %2030 = vmatpush2.msra.mxu0 %v1451
        %2031 = vmatprep.subr.mxu0 %v1450
        %2032 = vmatpush2.msra.mxu0 %v1449
        %2033 = vmatprep.subr.mxu0 %v1448
        %2034 = vmatpush2.msra.mxu0 %v1447
        %2035 = vmatprep.subr.mxu0 %v1446
        %2036 = vmatpush2.msra.mxu0 %v1445
        %2037 = vmatprep.mubr.f32.mxu0 %v1912
        %2038 = vmatmul.mubr.f32.gmra.mxu0 %v1910
        %v2039 = vpop.f32.mrf.mxu0
        %v2040 = vadd.f32 1e-30, %v2039
        %v2041 = vpop.f32.mrf.mxu0
        %v2042 = vadd.f32 1e-30, %v2041
        %2043 = vmatprep.mubr.f32.mxu0 %v1916
        %2044 = vmatmul.mubr.f32.gmra.mxu0 %v1914
        %v2045 = vpop.f32.mrf.mxu0
        %v2046 = vadd.f32 1e-30, %v2045
        %v2047 = vpop.f32.mrf.mxu0
        %v2048 = vadd.f32 1e-30, %v2047
        %2049 = vmatprep.mubr.f32.mxu0 %v1920
        %2050 = vmatmul.mubr.f32.gmra.mxu0 %v1918
        %v2051 = vpop.f32.mrf.mxu0
        %v2052 = vadd.f32 1e-30, %v2051
        %v2053 = vpop.f32.mrf.mxu0
        %v2054 = vadd.f32 1e-30, %v2053
        %2055 = vmatprep.mubr.f32.mxu0 %v1924
        %2056 = vmatmul.mubr.f32.gmra.mxu0 %v1922
        %v2057 = vpop.f32.mrf.mxu0
        %v2058 = vadd.f32 1e-30, %v2057
        %v2059 = vpop.f32.mrf.mxu0
        %v2060 = vadd.f32 1e-30, %v2059
        %2061 = vmatprep.mubr.f32.mxu0 %v1928
        %2062 = vmatmul.mubr.f32.gmra.mxu0 %v1926
        %v2063 = vpop.f32.mrf.mxu0
        %v2064 = vadd.f32 1e-30, %v2063
        %v2065 = vpop.f32.mrf.mxu0
        %v2066 = vadd.f32 1e-30, %v2065
        %2067 = vmatprep.mubr.f32.mxu0 %v1932
        %2068 = vmatmul.mubr.f32.gmra.mxu0 %v1930
        %v2069 = vpop.f32.mrf.mxu0
        %v2070 = vadd.f32 1e-30, %v2069
        %v2071 = vpop.f32.mrf.mxu0
        %v2072 = vadd.f32 1e-30, %v2071
        %2073 = vmatprep.mubr.f32.mxu0 %v1936
        %2074 = vmatmul.mubr.f32.gmra.mxu0 %v1934
        %v2075 = vpop.f32.mrf.mxu0
        %v2076 = vadd.f32 1e-30, %v2075
        %v2077 = vpop.f32.mrf.mxu0
        %v2078 = vadd.f32 1e-30, %v2077
        %2079 = vmatprep.mubr.f32.mxu0 %v1940
        %2080 = vmatmul.mubr.f32.gmra.mxu0 %v1938
        %v2081 = vpop.f32.mrf.mxu0
        %v2082 = vadd.f32 1e-30, %v2081
        %v2083 = vpop.f32.mrf.mxu0
        %v2084 = vadd.f32 1e-30, %v2083
        %2085 = vmatprep.mubr.f32.mxu0 %v1944
        %2086 = vmatmul.mubr.f32.gmra.mxu0 %v1942
        %v2087 = vpop.f32.mrf.mxu0
        %v2088 = vadd.f32 1e-30, %v2087
        %v2089 = vpop.f32.mrf.mxu0
        %v2090 = vadd.f32 1e-30, %v2089
        %2091 = vmatprep.mubr.f32.mxu0 %v1948
        %2092 = vmatmul.mubr.f32.gmra.mxu0 %v1946
        %v2093 = vpop.f32.mrf.mxu0
        %v2094 = vadd.f32 1e-30, %v2093
        %v2095 = vpop.f32.mrf.mxu0
        %v2096 = vadd.f32 1e-30, %v2095
        %2097 = vmatprep.mubr.f32.mxu0 %v1952
        %2098 = vmatmul.mubr.f32.gmra.mxu0 %v1950
        %v2099 = vpop.f32.mrf.mxu0
        %v2100 = vadd.f32 1e-30, %v2099
        %v2101 = vpop.f32.mrf.mxu0
        %v2102 = vadd.f32 1e-30, %v2101
        %2103 = vmatprep.mubr.f32.mxu0 %v1956
        %2104 = vmatmul.mubr.f32.gmra.mxu0 %v1954
        %v2105 = vpop.f32.mrf.mxu0
        %v2106 = vadd.f32 1e-30, %v2105
        %v2107 = vpop.f32.mrf.mxu0
        %v2108 = vadd.f32 1e-30, %v2107
        %2109 = vmatprep.mubr.f32.mxu0 %v1960
        %2110 = vmatmul.mubr.f32.gmra.mxu0 %v1958
        %v2111 = vpop.f32.mrf.mxu0
        %v2112 = vadd.f32 1e-30, %v2111
        %v2113 = vpop.f32.mrf.mxu0
        %v2114 = vadd.f32 1e-30, %v2113
        %2115 = vmatprep.mubr.f32.mxu0 %v1964
        %2116 = vmatmul.mubr.f32.gmra.mxu0 %v1962
        %v2117 = vpop.f32.mrf.mxu0
        %v2118 = vadd.f32 1e-30, %v2117
        %v2119 = vpop.f32.mrf.mxu0
        %v2120 = vadd.f32 1e-30, %v2119
        %2121 = vmatprep.mubr.f32.mxu0 %v1968
        %2122 = vmatmul.mubr.f32.gmra.mxu0 %v1966
        %v2123 = vpop.f32.mrf.mxu0
        %v2124 = vadd.f32 1e-30, %v2123
        %v2125 = vpop.f32.mrf.mxu0
        %v2126 = vadd.f32 1e-30, %v2125
        %2127 = vmatprep.mubr.f32.mxu0 %v1972
        %2128 = vmatmul.mubr.f32.gmra.mxu0 %v1970
        %v2129 = vpop.f32.mrf.mxu0
        %v2130 = vadd.f32 1e-30, %v2129
        %v2131 = vpop.f32.mrf.mxu0
        %v2132 = vadd.f32 1e-30, %v2131
        %2133 = vdwg.mxu0
        %v2134 = vrcp.pop %v2040
        %v2135 = vrcp.pop %v2042
        %v2136 = vrcp.pop %v2046
        %v2137 = vrcp.pop %v2048
        %v2138 = vrcp.pop %v2052
        %v2139 = vrcp.pop %v2054
        %v2140 = vrcp.pop %v2058
        %v2141 = vrcp.pop %v2060
        %v2142 = vrcp.pop %v2064
        %v2143 = vrcp.pop %v2066
        %v2144 = vrcp.pop %v2070
        %v2145 = vrcp.pop %v2072
        %v2146 = vrcp.pop %v2076
        %v2147 = vrcp.pop %v2078
        %v2148 = vrcp.pop %v2082
        %v2149 = vrcp.pop %v2084
        %v2150 = vrcp.pop %v2088
        %v2151 = vrcp.pop %v2090
        %v2152 = vrcp.pop %v2094
        %v2153 = vrcp.pop %v2096
        %v2154 = vrcp.pop %v2100
        %v2155 = vrcp.pop %v2102
        %v2156 = vrcp.pop %v2106
        %v2157 = vrcp.pop %v2108
        %v2158 = vrcp.pop %v2112
        %v2159 = vrcp.pop %v2114
        %v2160 = vrcp.pop %v2118
        %v2161 = vrcp.pop %v2120
        %v2162 = vrcp.pop %v2124
        %v2163 = vrcp.pop %v2126
        %v2164 = vrcp.pop %v2130
        %v2165 = vrcp.pop %v2132
        %v2166 = vmul.f32 %v1910, %v2134
        %v2167 = vmul.f32 %v1912, %v2135
        %v2168 = vmul.f32 %v1914, %v2136
        %v2169 = vmul.f32 %v1916, %v2137
        %v2170 = vmul.f32 %v1918, %v2138
        %v2171 = vmul.f32 %v1920, %v2139
        %v2172 = vmul.f32 %v1922, %v2140
        %v2173 = vmul.f32 %v1924, %v2141
        %v2174 = vmul.f32 %v1926, %v2142
        %v2175 = vmul.f32 %v1928, %v2143
        %v2176 = vmul.f32 %v1930, %v2144
        %v2177 = vmul.f32 %v1932, %v2145
        %v2178 = vmul.f32 %v1934, %v2146
        %v2179 = vmul.f32 %v1936, %v2147
        %v2180 = vmul.f32 %v1938, %v2148
        %v2181 = vmul.f32 %v1940, %v2149
        %v2182 = vmul.f32 %v1942, %v2150
        %v2183 = vmul.f32 %v1944, %v2151
        %v2184 = vmul.f32 %v1946, %v2152
        %v2185 = vmul.f32 %v1948, %v2153
        %v2186 = vmul.f32 %v1950, %v2154
        %v2187 = vmul.f32 %v1952, %v2155
        %v2188 = vmul.f32 %v1954, %v2156
        %v2189 = vmul.f32 %v1956, %v2157
        %v2190 = vmul.f32 %v1958, %v2158
        %v2191 = vmul.f32 %v1960, %v2159
        %v2192 = vmul.f32 %v1962, %v2160
        %v2193 = vmul.f32 %v1964, %v2161
        %v2194 = vmul.f32 %v1966, %v2162
        %v2195 = vmul.f32 %v1968, %v2163
        %v2196 = vmul.f32 %v1970, %v2164
        %v2197 = vmul.f32 %v1972, %v2165
        %v2198 = vmax.f32 %v997, %v999
        %2199 = vmax.xlane.f32.xlu0 %v2198
        %v2200 = vpop.xlane.xlu0 %2199
        %v2201 = vmax.f32 %v1003, %v1005
        %2202 = vmax.xlane.f32.xlu0 %v2201
        %v2203 = vpop.xlane.xlu0 %2202
        %v2204 = vmax.f32 %v1009, %v1011
        %2205 = vmax.xlane.f32.xlu0 %v2204
        %v2206 = vpop.xlane.xlu0 %2205
        %v2207 = vmax.f32 %v1015, %v1017
        %2208 = vmax.xlane.f32.xlu0 %v2207
        %v2209 = vpop.xlane.xlu0 %2208
        %v2210 = vmax.f32 %v1021, %v1023
        %2211 = vmax.xlane.f32.xlu0 %v2210
        %v2212 = vpop.xlane.xlu0 %2211
        %v2213 = vmax.f32 %v1027, %v1029
        %2214 = vmax.xlane.f32.xlu0 %v2213
        %v2215 = vpop.xlane.xlu0 %2214
        %v2216 = vmax.f32 %v1033, %v1035
        %2217 = vmax.xlane.f32.xlu0 %v2216
        %v2218 = vpop.xlane.xlu0 %2217
        %v2219 = vmax.f32 %v1039, %v1041
        %2220 = vmax.xlane.f32.xlu0 %v2219
        %v2221 = vpop.xlane.xlu0 %2220
        %v2222 = vmax.f32 %v1045, %v1047
        %2223 = vmax.xlane.f32.xlu0 %v2222
        %v2224 = vpop.xlane.xlu0 %2223
        %v2225 = vmax.f32 %v1051, %v1053
        %2226 = vmax.xlane.f32.xlu0 %v2225
        %v2227 = vpop.xlane.xlu0 %2226
        %v2228 = vmax.f32 %v1057, %v1059
        %2229 = vmax.xlane.f32.xlu0 %v2228
        %v2230 = vpop.xlane.xlu0 %2229
        %v2231 = vmax.f32 %v1063, %v1065
        %2232 = vmax.xlane.f32.xlu0 %v2231
        %v2233 = vpop.xlane.xlu0 %2232
        %v2234 = vmax.f32 %v1069, %v1071
        %2235 = vmax.xlane.f32.xlu0 %v2234
        %v2236 = vpop.xlane.xlu0 %2235
        %v2237 = vmax.f32 %v1075, %v1077
        %2238 = vmax.xlane.f32.xlu0 %v2237
        %v2239 = vpop.xlane.xlu0 %2238
        %v2240 = vmax.f32 %v1081, %v1083
        %2241 = vmax.xlane.f32.xlu0 %v2240
        %v2242 = vpop.xlane.xlu0 %2241
        %v2243 = vmax.f32 %v1087, %v1089
        %2244 = vmax.xlane.f32.xlu0 %v2243
        %v2245 = vpop.xlane.xlu0 %2244
        %v2246 = vsub.f32 %v997, %v2200
        %v2247 = vsub.f32 %v999, %v2200
        %v2248 = vsub.f32 %v1003, %v2203
        %v2249 = vsub.f32 %v1005, %v2203
        %v2250 = vsub.f32 %v1009, %v2206
        %v2251 = vsub.f32 %v1011, %v2206
        %v2252 = vsub.f32 %v1015, %v2209
        %v2253 = vsub.f32 %v1017, %v2209
        %v2254 = vsub.f32 %v1021, %v2212
        %v2255 = vsub.f32 %v1023, %v2212
        %v2256 = vsub.f32 %v1027, %v2215
        %v2257 = vsub.f32 %v1029, %v2215
        %v2258 = vsub.f32 %v1033, %v2218
        %v2259 = vsub.f32 %v1035, %v2218
        %v2260 = vsub.f32 %v1039, %v2221
        %v2261 = vsub.f32 %v1041, %v2221
        %v2262 = vsub.f32 %v1045, %v2224
        %v2263 = vsub.f32 %v1047, %v2224
        %v2264 = vsub.f32 %v1051, %v2227
        %v2265 = vsub.f32 %v1053, %v2227
        %v2266 = vsub.f32 %v1057, %v2230
        %v2267 = vsub.f32 %v1059, %v2230
        %v2268 = vsub.f32 %v1063, %v2233
        %v2269 = vsub.f32 %v1065, %v2233
        %v2270 = vsub.f32 %v1069, %v2236
        %v2271 = vsub.f32 %v1071, %v2236
        %v2272 = vsub.f32 %v1075, %v2239
        %v2273 = vsub.f32 %v1077, %v2239
        %v2274 = vsub.f32 %v1081, %v2242
        %v2275 = vsub.f32 %v1083, %v2242
        %v2276 = vsub.f32 %v1087, %v2245
        %v2277 = vsub.f32 %v1089, %v2245
        %v2278 = vmul.f32 %v2246, 1.442695
        %v2279 = vpow.pop %v2278
        %v2280 = vmul.f32 %v2247, 1.442695
        %v2281 = vpow.pop %v2280
        %v2282 = vmul.f32 %v2248, 1.442695
        %v2283 = vpow.pop %v2282
        %v2284 = vmul.f32 %v2249, 1.442695
        %v2285 = vpow.pop %v2284
        %v2286 = vmul.f32 %v2250, 1.442695
        %v2287 = vpow.pop %v2286
        %v2288 = vmul.f32 %v2251, 1.442695
        %v2289 = vpow.pop %v2288
        %v2290 = vmul.f32 %v2252, 1.442695
        %v2291 = vpow.pop %v2290
        %v2292 = vmul.f32 %v2253, 1.442695
        %v2293 = vpow.pop %v2292
        %v2294 = vmul.f32 %v2254, 1.442695
        %v2295 = vpow.pop %v2294
        %v2296 = vmul.f32 %v2255, 1.442695
        %v2297 = vpow.pop %v2296
        %v2298 = vmul.f32 %v2256, 1.442695
        %v2299 = vpow.pop %v2298
        %v2300 = vmul.f32 %v2257, 1.442695
        %v2301 = vpow.pop %v2300
        %v2302 = vmul.f32 %v2258, 1.442695
        %v2303 = vpow.pop %v2302
        %v2304 = vmul.f32 %v2259, 1.442695
        %v2305 = vpow.pop %v2304
        %v2306 = vmul.f32 %v2260, 1.442695
        %v2307 = vpow.pop %v2306
        %v2308 = vmul.f32 %v2261, 1.442695
        %v2309 = vpow.pop %v2308
        %v2310 = vmul.f32 %v2262, 1.442695
        %v2311 = vpow.pop %v2310
        %v2312 = vmul.f32 %v2263, 1.442695
        %v2313 = vpow.pop %v2312
        %v2314 = vmul.f32 %v2264, 1.442695
        %v2315 = vpow.pop %v2314
        %v2316 = vmul.f32 %v2265, 1.442695
        %v2317 = vpow.pop %v2316
        %v2318 = vmul.f32 %v2266, 1.442695
        %v2319 = vpow.pop %v2318
        %v2320 = vmul.f32 %v2267, 1.442695
        %v2321 = vpow.pop %v2320
        %v2322 = vmul.f32 %v2268, 1.442695
        %v2323 = vpow.pop %v2322
        %v2324 = vmul.f32 %v2269, 1.442695
        %v2325 = vpow.pop %v2324
        %v2326 = vmul.f32 %v2270, 1.442695
        %v2327 = vpow.pop %v2326
        %v2328 = vmul.f32 %v2271, 1.442695
        %v2329 = vpow.pop %v2328
        %v2330 = vmul.f32 %v2272, 1.442695
        %v2331 = vpow.pop %v2330
        %v2332 = vmul.f32 %v2273, 1.442695
        %v2333 = vpow.pop %v2332
        %v2334 = vmul.f32 %v2274, 1.442695
        %v2335 = vpow.pop %v2334
        %v2336 = vmul.f32 %v2275, 1.442695
        %v2337 = vpow.pop %v2336
        %v2338 = vmul.f32 %v2276, 1.442695
        %v2339 = vpow.pop %v2338
        %v2340 = vmul.f32 %v2277, 1.442695
        %v2341 = vpow.pop %v2340
        %2342 = vmatprep.subr.mxu0 %v1444
        %2343 = vmatpush1.msra.mxu0 %v1443
        %2344 = vmatprep.subr.mxu0 %v1442
        %2345 = vmatpush1.msra.mxu0 %v1441
        %2346 = vmatprep.subr.mxu0 %v1440
        %2347 = vmatpush1.msra.mxu0 %v1439
        %2348 = vmatprep.subr.mxu0 %v1438
        %2349 = vmatpush1.msra.mxu0 %v1437
        %2350 = vmatprep.subr.mxu0 %v1436
        %2351 = vmatpush1.msra.mxu0 %v1435
        %2352 = vmatprep.subr.mxu0 %v1434
        %2353 = vmatpush1.msra.mxu0 %v1433
        %2354 = vmatprep.subr.mxu0 %v1432
        %2355 = vmatpush1.msra.mxu0 %v1431
        %2356 = vmatprep.subr.mxu0 %v1430
        %2357 = vmatpush1.msra.mxu0 %v1429
        %2358 = vmatprep.subr.mxu0 %v1428
        %2359 = vmatpush1.msra.mxu0 %v1427
        %2360 = vmatprep.subr.mxu0 %v1426
        %2361 = vmatpush1.msra.mxu0 %v1425
        %2362 = vmatprep.subr.mxu0 %v1424
        %2363 = vmatpush1.msra.mxu0 %v1423
        %2364 = vmatprep.subr.mxu0 %v1422
        %2365 = vmatpush1.msra.mxu0 %v1421
        %2366 = vmatprep.subr.mxu0 %v1420
        %2367 = vmatpush1.msra.mxu0 %v1419
        %2368 = vmatprep.subr.mxu0 %v1418
        %2369 = vmatpush1.msra.mxu0 %v1417
        %2370 = vmatprep.subr.mxu0 %v1416
        %2371 = vmatpush1.msra.mxu0 %v1415
        %2372 = vmatprep.subr.mxu0 %v1414
        %2373 = vmatpush1.msra.mxu0 %v1413
        %2374 = vmatprep.subr.mxu0 %v1476
        %2375 = vmatpush2.msra.mxu0 %v1475
        %2376 = vmatprep.subr.mxu0 %v1474
        %2377 = vmatpush2.msra.mxu0 %v1473
        %2378 = vmatprep.subr.mxu0 %v1472
        %2379 = vmatpush2.msra.mxu0 %v1471
        %2380 = vmatprep.subr.mxu0 %v1470
        %2381 = vmatpush2.msra.mxu0 %v1469
        %2382 = vmatprep.subr.mxu0 %v1468
        %2383 = vmatpush2.msra.mxu0 %v1467
        %2384 = vmatprep.subr.mxu0 %v1466
        %2385 = vmatpush2.msra.mxu0 %v1465
        %2386 = vmatprep.subr.mxu0 %v1464
        %2387 = vmatpush2.msra.mxu0 %v1463
        %2388 = vmatprep.subr.mxu0 %v1462
        %2389 = vmatpush2.msra.mxu0 %v1461
        %2390 = vmatprep.subr.mxu0 %v1460
        %2391 = vmatpush2.msra.mxu0 %v1459
        %2392 = vmatprep.subr.mxu0 %v1458
        %2393 = vmatpush2.msra.mxu0 %v1457
        %2394 = vmatprep.subr.mxu0 %v1456
        %2395 = vmatpush2.msra.mxu0 %v1455
        %2396 = vmatprep.subr.mxu0 %v1454
        %2397 = vmatpush2.msra.mxu0 %v1453
        %2398 = vmatprep.subr.mxu0 %v1452
        %2399 = vmatpush2.msra.mxu0 %v1451
        %2400 = vmatprep.subr.mxu0 %v1450
        %2401 = vmatpush2.msra.mxu0 %v1449
        %2402 = vmatprep.subr.mxu0 %v1448
        %2403 = vmatpush2.msra.mxu0 %v1447
        %2404 = vmatprep.subr.mxu0 %v1446
        %2405 = vmatpush2.msra.mxu0 %v1445
        %2406 = vmatprep.mubr.f32.mxu0 %v2281
        %2407 = vmatmul.mubr.f32.gmra.mxu0 %v2279
        %v2408 = vpop.f32.mrf.mxu0
        %v2409 = vadd.f32 1e-30, %v2408
        %v2410 = vpop.f32.mrf.mxu0
        %v2411 = vadd.f32 1e-30, %v2410
        %2412 = vmatprep.mubr.f32.mxu0 %v2285
        %2413 = vmatmul.mubr.f32.gmra.mxu0 %v2283
        %v2414 = vpop.f32.mrf.mxu0
        %v2415 = vadd.f32 1e-30, %v2414
        %v2416 = vpop.f32.mrf.mxu0
        %v2417 = vadd.f32 1e-30, %v2416
        %2418 = vmatprep.mubr.f32.mxu0 %v2289
        %2419 = vmatmul.mubr.f32.gmra.mxu0 %v2287
        %v2420 = vpop.f32.mrf.mxu0
        %v2421 = vadd.f32 1e-30, %v2420
        %v2422 = vpop.f32.mrf.mxu0
        %v2423 = vadd.f32 1e-30, %v2422
        %2424 = vmatprep.mubr.f32.mxu0 %v2293
        %2425 = vmatmul.mubr.f32.gmra.mxu0 %v2291
        %v2426 = vpop.f32.mrf.mxu0
        %v2427 = vadd.f32 1e-30, %v2426
        %v2428 = vpop.f32.mrf.mxu0
        %v2429 = vadd.f32 1e-30, %v2428
        %2430 = vmatprep.mubr.f32.mxu0 %v2297
        %2431 = vmatmul.mubr.f32.gmra.mxu0 %v2295
        %v2432 = vpop.f32.mrf.mxu0
        %v2433 = vadd.f32 1e-30, %v2432
        %v2434 = vpop.f32.mrf.mxu0
        %v2435 = vadd.f32 1e-30, %v2434
        %2436 = vmatprep.mubr.f32.mxu0 %v2301
        %2437 = vmatmul.mubr.f32.gmra.mxu0 %v2299
        %v2438 = vpop.f32.mrf.mxu0
        %v2439 = vadd.f32 1e-30, %v2438
        %v2440 = vpop.f32.mrf.mxu0
        %v2441 = vadd.f32 1e-30, %v2440
        %2442 = vmatprep.mubr.f32.mxu0 %v2305
        %2443 = vmatmul.mubr.f32.gmra.mxu0 %v2303
        %v2444 = vpop.f32.mrf.mxu0
        %v2445 = vadd.f32 1e-30, %v2444
        %v2446 = vpop.f32.mrf.mxu0
        %v2447 = vadd.f32 1e-30, %v2446
        %2448 = vmatprep.mubr.f32.mxu0 %v2309
        %2449 = vmatmul.mubr.f32.gmra.mxu0 %v2307
        %v2450 = vpop.f32.mrf.mxu0
        %v2451 = vadd.f32 1e-30, %v2450
        %v2452 = vpop.f32.mrf.mxu0
        %v2453 = vadd.f32 1e-30, %v2452
        %2454 = vmatprep.mubr.f32.mxu0 %v2313
        %2455 = vmatmul.mubr.f32.gmra.mxu0 %v2311
        %v2456 = vpop.f32.mrf.mxu0
        %v2457 = vadd.f32 1e-30, %v2456
        %v2458 = vpop.f32.mrf.mxu0
        %v2459 = vadd.f32 1e-30, %v2458
        %2460 = vmatprep.mubr.f32.mxu0 %v2317
        %2461 = vmatmul.mubr.f32.gmra.mxu0 %v2315
        %v2462 = vpop.f32.mrf.mxu0
        %v2463 = vadd.f32 1e-30, %v2462
        %v2464 = vpop.f32.mrf.mxu0
        %v2465 = vadd.f32 1e-30, %v2464
        %2466 = vmatprep.mubr.f32.mxu0 %v2321
        %2467 = vmatmul.mubr.f32.gmra.mxu0 %v2319
        %v2468 = vpop.f32.mrf.mxu0
        %v2469 = vadd.f32 1e-30, %v2468
        %v2470 = vpop.f32.mrf.mxu0
        %v2471 = vadd.f32 1e-30, %v2470
        %2472 = vmatprep.mubr.f32.mxu0 %v2325
        %2473 = vmatmul.mubr.f32.gmra.mxu0 %v2323
        %v2474 = vpop.f32.mrf.mxu0
        %v2475 = vadd.f32 1e-30, %v2474
        %v2476 = vpop.f32.mrf.mxu0
        %v2477 = vadd.f32 1e-30, %v2476
        %2478 = vmatprep.mubr.f32.mxu0 %v2329
        %2479 = vmatmul.mubr.f32.gmra.mxu0 %v2327
        %v2480 = vpop.f32.mrf.mxu0
        %v2481 = vadd.f32 1e-30, %v2480
        %v2482 = vpop.f32.mrf.mxu0
        %v2483 = vadd.f32 1e-30, %v2482
        %2484 = vmatprep.mubr.f32.mxu0 %v2333
        %2485 = vmatmul.mubr.f32.gmra.mxu0 %v2331
        %v2486 = vpop.f32.mrf.mxu0
        %v2487 = vadd.f32 1e-30, %v2486
        %v2488 = vpop.f32.mrf.mxu0
        %v2489 = vadd.f32 1e-30, %v2488
        %2490 = vmatprep.mubr.f32.mxu0 %v2337
        %2491 = vmatmul.mubr.f32.gmra.mxu0 %v2335
        %v2492 = vpop.f32.mrf.mxu0
        %v2493 = vadd.f32 1e-30, %v2492
        %v2494 = vpop.f32.mrf.mxu0
        %v2495 = vadd.f32 1e-30, %v2494
        %2496 = vmatprep.mubr.f32.mxu0 %v2341
        %2497 = vmatmul.mubr.f32.gmra.mxu0 %v2339
        %v2498 = vpop.f32.mrf.mxu0
        %v2499 = vadd.f32 1e-30, %v2498
        %v2500 = vpop.f32.mrf.mxu0
        %v2501 = vadd.f32 1e-30, %v2500
        %2502 = vdwg.mxu0
        %v2503 = vrcp.pop %v2409
        %v2504 = vrcp.pop %v2411
        %v2505 = vrcp.pop %v2415
        %v2506 = vrcp.pop %v2417
        %v2507 = vrcp.pop %v2421
        %v2508 = vrcp.pop %v2423
        %v2509 = vrcp.pop %v2427
        %v2510 = vrcp.pop %v2429
        %v2511 = vrcp.pop %v2433
        %v2512 = vrcp.pop %v2435
        %v2513 = vrcp.pop %v2439
        %v2514 = vrcp.pop %v2441
        %v2515 = vrcp.pop %v2445
        %v2516 = vrcp.pop %v2447
        %v2517 = vrcp.pop %v2451
        %v2518 = vrcp.pop %v2453
        %v2519 = vrcp.pop %v2457
        %v2520 = vrcp.pop %v2459
        %v2521 = vrcp.pop %v2463
        %v2522 = vrcp.pop %v2465
        %v2523 = vrcp.pop %v2469
        %v2524 = vrcp.pop %v2471
        %v2525 = vrcp.pop %v2475
        %v2526 = vrcp.pop %v2477
        %v2527 = vrcp.pop %v2481
        %v2528 = vrcp.pop %v2483
        %v2529 = vrcp.pop %v2487
        %v2530 = vrcp.pop %v2489
        %v2531 = vrcp.pop %v2493
        %v2532 = vrcp.pop %v2495
        %v2533 = vrcp.pop %v2499
        %v2534 = vrcp.pop %v2501
        %v2535 = vmul.f32 %v2279, %v2503
        %v2536 = vmul.f32 %v2281, %v2504
        %v2537 = vmul.f32 %v2283, %v2505
        %v2538 = vmul.f32 %v2285, %v2506
        %v2539 = vmul.f32 %v2287, %v2507
        %v2540 = vmul.f32 %v2289, %v2508
        %v2541 = vmul.f32 %v2291, %v2509
        %v2542 = vmul.f32 %v2293, %v2510
        %v2543 = vmul.f32 %v2295, %v2511
        %v2544 = vmul.f32 %v2297, %v2512
        %v2545 = vmul.f32 %v2299, %v2513
        %v2546 = vmul.f32 %v2301, %v2514
        %v2547 = vmul.f32 %v2303, %v2515
        %v2548 = vmul.f32 %v2305, %v2516
        %v2549 = vmul.f32 %v2307, %v2517
        %v2550 = vmul.f32 %v2309, %v2518
        %v2551 = vmul.f32 %v2311, %v2519
        %v2552 = vmul.f32 %v2313, %v2520
        %v2553 = vmul.f32 %v2315, %v2521
        %v2554 = vmul.f32 %v2317, %v2522
        %v2555 = vmul.f32 %v2319, %v2523
        %v2556 = vmul.f32 %v2321, %v2524
        %v2557 = vmul.f32 %v2323, %v2525
        %v2558 = vmul.f32 %v2325, %v2526
        %v2559 = vmul.f32 %v2327, %v2527
        %v2560 = vmul.f32 %v2329, %v2528
        %v2561 = vmul.f32 %v2331, %v2529
        %v2562 = vmul.f32 %v2333, %v2530
        %v2563 = vmul.f32 %v2335, %v2531
        %v2564 = vmul.f32 %v2337, %v2532
        %v2565 = vmul.f32 %v2339, %v2533
        %v2566 = vmul.f32 %v2341, %v2534
        %2567 = vst [vmem:[%s577] sm:$0xff] %v2535
        %2568 = vst [vmem:[%s577 + $0x8] sm:$0xff] %v2536
        %2569 = vst [vmem:[%s577 + $0x10] sm:$0xff] %v2537
        %2570 = vst [vmem:[%s577 + $0x18] sm:$0xff] %v2538
        %2571 = vst [vmem:[%s577 + $0x20] sm:$0xff] %v2539
        %2572 = vst [vmem:[%s577 + $0x28] sm:$0xff] %v2540
        %2573 = vst [vmem:[%s577 + $0x30] sm:$0xff] %v2541
        %2574 = vst [vmem:[%s577 + $0x38] sm:$0xff] %v2542
        %2575 = vst [vmem:[%s577 + $0x40] sm:$0xff] %v2543
        %2576 = vst [vmem:[%s577 + $0x48] sm:$0xff] %v2544
        %2577 = vst [vmem:[%s577 + $0x50] sm:$0xff] %v2545
        %2578 = vst [vmem:[%s577 + $0x58] sm:$0xff] %v2546
        %2579 = vst [vmem:[%s577 + $0x60] sm:$0xff] %v2547
        %2580 = vst [vmem:[%s577 + $0x68] sm:$0xff] %v2548
        %2581 = vst [vmem:[%s577 + $0x70] sm:$0xff] %v2549
        %2582 = vst [vmem:[%s577 + $0x78] sm:$0xff] %v2550
        %2583 = vst [vmem:[%s577 + $0x80] sm:$0xff] %v2551
        %2584 = vst [vmem:[%s577 + $0x88] sm:$0xff] %v2552
        %2585 = vst [vmem:[%s577 + $0x90] sm:$0xff] %v2553
        %2586 = vst [vmem:[%s577 + $0x98] sm:$0xff] %v2554
        %2587 = vst [vmem:[%s577 + $0xa0] sm:$0xff] %v2555
        %2588 = vst [vmem:[%s577 + $0xa8] sm:$0xff] %v2556
        %2589 = vst [vmem:[%s577 + $0xb0] sm:$0xff] %v2557
        %2590 = vst [vmem:[%s577 + $0xb8] sm:$0xff] %v2558
        %2591 = vst [vmem:[%s577 + $0xc0] sm:$0xff] %v2559
        %2592 = vst [vmem:[%s577 + $0xc8] sm:$0xff] %v2560
        %2593 = vst [vmem:[%s577 + $0xd0] sm:$0xff] %v2561
        %2594 = vst [vmem:[%s577 + $0xd8] sm:$0xff] %v2562
        %2595 = vst [vmem:[%s577 + $0xe0] sm:$0xff] %v2563
        %2596 = vst [vmem:[%s577 + $0xe8] sm:$0xff] %v2564
        %2597 = vst [vmem:[%s577 + $0xf0] sm:$0xff] %v2565
        %2598 = vst [vmem:[%s577 + $0xf8] sm:$0xff] %v2566
        %v2599 = vld [vmem:[%s8] sm:$0xff]
        %v2600 = vld [vmem:[%s9] sm:$0xff]
        %v2601 = vld [vmem:[%s9 + $0x8] sm:$0xff]
        %v2602 = vld [vmem:[%s9 + $0x10] sm:$0xff]
        %v2603 = vld [vmem:[%s9 + $0x18] sm:$0xff]
        %v2604 = vld [vmem:[%s9 + $0x20] sm:$0xff]
        %v2605 = vld [vmem:[%s9 + $0x28] sm:$0xff]
        %v2606 = vld [vmem:[%s9 + $0x30] sm:$0xff]
        %v2607 = vld [vmem:[%s9 + $0x38] sm:$0xff]
        %v2608 = vld [vmem:[%s9 + $0x40] sm:$0xff]
        %v2609 = vld [vmem:[%s9 + $0x48] sm:$0xff]
        %v2610 = vld [vmem:[%s9 + $0x50] sm:$0xff]
        %v2611 = vld [vmem:[%s9 + $0x58] sm:$0xff]
        %v2612 = vld [vmem:[%s9 + $0x60] sm:$0xff]
        %v2613 = vld [vmem:[%s9 + $0x68] sm:$0xff]
        %v2614 = vld [vmem:[%s9 + $0x70] sm:$0xff]
        %v2615 = vld [vmem:[%s9 + $0x78] sm:$0xff]
        %v2616 = vld [vmem:[%s9 + $0x80] sm:$0xff]
        %v2617 = vld [vmem:[%s9 + $0x88] sm:$0xff]
        %v2618 = vld [vmem:[%s9 + $0x90] sm:$0xff]
        %v2619 = vld [vmem:[%s9 + $0x98] sm:$0xff]
        %v2620 = vld [vmem:[%s9 + $0xa0] sm:$0xff]
        %v2621 = vld [vmem:[%s9 + $0xa8] sm:$0xff]
        %v2622 = vld [vmem:[%s9 + $0xb0] sm:$0xff]
        %v2623 = vld [vmem:[%s9 + $0xb8] sm:$0xff]
        %v2624 = vld [vmem:[%s9 + $0xc0] sm:$0xff]
        %v2625 = vld [vmem:[%s9 + $0xc8] sm:$0xff]
        %v2626 = vld [vmem:[%s9 + $0xd0] sm:$0xff]
        %v2627 = vld [vmem:[%s9 + $0xd8] sm:$0xff]
        %v2628 = vld [vmem:[%s9 + $0xe0] sm:$0xff]
        %v2629 = vld [vmem:[%s9 + $0xe8] sm:$0xff]
        %v2630 = vld [vmem:[%s9 + $0xf0] sm:$0xff]
        %v2631 = vld [vmem:[%s9 + $0xf8] sm:$0xff]
        %2632 = vmatprep.subr.mxu0 0.0
        %2633 = vmatpush1.msra.mxu0 %v2615
        %2634 = vmatprep.subr.mxu0 0.0
        %2635 = vmatpush1.msra.mxu0 %v2614
        %2636 = vmatprep.subr.mxu0 0.0
        %2637 = vmatpush1.msra.mxu0 %v2613
        %2638 = vmatprep.subr.mxu0 0.0
        %2639 = vmatpush1.msra.mxu0 %v2612
        %2640 = vmatprep.subr.mxu0 0.0
        %2641 = vmatpush1.msra.mxu0 %v2611
        %2642 = vmatprep.subr.mxu0 0.0
        %2643 = vmatpush1.msra.mxu0 %v2610
        %2644 = vmatprep.subr.mxu0 0.0
        %2645 = vmatpush1.msra.mxu0 %v2609
        %2646 = vmatprep.subr.mxu0 0.0
        %2647 = vmatpush1.msra.mxu0 %v2608
        %2648 = vmatprep.subr.mxu0 0.0
        %2649 = vmatpush1.msra.mxu0 %v2607
        %2650 = vmatprep.subr.mxu0 0.0
        %2651 = vmatpush1.msra.mxu0 %v2606
        %2652 = vmatprep.subr.mxu0 0.0
        %2653 = vmatpush1.msra.mxu0 %v2605
        %2654 = vmatprep.subr.mxu0 0.0
        %2655 = vmatpush1.msra.mxu0 %v2604
        %2656 = vmatprep.subr.mxu0 0.0
        %2657 = vmatpush1.msra.mxu0 %v2603
        %2658 = vmatprep.subr.mxu0 0.0
        %2659 = vmatpush1.msra.mxu0 %v2602
        %2660 = vmatprep.subr.mxu0 0.0
        %2661 = vmatpush1.msra.mxu0 %v2601
        %2662 = vmatprep.subr.mxu0 0.0
        %2663 = vmatpush1.msra.mxu0 %v2600
        %2664 = vmatprep.subr.mxu0 0.0
        %2665 = vmatpush2.msra.mxu0 %v2631
        %2666 = vmatprep.subr.mxu0 0.0
        %2667 = vmatpush2.msra.mxu0 %v2630
        %2668 = vmatprep.subr.mxu0 0.0
        %2669 = vmatpush2.msra.mxu0 %v2629
        %2670 = vmatprep.subr.mxu0 0.0
        %2671 = vmatpush2.msra.mxu0 %v2628
        %2672 = vmatprep.subr.mxu0 0.0
        %2673 = vmatpush2.msra.mxu0 %v2627
        %2674 = vmatprep.subr.mxu0 0.0
        %2675 = vmatpush2.msra.mxu0 %v2626
        %2676 = vmatprep.subr.mxu0 0.0
        %2677 = vmatpush2.msra.mxu0 %v2625
        %2678 = vmatprep.subr.mxu0 0.0
        %2679 = vmatpush2.msra.mxu0 %v2624
        %2680 = vmatprep.subr.mxu0 0.0
        %2681 = vmatpush2.msra.mxu0 %v2623
        %2682 = vmatprep.subr.mxu0 0.0
        %2683 = vmatpush2.msra.mxu0 %v2622
        %2684 = vmatprep.subr.mxu0 0.0
        %2685 = vmatpush2.msra.mxu0 %v2621
        %2686 = vmatprep.subr.mxu0 0.0
        %2687 = vmatpush2.msra.mxu0 %v2620
        %2688 = vmatprep.subr.mxu0 0.0
        %2689 = vmatpush2.msra.mxu0 %v2619
        %2690 = vmatprep.subr.mxu0 0.0
        %2691 = vmatpush2.msra.mxu0 %v2618
        %2692 = vmatprep.subr.mxu0 0.0
        %2693 = vmatpush2.msra.mxu0 %v2617
        %2694 = vmatprep.subr.mxu0 0.0
        %2695 = vmatpush2.msra.mxu0 %v2616
        %2696 = vmatprep.mubr.f32.mxu0 %v2167
        %2697 = vmatmul.mubr.f32.gmra.mxu0 %v2166
        %v2698 = vpop.f32.mrf.mxu0
        %v2699 = vadd.f32 0.0, %v2698
        %v2700 = vpop.f32.mrf.mxu0
        %2701 = vmatprep.mubr.f32.mxu0 %v2169
        %2702 = vmatmul.mubr.f32.gmra.mxu0 %v2168
        %v2703 = vpop.f32.mrf.mxu0
        %v2704 = vadd.f32 0.0, %v2703
        %v2705 = vpop.f32.mrf.mxu0
        %2706 = vmatprep.mubr.f32.mxu0 %v2171
        %2707 = vmatmul.mubr.f32.gmra.mxu0 %v2170
        %v2708 = vpop.f32.mrf.mxu0
        %v2709 = vadd.f32 0.0, %v2708
        %v2710 = vpop.f32.mrf.mxu0
        %2711 = vmatprep.mubr.f32.mxu0 %v2173
        %2712 = vmatmul.mubr.f32.gmra.mxu0 %v2172
        %v2713 = vpop.f32.mrf.mxu0
        %v2714 = vadd.f32 0.0, %v2713
        %v2715 = vpop.f32.mrf.mxu0
        %2716 = vmatprep.mubr.f32.mxu0 %v2175
        %2717 = vmatmul.mubr.f32.gmra.mxu0 %v2174
        %v2718 = vpop.f32.mrf.mxu0
        %v2719 = vadd.f32 0.0, %v2718
        %v2720 = vpop.f32.mrf.mxu0
        %2721 = vmatprep.mubr.f32.mxu0 %v2177
        %2722 = vmatmul.mubr.f32.gmra.mxu0 %v2176
        %v2723 = vpop.f32.mrf.mxu0
        %v2724 = vadd.f32 0.0, %v2723
        %v2725 = vpop.f32.mrf.mxu0
        %2726 = vmatprep.mubr.f32.mxu0 %v2179
        %2727 = vmatmul.mubr.f32.gmra.mxu0 %v2178
        %v2728 = vpop.f32.mrf.mxu0
        %v2729 = vadd.f32 0.0, %v2728
        %v2730 = vpop.f32.mrf.mxu0
        %2731 = vmatprep.mubr.f32.mxu0 %v2181
        %2732 = vmatmul.mubr.f32.gmra.mxu0 %v2180
        %v2733 = vpop.f32.mrf.mxu0
        %v2734 = vadd.f32 0.0, %v2733
        %v2735 = vpop.f32.mrf.mxu0
        %2736 = vmatprep.mubr.f32.mxu0 %v2183
        %2737 = vmatmul.mubr.f32.gmra.mxu0 %v2182
        %v2738 = vpop.f32.mrf.mxu0
        %v2739 = vadd.f32 0.0, %v2738
        %v2740 = vpop.f32.mrf.mxu0
        %2741 = vmatprep.mubr.f32.mxu0 %v2185
        %2742 = vmatmul.mubr.f32.gmra.mxu0 %v2184
        %v2743 = vpop.f32.mrf.mxu0
        %v2744 = vadd.f32 0.0, %v2743
        %v2745 = vpop.f32.mrf.mxu0
        %2746 = vmatprep.mubr.f32.mxu0 %v2187
        %2747 = vmatmul.mubr.f32.gmra.mxu0 %v2186
        %v2748 = vpop.f32.mrf.mxu0
        %v2749 = vadd.f32 0.0, %v2748
        %v2750 = vpop.f32.mrf.mxu0
        %2751 = vmatprep.mubr.f32.mxu0 %v2189
        %2752 = vmatmul.mubr.f32.gmra.mxu0 %v2188
        %v2753 = vpop.f32.mrf.mxu0
        %v2754 = vadd.f32 0.0, %v2753
        %v2755 = vpop.f32.mrf.mxu0
        %2756 = vmatprep.mubr.f32.mxu0 %v2191
        %2757 = vmatmul.mubr.f32.gmra.mxu0 %v2190
        %v2758 = vpop.f32.mrf.mxu0
        %v2759 = vadd.f32 0.0, %v2758
        %v2760 = vpop.f32.mrf.mxu0
        %2761 = vmatprep.mubr.f32.mxu0 %v2193
        %2762 = vmatmul.mubr.f32.gmra.mxu0 %v2192
        %v2763 = vpop.f32.mrf.mxu0
        %v2764 = vadd.f32 0.0, %v2763
        %v2765 = vpop.f32.mrf.mxu0
        %2766 = vmatprep.mubr.f32.mxu0 %v2195
        %2767 = vmatmul.mubr.f32.gmra.mxu0 %v2194
        %v2768 = vpop.f32.mrf.mxu0
        %v2769 = vadd.f32 0.0, %v2768
        %v2770 = vpop.f32.mrf.mxu0
        %2771 = vmatprep.mubr.f32.mxu0 %v2197
        %2772 = vmatmul.mubr.f32.gmra.mxu0 %v2196
        %v2773 = vpop.f32.mrf.mxu0
        %v2774 = vadd.f32 0.0, %v2773
        %v2775 = vpop.f32.mrf.mxu0
        %2776 = vdwg.mxu0
        %vm2777 = vcmask 64512
        %v2779 = vsel %vm2777, %v1397, 0
        %v2782 = vsel %vm2777, %v1398, 0
        %v2785 = vsel %vm2777, %v1399, 0
        %v2788 = vsel %vm2777, %v1400, 0
        %v2791 = vsel %vm2777, %v1401, 0
        %v2794 = vsel %vm2777, %v1402, 0
        %v2797 = vsel %vm2777, %v1403, 0
        %v2800 = vsel %vm2777, %v1404, 0
        %v2803 = vsel %vm2777, %v1405, 0
        %v2806 = vsel %vm2777, %v1406, 0
        %v2809 = vsel %vm2777, %v1407, 0
        %v2812 = vsel %vm2777, %v1408, 0
        %v2815 = vsel %vm2777, %v1409, 0
        %v2818 = vsel %vm2777, %v1410, 0
        %v2821 = vsel %vm2777, %v1411, 0
        %v2824 = vsel %vm2777, %v1412, 0
        %2826 = vmatprep.subr.mxu0 0.0
        %2827 = vmatpush1.msra.mxu0 0.0
        %2828 = vmatprep.subr.mxu0 0.0
        %2829 = vmatpush1.msra.mxu0 0.0
        %2830 = vmatprep.subr.mxu0 0.0
        %2831 = vmatpush1.msra.mxu0 0.0
        %2832 = vmatprep.subr.mxu0 0.0
        %2833 = vmatpush1.msra.mxu0 0.0
        %2834 = vmatprep.subr.mxu0 0.0
        %2835 = vmatpush1.msra.mxu0 0.0
        %2836 = vmatprep.subr.mxu0 0.0
        %2837 = vmatpush1.msra.mxu0 0.0
        %2838 = vmatprep.subr.mxu0 0.0
        %2839 = vmatpush1.msra.mxu0 0.0
        %2840 = vmatprep.subr.mxu0 0.0
        %2841 = vmatpush1.msra.mxu0 0.0
        %2842 = vmatprep.subr.mxu0 0.0
        %2843 = vmatpush1.msra.mxu0 0.0
        %2844 = vmatprep.subr.mxu0 0.0
        %2845 = vmatpush1.msra.mxu0 0.0
        %2846 = vmatprep.subr.mxu0 0.0
        %2847 = vmatpush1.msra.mxu0 0.0
        %2848 = vmatprep.subr.mxu0 0.0
        %2849 = vmatpush1.msra.mxu0 0.0
        %2850 = vmatprep.subr.mxu0 0.0
        %2851 = vmatpush1.msra.mxu0 0.0
        %2852 = vmatprep.subr.mxu0 0.0
        %2853 = vmatpush1.msra.mxu0 0.0
        %2854 = vmatprep.subr.mxu0 0.0
        %2855 = vmatpush1.msra.mxu0 0.0
        %2856 = vmatprep.subr.mxu0 0.0
        %2857 = vmatpush1.msra.mxu0 %v2599
        %2858 = vmatprep.subr.mxu0 0.0
        %2859 = vmatpush2.msra.mxu0 0.0
        %2860 = vmatprep.subr.mxu0 0.0
        %2861 = vmatpush2.msra.mxu0 0.0
        %2862 = vmatprep.subr.mxu0 0.0
        %2863 = vmatpush2.msra.mxu0 0.0
        %2864 = vmatprep.subr.mxu0 0.0
        %2865 = vmatpush2.msra.mxu0 0.0
        %2866 = vmatprep.subr.mxu0 0.0
        %2867 = vmatpush2.msra.mxu0 0.0
        %2868 = vmatprep.subr.mxu0 0.0
        %2869 = vmatpush2.msra.mxu0 0.0
        %2870 = vmatprep.subr.mxu0 0.0
        %2871 = vmatpush2.msra.mxu0 0.0
        %2872 = vmatprep.subr.mxu0 0.0
        %2873 = vmatpush2.msra.mxu0 0.0
        %2874 = vmatprep.subr.mxu0 0.0
        %2875 = vmatpush2.msra.mxu0 0.0
        %2876 = vmatprep.subr.mxu0 0.0
        %2877 = vmatpush2.msra.mxu0 0.0
        %2878 = vmatprep.subr.mxu0 0.0
        %2879 = vmatpush2.msra.mxu0 0.0
        %2880 = vmatprep.subr.mxu0 0.0
        %2881 = vmatpush2.msra.mxu0 0.0
        %2882 = vmatprep.subr.mxu0 0.0
        %2883 = vmatpush2.msra.mxu0 0.0
        %2884 = vmatprep.subr.mxu0 0.0
        %2885 = vmatpush2.msra.mxu0 0.0
        %2886 = vmatprep.subr.mxu0 0.0
        %2887 = vmatpush2.msra.mxu0 0.0
        %2888 = vmatprep.subr.mxu0 0.0
        %2889 = vmatpush2.msra.mxu0 0.0
        %2890 = vmatprep.mubr.f32.mxu0 0.0
        %2891 = vmatmul.mubr.f32.gmra.mxu0 %v2779
        %v2892 = vpop.f32.mrf.mxu0
        %v2893 = vadd.f32 %v2699, %v2892
        %v2894 = vpop.f32.mrf.mxu0
        %2895 = vmatprep.mubr.f32.mxu0 0.0
        %2896 = vmatmul.mubr.f32.gmra.mxu0 %v2782
        %v2897 = vpop.f32.mrf.mxu0
        %v2898 = vadd.f32 %v2704, %v2897
        %v2899 = vpop.f32.mrf.mxu0
        %2900 = vmatprep.mubr.f32.mxu0 0.0
        %2901 = vmatmul.mubr.f32.gmra.mxu0 %v2785
        %v2902 = vpop.f32.mrf.mxu0
        %v2903 = vadd.f32 %v2709, %v2902
        %v2904 = vpop.f32.mrf.mxu0
        %2905 = vmatprep.mubr.f32.mxu0 0.0
        %2906 = vmatmul.mubr.f32.gmra.mxu0 %v2788
        %v2907 = vpop.f32.mrf.mxu0
        %v2908 = vadd.f32 %v2714, %v2907
        %v2909 = vpop.f32.mrf.mxu0
        %2910 = vmatprep.mubr.f32.mxu0 0.0
        %2911 = vmatmul.mubr.f32.gmra.mxu0 %v2791
        %v2912 = vpop.f32.mrf.mxu0
        %v2913 = vadd.f32 %v2719, %v2912
        %v2914 = vpop.f32.mrf.mxu0
        %2915 = vmatprep.mubr.f32.mxu0 0.0
        %2916 = vmatmul.mubr.f32.gmra.mxu0 %v2794
        %v2917 = vpop.f32.mrf.mxu0
        %v2918 = vadd.f32 %v2724, %v2917
        %v2919 = vpop.f32.mrf.mxu0
        %2920 = vmatprep.mubr.f32.mxu0 0.0
        %2921 = vmatmul.mubr.f32.gmra.mxu0 %v2797
        %v2922 = vpop.f32.mrf.mxu0
        %v2923 = vadd.f32 %v2729, %v2922
        %v2924 = vpop.f32.mrf.mxu0
        %2925 = vmatprep.mubr.f32.mxu0 0.0
        %2926 = vmatmul.mubr.f32.gmra.mxu0 %v2800
        %v2927 = vpop.f32.mrf.mxu0
        %v2928 = vadd.f32 %v2734, %v2927
        %v2929 = vpop.f32.mrf.mxu0
        %2930 = vmatprep.mubr.f32.mxu0 0.0
        %2931 = vmatmul.mubr.f32.gmra.mxu0 %v2803
        %v2932 = vpop.f32.mrf.mxu0
        %v2933 = vadd.f32 %v2739, %v2932
        %v2934 = vpop.f32.mrf.mxu0
        %2935 = vmatprep.mubr.f32.mxu0 0.0
        %2936 = vmatmul.mubr.f32.gmra.mxu0 %v2806
        %v2937 = vpop.f32.mrf.mxu0
        %v2938 = vadd.f32 %v2744, %v2937
        %v2939 = vpop.f32.mrf.mxu0
        %2940 = vmatprep.mubr.f32.mxu0 0.0
        %2941 = vmatmul.mubr.f32.gmra.mxu0 %v2809
        %v2942 = vpop.f32.mrf.mxu0
        %v2943 = vadd.f32 %v2749, %v2942
        %v2944 = vpop.f32.mrf.mxu0
        %2945 = vmatprep.mubr.f32.mxu0 0.0
        %2946 = vmatmul.mubr.f32.gmra.mxu0 %v2812
        %v2947 = vpop.f32.mrf.mxu0
        %v2948 = vadd.f32 %v2754, %v2947
        %v2949 = vpop.f32.mrf.mxu0
        %2950 = vmatprep.mubr.f32.mxu0 0.0
        %2951 = vmatmul.mubr.f32.gmra.mxu0 %v2815
        %v2952 = vpop.f32.mrf.mxu0
        %v2953 = vadd.f32 %v2759, %v2952
        %v2954 = vpop.f32.mrf.mxu0
        %2955 = vmatprep.mubr.f32.mxu0 0.0
        %2956 = vmatmul.mubr.f32.gmra.mxu0 %v2818
        %v2957 = vpop.f32.mrf.mxu0
        %v2958 = vadd.f32 %v2764, %v2957
        %v2959 = vpop.f32.mrf.mxu0
        %2960 = vmatprep.mubr.f32.mxu0 0.0
        %2961 = vmatmul.mubr.f32.gmra.mxu0 %v2821
        %v2962 = vpop.f32.mrf.mxu0
        %v2963 = vadd.f32 %v2769, %v2962
        %v2964 = vpop.f32.mrf.mxu0
        %2965 = vmatprep.mubr.f32.mxu0 0.0
        %2966 = vmatmul.mubr.f32.gmra.mxu0 %v2824
        %v2967 = vpop.f32.mrf.mxu0
        %v2968 = vadd.f32 %v2774, %v2967
        %v2969 = vpop.f32.mrf.mxu0
        %2970 = vdwg.mxu0
        %v2971 = vld [vmem:[%s10] sm:$0x1]
        %v2973 = vlaneseq
        %v2974 = vshrl.u32 %v2973, 7
        %v2975 = vsub.s32 0, %v2974
        %v2976 = vrot.slane %v2971, %v2975
        %v2978 = vadd.f32 %v2893, %v2976
        %v2979 = vadd.f32 %v2898, %v2976
        %v2980 = vadd.f32 %v2903, %v2976
        %v2981 = vadd.f32 %v2908, %v2976
        %v2982 = vadd.f32 %v2913, %v2976
        %v2983 = vadd.f32 %v2918, %v2976
        %v2984 = vadd.f32 %v2923, %v2976
        %v2985 = vadd.f32 %v2928, %v2976
        %v2986 = vadd.f32 %v2933, %v2976
        %v2987 = vadd.f32 %v2938, %v2976
        %v2988 = vadd.f32 %v2943, %v2976
        %v2989 = vadd.f32 %v2948, %v2976
        %v2990 = vadd.f32 %v2953, %v2976
        %v2991 = vadd.f32 %v2958, %v2976
        %v2992 = vadd.f32 %v2963, %v2976
        %v2993 = vadd.f32 %v2968, %v2976
        %v2994 = vmax.f32 %v2978, 0.0
        %v2995 = vmax.f32 %v2979, 0.0
        %v2996 = vmax.f32 %v2980, 0.0
        %v2997 = vmax.f32 %v2981, 0.0
        %v2998 = vmax.f32 %v2982, 0.0
        %v2999 = vmax.f32 %v2983, 0.0
        %v3000 = vmax.f32 %v2984, 0.0
        %v3001 = vmax.f32 %v2985, 0.0
        %v3002 = vmax.f32 %v2986, 0.0
        %v3003 = vmax.f32 %v2987, 0.0
        %v3004 = vmax.f32 %v2988, 0.0
        %v3005 = vmax.f32 %v2989, 0.0
        %v3006 = vmax.f32 %v2990, 0.0
        %v3007 = vmax.f32 %v2991, 0.0
        %v3008 = vmax.f32 %v2992, 0.0
        %v3009 = vmax.f32 %v2993, 0.0
        %v3010 = vld [vmem:[%s11] sm:$0xff]
        %v3011 = vld [vmem:[%s11 + $0x8] sm:$0xff]
        %v3012 = vld [vmem:[%s11 + $0x10] sm:$0xff]
        %v3013 = vld [vmem:[%s11 + $0x18] sm:$0xff]
        %v3014 = vld [vmem:[%s11 + $0x20] sm:$0xff]
        %v3015 = vld [vmem:[%s11 + $0x28] sm:$0xff]
        %v3016 = vld [vmem:[%s11 + $0x30] sm:$0xff]
        %v3017 = vld [vmem:[%s11 + $0x38] sm:$0xff]
        %v3018 = vld [vmem:[%s12] sm:$0x1]
        %v3020 = vlaneseq
        %v3021 = vshrl.u32 %v3020, 7
        %v3022 = vsub.s32 0, %v3021
        %v3023 = vrot.slane %v3018, %v3022
        %vm3025 = vcmask 523264
        %v3027 = vsel %vm3025, %v2994, 0
        %v3030 = vsel %vm3025, %v2995, 0
        %v3033 = vsel %vm3025, %v2996, 0
        %v3036 = vsel %vm3025, %v2997, 0
        %v3039 = vsel %vm3025, %v2998, 0
        %v3042 = vsel %vm3025, %v2999, 0
        %v3045 = vsel %vm3025, %v3000, 0
        %v3048 = vsel %vm3025, %v3001, 0
        %v3051 = vsel %vm3025, %v3002, 0
        %v3054 = vsel %vm3025, %v3003, 0
        %v3057 = vsel %vm3025, %v3004, 0
        %v3060 = vsel %vm3025, %v3005, 0
        %v3063 = vsel %vm3025, %v3006, 0
        %v3066 = vsel %vm3025, %v3007, 0
        %v3069 = vsel %vm3025, %v3008, 0
        %v3072 = vsel %vm3025, %v3009, 0
        %3074 = vmatprep.subr.mxu0 0.0
        %3075 = vmatpush1.msra.mxu0 0.0
        %3076 = vmatprep.subr.mxu0 0.0
        %3077 = vmatpush1.msra.mxu0 0.0
        %3078 = vmatprep.subr.mxu0 0.0
        %3079 = vmatpush1.msra.mxu0 0.0
        %3080 = vmatprep.subr.mxu0 0.0
        %3081 = vmatpush1.msra.mxu0 0.0
        %3082 = vmatprep.subr.mxu0 0.0
        %3083 = vmatpush1.msra.mxu0 0.0
        %3084 = vmatprep.subr.mxu0 0.0
        %3085 = vmatpush1.msra.mxu0 0.0
        %3086 = vmatprep.subr.mxu0 0.0
        %3087 = vmatpush1.msra.mxu0 0.0
        %3088 = vmatprep.subr.mxu0 0.0
        %3089 = vmatpush1.msra.mxu0 0.0
        %3090 = vmatprep.subr.mxu0 0.0
        %3091 = vmatpush1.msra.mxu0 %v3017
        %3092 = vmatprep.subr.mxu0 0.0
        %3093 = vmatpush1.msra.mxu0 %v3016
        %3094 = vmatprep.subr.mxu0 0.0
        %3095 = vmatpush1.msra.mxu0 %v3015
        %3096 = vmatprep.subr.mxu0 0.0
        %3097 = vmatpush1.msra.mxu0 %v3014
        %3098 = vmatprep.subr.mxu0 0.0
        %3099 = vmatpush1.msra.mxu0 %v3013
        %3100 = vmatprep.subr.mxu0 0.0
        %3101 = vmatpush1.msra.mxu0 %v3012
        %3102 = vmatprep.subr.mxu0 0.0
        %3103 = vmatpush1.msra.mxu0 %v3011
        %3104 = vmatprep.subr.mxu0 0.0
        %3105 = vmatpush1.msra.mxu0 %v3010
        %3106 = vmatprep.subr.mxu0 0.0
        %3107 = vmatpush2.msra.mxu0 0.0
        %3108 = vmatprep.subr.mxu0 0.0
        %3109 = vmatpush2.msra.mxu0 0.0
        %3110 = vmatprep.subr.mxu0 0.0
        %3111 = vmatpush2.msra.mxu0 0.0
        %3112 = vmatprep.subr.mxu0 0.0
        %3113 = vmatpush2.msra.mxu0 0.0
        %3114 = vmatprep.subr.mxu0 0.0
        %3115 = vmatpush2.msra.mxu0 0.0
        %3116 = vmatprep.subr.mxu0 0.0
        %3117 = vmatpush2.msra.mxu0 0.0
        %3118 = vmatprep.subr.mxu0 0.0
        %3119 = vmatpush2.msra.mxu0 0.0
        %3120 = vmatprep.subr.mxu0 0.0
        %3121 = vmatpush2.msra.mxu0 0.0
        %3122 = vmatprep.subr.mxu0 0.0
        %3123 = vmatpush2.msra.mxu0 0.0
        %3124 = vmatprep.subr.mxu0 0.0
        %3125 = vmatpush2.msra.mxu0 0.0
        %3126 = vmatprep.subr.mxu0 0.0
        %3127 = vmatpush2.msra.mxu0 0.0
        %3128 = vmatprep.subr.mxu0 0.0
        %3129 = vmatpush2.msra.mxu0 0.0
        %3130 = vmatprep.subr.mxu0 0.0
        %3131 = vmatpush2.msra.mxu0 0.0
        %3132 = vmatprep.subr.mxu0 0.0
        %3133 = vmatpush2.msra.mxu0 0.0
        %3134 = vmatprep.subr.mxu0 0.0
        %3135 = vmatpush2.msra.mxu0 0.0
        %3136 = vmatprep.subr.mxu0 0.0
        %3137 = vmatpush2.msra.mxu0 0.0
        %3138 = vmatprep.mubr.f32.mxu0 0.0
        %3139 = vmatmul.mubr.f32.gmra.mxu0 %v3027
        %v3140 = vpop.f32.mrf.mxu0
        %v3141 = vadd.f32 %v3023, %v3140
        %v3142 = vpop.f32.mrf.mxu0
        %3143 = vmatprep.mubr.f32.mxu0 0.0
        %3144 = vmatmul.mubr.f32.gmra.mxu0 %v3030
        %v3145 = vpop.f32.mrf.mxu0
        %v3146 = vadd.f32 %v3023, %v3145
        %v3147 = vpop.f32.mrf.mxu0
        %3148 = vmatprep.mubr.f32.mxu0 0.0
        %3149 = vmatmul.mubr.f32.gmra.mxu0 %v3033
        %v3150 = vpop.f32.mrf.mxu0
        %v3151 = vadd.f32 %v3023, %v3150
        %v3152 = vpop.f32.mrf.mxu0
        %3153 = vmatprep.mubr.f32.mxu0 0.0
        %3154 = vmatmul.mubr.f32.gmra.mxu0 %v3036
        %v3155 = vpop.f32.mrf.mxu0
        %v3156 = vadd.f32 %v3023, %v3155
        %v3157 = vpop.f32.mrf.mxu0
        %3158 = vmatprep.mubr.f32.mxu0 0.0
        %3159 = vmatmul.mubr.f32.gmra.mxu0 %v3039
        %v3160 = vpop.f32.mrf.mxu0
        %v3161 = vadd.f32 %v3023, %v3160
        %v3162 = vpop.f32.mrf.mxu0
        %3163 = vmatprep.mubr.f32.mxu0 0.0
        %3164 = vmatmul.mubr.f32.gmra.mxu0 %v3042
        %v3165 = vpop.f32.mrf.mxu0
        %v3166 = vadd.f32 %v3023, %v3165
        %v3167 = vpop.f32.mrf.mxu0
        %3168 = vmatprep.mubr.f32.mxu0 0.0
        %3169 = vmatmul.mubr.f32.gmra.mxu0 %v3045
        %v3170 = vpop.f32.mrf.mxu0
        %v3171 = vadd.f32 %v3023, %v3170
        %v3172 = vpop.f32.mrf.mxu0
        %3173 = vmatprep.mubr.f32.mxu0 0.0
        %3174 = vmatmul.mubr.f32.gmra.mxu0 %v3048
        %v3175 = vpop.f32.mrf.mxu0
        %v3176 = vadd.f32 %v3023, %v3175
        %v3177 = vpop.f32.mrf.mxu0
        %3178 = vmatprep.mubr.f32.mxu0 0.0
        %3179 = vmatmul.mubr.f32.gmra.mxu0 %v3051
        %v3180 = vpop.f32.mrf.mxu0
        %v3181 = vadd.f32 %v3023, %v3180
        %v3182 = vpop.f32.mrf.mxu0
        %3183 = vmatprep.mubr.f32.mxu0 0.0
        %3184 = vmatmul.mubr.f32.gmra.mxu0 %v3054
        %v3185 = vpop.f32.mrf.mxu0
        %v3186 = vadd.f32 %v3023, %v3185
        %v3187 = vpop.f32.mrf.mxu0
        %3188 = vmatprep.mubr.f32.mxu0 0.0
        %3189 = vmatmul.mubr.f32.gmra.mxu0 %v3057
        %v3190 = vpop.f32.mrf.mxu0
        %v3191 = vadd.f32 %v3023, %v3190
        %v3192 = vpop.f32.mrf.mxu0
        %3193 = vmatprep.mubr.f32.mxu0 0.0
        %3194 = vmatmul.mubr.f32.gmra.mxu0 %v3060
        %v3195 = vpop.f32.mrf.mxu0
        %v3196 = vadd.f32 %v3023, %v3195
        %v3197 = vpop.f32.mrf.mxu0
        %3198 = vmatprep.mubr.f32.mxu0 0.0
        %3199 = vmatmul.mubr.f32.gmra.mxu0 %v3063
        %v3200 = vpop.f32.mrf.mxu0
        %v3201 = vadd.f32 %v3023, %v3200
        %v3202 = vpop.f32.mrf.mxu0
        %3203 = vmatprep.mubr.f32.mxu0 0.0
        %3204 = vmatmul.mubr.f32.gmra.mxu0 %v3066
        %v3205 = vpop.f32.mrf.mxu0
        %v3206 = vadd.f32 %v3023, %v3205
        %v3207 = vpop.f32.mrf.mxu0
        %3208 = vmatprep.mubr.f32.mxu0 0.0
        %3209 = vmatmul.mubr.f32.gmra.mxu0 %v3069
        %v3210 = vpop.f32.mrf.mxu0
        %v3211 = vadd.f32 %v3023, %v3210
        %v3212 = vpop.f32.mrf.mxu0
        %3213 = vmatprep.mubr.f32.mxu0 0.0
        %3214 = vmatmul.mubr.f32.gmra.mxu0 %v3072
        %v3215 = vpop.f32.mrf.mxu0
        %v3216 = vadd.f32 %v3023, %v3215
        %v3217 = vpop.f32.mrf.mxu0
        %3218 = vdwg.mxu0
        %v3219 = vxor.u32 %v3141, 2147483648
        %v3220 = vxor.u32 %v3146, 2147483648
        %v3221 = vxor.u32 %v3151, 2147483648
        %v3222 = vxor.u32 %v3156, 2147483648
        %v3223 = vxor.u32 %v3161, 2147483648
        %v3224 = vxor.u32 %v3166, 2147483648
        %v3225 = vxor.u32 %v3171, 2147483648
        %v3226 = vxor.u32 %v3176, 2147483648
        %v3227 = vxor.u32 %v3181, 2147483648
        %v3228 = vxor.u32 %v3186, 2147483648
        %v3229 = vxor.u32 %v3191, 2147483648
        %v3230 = vxor.u32 %v3196, 2147483648
        %v3231 = vxor.u32 %v3201, 2147483648
        %v3232 = vxor.u32 %v3206, 2147483648
        %v3233 = vxor.u32 %v3211, 2147483648
        %v3234 = vxor.u32 %v3216, 2147483648
        %v3235 = vmul.f32 %v3219, 1.442695
        %v3236 = vpow.pop %v3235
        %v3237 = vmul.f32 %v3220, 1.442695
        %v3238 = vpow.pop %v3237
        %v3239 = vmul.f32 %v3221, 1.442695
        %v3240 = vpow.pop %v3239
        %v3241 = vmul.f32 %v3222, 1.442695
        %v3242 = vpow.pop %v3241
        %v3243 = vmul.f32 %v3223, 1.442695
        %v3244 = vpow.pop %v3243
        %v3245 = vmul.f32 %v3224, 1.442695
        %v3246 = vpow.pop %v3245
        %v3247 = vmul.f32 %v3225, 1.442695
        %v3248 = vpow.pop %v3247
        %v3249 = vmul.f32 %v3226, 1.442695
        %v3250 = vpow.pop %v3249
        %v3251 = vmul.f32 %v3227, 1.442695
        %v3252 = vpow.pop %v3251
        %v3253 = vmul.f32 %v3228, 1.442695
        %v3254 = vpow.pop %v3253
        %v3255 = vmul.f32 %v3229, 1.442695
        %v3256 = vpow.pop %v3255
        %v3257 = vmul.f32 %v3230, 1.442695
        %v3258 = vpow.pop %v3257
        %v3259 = vmul.f32 %v3231, 1.442695
        %v3260 = vpow.pop %v3259
        %v3261 = vmul.f32 %v3232, 1.442695
        %v3262 = vpow.pop %v3261
        %v3263 = vmul.f32 %v3233, 1.442695
        %v3264 = vpow.pop %v3263
        %v3265 = vmul.f32 %v3234, 1.442695
        %v3266 = vpow.pop %v3265
        %v3267 = vadd.f32 %v3236, 1.0
        %v3268 = vadd.f32 %v3238, 1.0
        %v3269 = vadd.f32 %v3240, 1.0
        %v3270 = vadd.f32 %v3242, 1.0
        %v3271 = vadd.f32 %v3244, 1.0
        %v3272 = vadd.f32 %v3246, 1.0
        %v3273 = vadd.f32 %v3248, 1.0
        %v3274 = vadd.f32 %v3250, 1.0
        %v3275 = vadd.f32 %v3252, 1.0
        %v3276 = vadd.f32 %v3254, 1.0
        %v3277 = vadd.f32 %v3256, 1.0
        %v3278 = vadd.f32 %v3258, 1.0
        %v3279 = vadd.f32 %v3260, 1.0
        %v3280 = vadd.f32 %v3262, 1.0
        %v3281 = vadd.f32 %v3264, 1.0
        %v3282 = vadd.f32 %v3266, 1.0
        %v3283 = vrcp.pop %v3267
        %v3284 = vmul.f32 1.0, %v3283
        %v3285 = vrcp.pop %v3268
        %v3286 = vmul.f32 1.0, %v3285
        %v3287 = vrcp.pop %v3269
        %v3288 = vmul.f32 1.0, %v3287
        %v3289 = vrcp.pop %v3270
        %v3290 = vmul.f32 1.0, %v3289
        %v3291 = vrcp.pop %v3271
        %v3292 = vmul.f32 1.0, %v3291
        %v3293 = vrcp.pop %v3272
        %v3294 = vmul.f32 1.0, %v3293
        %v3295 = vrcp.pop %v3273
        %v3296 = vmul.f32 1.0, %v3295
        %v3297 = vrcp.pop %v3274
        %v3298 = vmul.f32 1.0, %v3297
        %v3299 = vrcp.pop %v3275
        %v3300 = vmul.f32 1.0, %v3299
        %v3301 = vrcp.pop %v3276
        %v3302 = vmul.f32 1.0, %v3301
        %v3303 = vrcp.pop %v3277
        %v3304 = vmul.f32 1.0, %v3303
        %v3305 = vrcp.pop %v3278
        %v3306 = vmul.f32 1.0, %v3305
        %v3307 = vrcp.pop %v3279
        %v3308 = vmul.f32 1.0, %v3307
        %v3309 = vrcp.pop %v3280
        %v3310 = vmul.f32 1.0, %v3309
        %v3311 = vrcp.pop %v3281
        %v3312 = vmul.f32 1.0, %v3311
        %v3313 = vrcp.pop %v3282
        %v3314 = vmul.f32 1.0, %v3313
        %3315 = vst.msk [vmem:[%s601] sm:$0xff] %vm638, %v3284
        %3316 = vst.msk [vmem:[%s601 + $0x8] sm:$0xff] %vm638, %v3286
        %3317 = vst.msk [vmem:[%s601 + $0x10] sm:$0xff] %vm638, %v3288
        %3318 = vst.msk [vmem:[%s601 + $0x18] sm:$0xff] %vm638, %v3290
        %3319 = vst.msk [vmem:[%s601 + $0x20] sm:$0xff] %vm638, %v3292
        %3320 = vst.msk [vmem:[%s601 + $0x28] sm:$0xff] %vm638, %v3294
        %3321 = vst.msk [vmem:[%s601 + $0x30] sm:$0xff] %vm638, %v3296
        %3322 = vst.msk [vmem:[%s601 + $0x38] sm:$0xff] %vm638, %v3298
        %3323 = vst.msk [vmem:[%s601 + $0x40] sm:$0xff] %vm638, %v3300
        %3324 = vst.msk [vmem:[%s601 + $0x48] sm:$0xff] %vm638, %v3302
        %3325 = vst.msk [vmem:[%s601 + $0x50] sm:$0xff] %vm638, %v3304
        %3326 = vst.msk [vmem:[%s601 + $0x58] sm:$0xff] %vm638, %v3306
        %3327 = vst.msk [vmem:[%s601 + $0x60] sm:$0xff] %vm638, %v3308
        %3328 = vst.msk [vmem:[%s601 + $0x68] sm:$0xff] %vm638, %v3310
        %3329 = vst.msk [vmem:[%s601 + $0x70] sm:$0xff] %vm638, %v3312
        %3330 = vst.msk [vmem:[%s601 + $0x78] sm:$0xff] %vm638, %v3314
        %s3331 = smul.u32 16, %s32
        %p3332 = scmp.lt.s32.totalorder %s3331, 31
        %s3333 = scalar_select %p3332, %s3331, 31
        %s3334 = smul.addr %s3333, 8
        %s3335 = scalar_lea.vmem %s13, %s3334
        %s3336 = smul.u32 16, %s32
        %p3337 = scmp.lt.s32.totalorder %s3336, 31
        %s3338 = scalar_select %p3337, %s3336, 31
        %s3339 = smul.addr %s3338, 8
        %s3340 = scalar_lea.vmem %s14, %s3339
        %s3341 = sand.u32 %s380, 1
        %s3342 = scalar_lea.sflag [#allocation4], %s3341
        %s3343 = sand.u32 %s380, 1
        %s3344 = smul.addr %s3343, 256
        %s3345 = scalar_lea.vmem [#allocation8], %s3344
        // Predicated region
        $region85: #{tpu_custom_call.1} parent=71 // pred_check
          %p3346 = pneg %p338
        $region86: #{tpu_custom_call.1} parent=71 // pred_check_branch
          %3348 = sbr.rel (%p3346) target = $region88
        $region87: #{tpu_custom_call.1} parent=71 // pred_region
          %s3349 = smul.u32 16, %s32
        $region88: #{tpu_custom_call.1} parent=71 // pred_fallthru
          _
        // Predicated region
        $region89: #{tpu_custom_call.1} parent=71 // pred_check
          %p3350 = pneg %p364
        $region90: #{tpu_custom_call.1} parent=71 // pred_check_branch
          %3352 = sbr.rel (%p3350) target = $region92
        $region91: #{tpu_custom_call.1} parent=71 // pred_region
          %s3353 = smul.u32 16, %s32
        $region92: #{tpu_custom_call.1} parent=71 // pred_fallthru
          _
        // Predicated region
        $region93: #{tpu_custom_call.1} parent=71 // pred_check
          %p3354 = pneg %p390
        $region94: #{tpu_custom_call.1} parent=71 // pred_check_branch
          %3356 = sbr.rel (%p3354) target = $region96
        $region95: #{tpu_custom_call.1} parent=71 // pred_region
          %s3357 = smul.u32 16, %s32
          %s3359 = ssub.s32 4096, 4096
          %3360 = vsyncadd %s3342, %s3359
          %s3361 = smul.addr %s3357, 2
          %s3362 = smul.addr %s3361, 128
          %s3363 = scalar_lea.hbm %s15, %s3362
          %s3364 = sshll.u32 %s3345, 4
          %s3365 = int_to_ptr.vmem [resolvable:$true] %s3364
          %3370 = dma.vmem_to_hbm [thread:$0]  %s3365, 4096, %s3363, %s3342, 256, 256, 16
        $region96: #{tpu_custom_call.1} parent=71 // pred_fallthru
          _
      $region72: #{tpu_custom_call.1} parent=5 // pred_fallthru
        _
      %p3371 = scmp.le.s32.totalorder 2, %s27
      // Predicated region
      $region97: #{tpu_custom_call.1} parent=5 // pred_check
        %p3372 = pneg %p3371
      $region98: #{tpu_custom_call.1} parent=5 // pred_check_branch
        %3374 = sbr.rel (%p3372) target = $region100
      $region99: #{tpu_custom_call.1} parent=5 // pred_region
        %s3375 = ssub.s32 %s27, 2
        // Predicated region
        $region101: #{tpu_custom_call.1} parent=99 // pred_check
          %p3376 = pneg %p344
        $region102: #{tpu_custom_call.1} parent=99 // pred_check_branch
          %3378 = sbr.rel (%p3376) target = $region104
        $region103: #{tpu_custom_call.1} parent=99 // pred_region
          %s3379 = smul.u32 16, %s33
          %p3380 = scmp.lt.s32.totalorder %s3379, 31
          %s3381 = scalar_select %p3380, %s3379, 31
          %s3382 = smul.addr %s3381, 8
          %s3383 = scalar_lea.vmem %s13, %s3382
        $region104: #{tpu_custom_call.1} parent=99 // pred_fallthru
          _
        // Predicated region
        $region105: #{tpu_custom_call.1} parent=99 // pred_check
          %p3384 = pneg %p370
        $region106: #{tpu_custom_call.1} parent=99 // pred_check_branch
          %3386 = sbr.rel (%p3384) target = $region108
        $region107: #{tpu_custom_call.1} parent=99 // pred_region
          %s3387 = smul.u32 16, %s33
          %p3388 = scmp.lt.s32.totalorder %s3387, 31
          %s3389 = scalar_select %p3388, %s3387, 31
          %s3390 = smul.addr %s3389, 8
          %s3391 = scalar_lea.vmem %s14, %s3390
        $region108: #{tpu_custom_call.1} parent=99 // pred_fallthru
          _
        // Predicated region
        $region109: #{tpu_custom_call.1} parent=99 // pred_check
          %p3392 = pneg %p396
        $region110: #{tpu_custom_call.1} parent=99 // pred_check_branch
          %3394 = sbr.rel (%p3392) target = $region112
        $region111: #{tpu_custom_call.1} parent=99 // pred_region
          %s3395 = sand.u32 %s381, 1
          %s3396 = scalar_lea.sflag [#allocation4], %s3395
          %s3397 = sand.u32 %s381, 1
          %s3398 = smul.addr %s3397, 256
          %s3399 = scalar_lea.vmem [#allocation8], %s3398
          %3400 = dma.done %s3396, 4096
        $region112: #{tpu_custom_call.1} parent=99 // pred_fallthru
          _
      $region100: #{tpu_custom_call.1} parent=5 // pred_fallthru
        _
    $region6: #{tpu_custom_call.1} parent=1 // loop_footer
      %s31 = sadd.s32 1, %s27
    $region7: #{tpu_custom_call.1} parent=1 // loop_footer_branch
      %26 = sbr.rel target = $region3
    $region8: #{tpu_custom_call.1} parent=1 // loop_exit
      _
    %3401 = vsyncpa [#allocation3], 1
    %s3402 = scalar_lea.sflag [#allocation3], 1
    %3403 = vsyncpa %s3402, 1
    %3404 = vsyncpa [#allocation6], 1
    %3405 = vsyncpa [#allocation4], 1
    %s3406 = scalar_lea.sflag [#allocation4], 1
    %3407 = vsyncpa %s3406, 1

</llo_original>
